<compile_context>
chip_gen: v7x
topology: tpu7x:2x2x1
jax: 0.10.0
libtpu: 0.0.40
codegen_flags: <defaults>
</compile_context>

<pallas_src>
import functools
import math

import jax
import jax.numpy as jnp
from jax import lax
from jax.experimental import pallas as pl
from jax.experimental.pallas import tpu as pltpu

SEQ = 8       # timesteps
BATCH = 8     # batch size (full 8-sublane tile)
INPUT = 32    # input feature size
HIDDEN = 128  # hidden size (full 128-lane width -> unmasked stores)


# ----------------------------- fused RNN-layer kernel -----------------------------
def rnn_layer_kernel(x_ref, h0_ref, wih_t_ref, whh_t_ref, b_ref,
                     out_ref, hT_ref, *, seq_len, batch):
    """Shapes:
       x_ref:     (T*B, I)   flattened sequence-major inputs
       h0_ref:    (B, H)     initial hidden (hidden_init[0] in the spec)
       wih_t_ref: (I, H)     = weight_ih.T
       whh_t_ref: (H, H)     = weight_hh.T
       b_ref:     (1, H)     bias
       out_ref:   (T*B, H)   all hidden states (lane-dense)
       hT_ref:    (B, H)     final hidden state
    """
    wih_t = wih_t_ref[...]
    whh_t = whh_t_ref[...]
    b = b_ref[...]

    # Input projection for every timestep in a single MXU matmul.  Kept as a value
    # (8 vregs at these shapes) so the recurrence never reads it back from a Ref.
    xp = jnp.dot(x_ref[...], wih_t,
                 preferred_element_type=jnp.float32,
                 precision=lax.Precision.HIGHEST) + b          # (T*B, H)

    h = h0_ref[...]                                            # (B, H) loop-carried vreg
    for t in range(seq_len):                                   # static unroll
        row = t * batch                                        # Python int -> static slice
        pre = xp[row:row + batch, :] + jnp.dot(
            h, whh_t,
            preferred_element_type=jnp.float32,
            precision=lax.Precision.HIGHEST)
        h = jnp.tanh(pre)                                      # nonlinearity = tanh
        out_ref[row:row + batch, :] = h                        # one full-vreg vst per step
    hT_ref[...] = h


# ----------------------------- wrapper -----------------------------
@jax.jit
def rnn_layer_forward(x, hidden_init, wih_t, whh_t, b):
    """x: (T, B, I) f32; hidden_init: (1, B, H) f32.
       Returns (outputs (T, B, H), final hidden (B, H)) — matches RNNLayer.forward."""
    T, B, I = x.shape
    H = whh_t.shape[0]
    x2d = x.reshape(T * B, I)        # contiguous leading-dim merge: free in XLA
    h0 = hidden_init[0]              # squeeze to (B, H) outside the kernel

    out2d, h_last = pl.pallas_call(
        functools.partial(rnn_layer_kernel, seq_len=T, batch=B),
        out_shape=(jax.ShapeDtypeStruct((T * B, H), jnp.float32),
                   jax.ShapeDtypeStruct((B, H), jnp.float32)),
        grid=(1,),
        in_specs=[
            pl.BlockSpec((T * B, I), lambda i: (0, 0)),   # x (flattened)
            pl.BlockSpec((B, H), lambda i: (0, 0)),       # h0
            pl.BlockSpec((I, H), lambda i: (0, 0)),       # W_ih.T
            pl.BlockSpec((H, H), lambda i: (0, 0)),       # W_hh.T
            pl.BlockSpec((1, H), lambda i: (0, 0)),       # bias
        ],
        out_specs=(pl.BlockSpec((T * B, H), lambda i: (0, 0)),
                   pl.BlockSpec((B, H), lambda i: (0, 0))),
        compiler_params=pltpu.CompilerParams(
            dimension_semantics=("arbitrary",)),
    )(x2d, h0, wih_t, whh_t, b)

    return out2d.reshape(T, B, H), h_last


# --------------------- parameter init (matches PyTorch reset_parameters) ---------------
def init_params(key, input_size, hidden_size):
    k1, k2, k3 = jax.random.split(key, 3)
    # kaiming_uniform_(a=sqrt(5)) => uniform(-1/sqrt(fan_in), 1/sqrt(fan_in)).
    # Stored pre-transposed (W.T); element-wise uniform init is transpose-invariant.
    bound_ih = 1.0 / math.sqrt(input_size)
    bound_hh = 1.0 / math.sqrt(hidden_size)
    wih_t = jax.random.uniform(k1, (input_size, hidden_size), jnp.float32,
                               -bound_ih, bound_ih)
    whh_t = jax.random.uniform(k2, (hidden_size, hidden_size), jnp.float32,
                               -bound_hh, bound_hh)
    b = jax.random.uniform(k3, (1, hidden_size), jnp.float32, -bound_ih, bound_ih)
    return wih_t, whh_t, b


# ----------------------------- pure-JAX reference -----------------------------
def rnn_layer_reference(x, hidden_init, wih_t, whh_t, b):
    h = hidden_init[0]
    outs = []
    for t in range(x.shape[0]):
        pre = (jnp.dot(x[t], wih_t, precision=lax.Precision.HIGHEST)
               + jnp.dot(h, whh_t, precision=lax.Precision.HIGHEST) + b)
        h = jnp.tanh(pre)
        outs.append(h)
    return jnp.stack(outs, axis=0), h


# ----------------------------- main -----------------------------
if __name__ == "__main__":
    key = jax.random.PRNGKey(0)
    kp, kx, kh = jax.random.split(key, 3)

    wih_t, whh_t, b = init_params(kp, INPUT, HIDDEN)
    x = jax.random.normal(kx, (SEQ, BATCH, INPUT), jnp.float32)
    hidden_init = jax.random.normal(kh, (1, BATCH, HIDDEN), jnp.float32)

    out_seq, h_last = rnn_layer_forward(x, hidden_init, wih_t, whh_t, b)
    out_seq, h_last = jax.block_until_ready((out_seq, h_last))

    assert out_seq.shape == (SEQ, BATCH, HIDDEN), out_seq.shape
    assert h_last.shape == (BATCH, HIDDEN), h_last.shape
    assert bool(jnp.all(jnp.isfinite(out_seq)))

    ref_out, ref_h = rnn_layer_reference(x, hidden_init, wih_t, whh_t, b)
    assert bool(jnp.allclose(out_seq, ref_out, atol=2e-3, rtol=2e-3))
    assert bool(jnp.allclose(h_last, ref_h, atol=2e-3, rtol=2e-3))
    assert bool(jnp.allclose(out_seq[-1], h_last, atol=1e-6))

    print("KERNEL_OK")
</pallas_src>

<mosaic_0001>
module attributes {stable_mosaic.version = 11 : i64} {
  func.func @rnn_layer_kernel(%arg0: i32, %arg1: memref<64x32xf32, #tpu.memory_space<vmem>>, %arg2: memref<8x128xf32, #tpu.memory_space<vmem>>, %arg3: memref<32x128xf32, #tpu.memory_space<vmem>>, %arg4: memref<128x128xf32, #tpu.memory_space<vmem>>, %arg5: memref<1x128xf32, #tpu.memory_space<vmem>>, %arg6: memref<64x128xf32, #tpu.memory_space<vmem>>, %arg7: memref<8x128xf32, #tpu.memory_space<vmem>>) attributes {dimension_semantics = [#tpu.dimension_semantics<arbitrary>], iteration_bounds = array<i64: 1>, scalar_prefetch = 0 : i64, scratch_operands = 0 : i64, tpu.core_type = #tpu.core_type<tc>, window_params = [{pipeline_mode = #tpu.pipeline_mode<synchronous>, transform_indices = @transform_0, window_bounds = array<i64: 64, 32>}, {pipeline_mode = #tpu.pipeline_mode<synchronous>, transform_indices = @transform_1, window_bounds = array<i64: 8, 128>}, {pipeline_mode = #tpu.pipeline_mode<synchronous>, transform_indices = @transform_2, window_bounds = array<i64: 32, 128>}, {pipeline_mode = #tpu.pipeline_mode<synchronous>, transform_indices = @transform_3, window_bounds = array<i64: 128, 128>}, {pipeline_mode = #tpu.pipeline_mode<synchronous>, transform_indices = @transform_4, window_bounds = array<i64: 1, 128>}, {pipeline_mode = #tpu.pipeline_mode<synchronous>, transform_indices = @transform_5, window_bounds = array<i64: 64, 128>}, {pipeline_mode = #tpu.pipeline_mode<synchronous>, transform_indices = @transform_6, window_bounds = array<i64: 8, 128>}]} {
    %c0 = arith.constant 0 : index
    %c0_0 = arith.constant 0 : index
    %0 = vector.load %arg3[%c0, %c0_0] : memref<32x128xf32, #tpu.memory_space<vmem>>, vector<32x128xf32>
    %c0_1 = arith.constant 0 : index
    %c0_2 = arith.constant 0 : index
    %1 = vector.load %arg4[%c0_1, %c0_2] : memref<128x128xf32, #tpu.memory_space<vmem>>, vector<128x128xf32>
    %c0_3 = arith.constant 0 : index
    %c0_4 = arith.constant 0 : index
    %2 = vector.load %arg5[%c0_3, %c0_4] : memref<1x128xf32, #tpu.memory_space<vmem>>, vector<1x128xf32>
    %c0_5 = arith.constant 0 : index
    %c0_6 = arith.constant 0 : index
    %3 = vector.load %arg1[%c0_5, %c0_6] : memref<64x32xf32, #tpu.memory_space<vmem>>, vector<64x32xf32>
    %cst = arith.constant dense<0.000000e+00> : vector<64x128xf32>
    %4 = tpu.matmul %3, %0, %cst {dimension_numbers = #tpu.dot_dimension_numbers<[1], [0], [0], [1], [0, 0, 1, 1], [], []>, precision = #tpu.contract_precision<fp32>} : vector<64x32xf32>, vector<32x128xf32>, vector<64x128xf32> -> vector<64x128xf32>
    %5 = vector.broadcast %2 : vector<1x128xf32> to vector<64x128xf32>
    %6 = arith.addf %4, %5 : vector<64x128xf32>
    %c0_7 = arith.constant 0 : index
    %c0_8 = arith.constant 0 : index
    %7 = vector.load %arg2[%c0_7, %c0_8] : memref<8x128xf32, #tpu.memory_space<vmem>>, vector<8x128xf32>
    %8 = vector.extract_strided_slice %6 {offsets = [0, 0], sizes = [8, 128], strides = [1, 1]} : vector<64x128xf32> to vector<8x128xf32>
    %cst_9 = arith.constant dense<0.000000e+00> : vector<8x128xf32>
    %9 = tpu.matmul %7, %1, %cst_9 {dimension_numbers = #tpu.dot_dimension_numbers<[1], [0], [0], [1], [0, 0, 1, 1], [], []>, precision = #tpu.contract_precision<fp32>} : vector<8x128xf32>, vector<128x128xf32>, vector<8x128xf32> -> vector<8x128xf32>
    %10 = arith.addf %8, %9 : vector<8x128xf32>
    %11 = math.tanh %10 : vector<8x128xf32>
    %c0_10 = arith.constant 0 : index
    %c0_11 = arith.constant 0 : index
    %12 = vector.load %arg6[%c0_10, %c0_11] : memref<64x128xf32, #tpu.memory_space<vmem>>, vector<8x128xf32>
    tpu.vector_store %arg6[%c0_10, %c0_11], %11 {strides = array<i32>} : memref<64x128xf32, #tpu.memory_space<vmem>>, vector<8x128xf32>,
    %13 = vector.extract_strided_slice %6 {offsets = [8, 0], sizes = [8, 128], strides = [1, 1]} : vector<64x128xf32> to vector<8x128xf32>
    %cst_12 = arith.constant dense<0.000000e+00> : vector<8x128xf32>
    %14 = tpu.matmul %11, %1, %cst_12 {dimension_numbers = #tpu.dot_dimension_numbers<[1], [0], [0], [1], [0, 0, 1, 1], [], []>, precision = #tpu.contract_precision<fp32>} : vector<8x128xf32>, vector<128x128xf32>, vector<8x128xf32> -> vector<8x128xf32>
    %15 = arith.addf %13, %14 : vector<8x128xf32>
    %16 = math.tanh %15 : vector<8x128xf32>
    %c8 = arith.constant 8 : index
    %c0_13 = arith.constant 0 : index
    %17 = vector.load %arg6[%c8, %c0_13] : memref<64x128xf32, #tpu.memory_space<vmem>>, vector<8x128xf32>
    tpu.vector_store %arg6[%c8, %c0_13], %16 {strides = array<i32>} : memref<64x128xf32, #tpu.memory_space<vmem>>, vector<8x128xf32>,
    %18 = vector.extract_strided_slice %6 {offsets = [16, 0], sizes = [8, 128], strides = [1, 1]} : vector<64x128xf32> to vector<8x128xf32>
    %cst_14 = arith.constant dense<0.000000e+00> : vector<8x128xf32>
    %19 = tpu.matmul %16, %1, %cst_14 {dimension_numbers = #tpu.dot_dimension_numbers<[1], [0], [0], [1], [0, 0, 1, 1], [], []>, precision = #tpu.contract_precision<fp32>} : vector<8x128xf32>, vector<128x128xf32>, vector<8x128xf32> -> vector<8x128xf32>
    %20 = arith.addf %18, %19 : vector<8x128xf32>
    %21 = math.tanh %20 : vector<8x128xf32>
    %c16 = arith.constant 16 : index
    %c0_15 = arith.constant 0 : index
    %22 = vector.load %arg6[%c16, %c0_15] : memref<64x128xf32, #tpu.memory_space<vmem>>, vector<8x128xf32>
    tpu.vector_store %arg6[%c16, %c0_15], %21 {strides = array<i32>} : memref<64x128xf32, #tpu.memory_space<vmem>>, vector<8x128xf32>,
    %23 = vector.extract_strided_slice %6 {offsets = [24, 0], sizes = [8, 128], strides = [1, 1]} : vector<64x128xf32> to vector<8x128xf32>
    %cst_16 = arith.constant dense<0.000000e+00> : vector<8x128xf32>
    %24 = tpu.matmul %21, %1, %cst_16 {dimension_numbers = #tpu.dot_dimension_numbers<[1], [0], [0], [1], [0, 0, 1, 1], [], []>, precision = #tpu.contract_precision<fp32>} : vector<8x128xf32>, vector<128x128xf32>, vector<8x128xf32> -> vector<8x128xf32>
    %25 = arith.addf %23, %24 : vector<8x128xf32>
    %26 = math.tanh %25 : vector<8x128xf32>
    %c24 = arith.constant 24 : index
    %c0_17 = arith.constant 0 : index
    %27 = vector.load %arg6[%c24, %c0_17] : memref<64x128xf32, #tpu.memory_space<vmem>>, vector<8x128xf32>
    tpu.vector_store %arg6[%c24, %c0_17], %26 {strides = array<i32>} : memref<64x128xf32, #tpu.memory_space<vmem>>, vector<8x128xf32>,
    %28 = vector.extract_strided_slice %6 {offsets = [32, 0], sizes = [8, 128], strides = [1, 1]} : vector<64x128xf32> to vector<8x128xf32>
    %cst_18 = arith.constant dense<0.000000e+00> : vector<8x128xf32>
    %29 = tpu.matmul %26, %1, %cst_18 {dimension_numbers = #tpu.dot_dimension_numbers<[1], [0], [0], [1], [0, 0, 1, 1], [], []>, precision = #tpu.contract_precision<fp32>} : vector<8x128xf32>, vector<128x128xf32>, vector<8x128xf32> -> vector<8x128xf32>
    %30 = arith.addf %28, %29 : vector<8x128xf32>
    %31 = math.tanh %30 : vector<8x128xf32>
    %c32 = arith.constant 32 : index
    %c0_19 = arith.constant 0 : index
    %32 = vector.load %arg6[%c32, %c0_19] : memref<64x128xf32, #tpu.memory_space<vmem>>, vector<8x128xf32>
    tpu.vector_store %arg6[%c32, %c0_19], %31 {strides = array<i32>} : memref<64x128xf32, #tpu.memory_space<vmem>>, vector<8x128xf32>,
    %33 = vector.extract_strided_slice %6 {offsets = [40, 0], sizes = [8, 128], strides = [1, 1]} : vector<64x128xf32> to vector<8x128xf32>
    %cst_20 = arith.constant dense<0.000000e+00> : vector<8x128xf32>
    %34 = tpu.matmul %31, %1, %cst_20 {dimension_numbers = #tpu.dot_dimension_numbers<[1], [0], [0], [1], [0, 0, 1, 1], [], []>, precision = #tpu.contract_precision<fp32>} : vector<8x128xf32>, vector<128x128xf32>, vector<8x128xf32> -> vector<8x128xf32>
    %35 = arith.addf %33, %34 : vector<8x128xf32>
    %36 = math.tanh %35 : vector<8x128xf32>
    %c40 = arith.constant 40 : index
    %c0_21 = arith.constant 0 : index
    %37 = vector.load %arg6[%c40, %c0_21] : memref<64x128xf32, #tpu.memory_space<vmem>>, vector<8x128xf32>
    tpu.vector_store %arg6[%c40, %c0_21], %36 {strides = array<i32>} : memref<64x128xf32, #tpu.memory_space<vmem>>, vector<8x128xf32>,
    %38 = vector.extract_strided_slice %6 {offsets = [48, 0], sizes = [8, 128], strides = [1, 1]} : vector<64x128xf32> to vector<8x128xf32>
    %cst_22 = arith.constant dense<0.000000e+00> : vector<8x128xf32>
    %39 = tpu.matmul %36, %1, %cst_22 {dimension_numbers = #tpu.dot_dimension_numbers<[1], [0], [0], [1], [0, 0, 1, 1], [], []>, precision = #tpu.contract_precision<fp32>} : vector<8x128xf32>, vector<128x128xf32>, vector<8x128xf32> -> vector<8x128xf32>
    %40 = arith.addf %38, %39 : vector<8x128xf32>
    %41 = math.tanh %40 : vector<8x128xf32>
    %c48 = arith.constant 48 : index
    %c0_23 = arith.constant 0 : index
    %42 = vector.load %arg6[%c48, %c0_23] : memref<64x128xf32, #tpu.memory_space<vmem>>, vector<8x128xf32>
    tpu.vector_store %arg6[%c48, %c0_23], %41 {strides = array<i32>} : memref<64x128xf32, #tpu.memory_space<vmem>>, vector<8x128xf32>,
    %43 = vector.extract_strided_slice %6 {offsets = [56, 0], sizes = [8, 128], strides = [1, 1]} : vector<64x128xf32> to vector<8x128xf32>
    %cst_24 = arith.constant dense<0.000000e+00> : vector<8x128xf32>
    %44 = tpu.matmul %41, %1, %cst_24 {dimension_numbers = #tpu.dot_dimension_numbers<[1], [0], [0], [1], [0, 0, 1, 1], [], []>, precision = #tpu.contract_precision<fp32>} : vector<8x128xf32>, vector<128x128xf32>, vector<8x128xf32> -> vector<8x128xf32>
    %45 = arith.addf %43, %44 : vector<8x128xf32>
    %46 = math.tanh %45 : vector<8x128xf32>
    %c56 = arith.constant 56 : index
    %c0_25 = arith.constant 0 : index
    %47 = vector.load %arg6[%c56, %c0_25] : memref<64x128xf32, #tpu.memory_space<vmem>>, vector<8x128xf32>
    tpu.vector_store %arg6[%c56, %c0_25], %46 {strides = array<i32>} : memref<64x128xf32, #tpu.memory_space<vmem>>, vector<8x128xf32>,
    %c0_26 = arith.constant 0 : index
    %c0_27 = arith.constant 0 : index
    %48 = vector.load %arg7[%c0_26, %c0_27] : memref<8x128xf32, #tpu.memory_space<vmem>>, vector<8x128xf32>
    tpu.vector_store %arg7[%c0_26, %c0_27], %46 {strides = array<i32>} : memref<8x128xf32, #tpu.memory_space<vmem>>, vector<8x128xf32>,
    return
  }
  func.func @transform_0(%arg0: i32) -> (i32, i32) {
    %c0_i32 = arith.constant 0 : i32
    %c0_i32_0 = arith.constant 0 : i32
    %c0_i32_1 = arith.constant 0 : i32
    return %c0_i32, %c0_i32_0 : i32, i32
  }
  func.func @transform_1(%arg0: i32) -> (i32, i32) {
    %c0_i32 = arith.constant 0 : i32
    %c0_i32_0 = arith.constant 0 : i32
    %c0_i32_1 = arith.constant 0 : i32
    return %c0_i32, %c0_i32_0 : i32, i32
  }
  func.func @transform_2(%arg0: i32) -> (i32, i32) {
    %c0_i32 = arith.constant 0 : i32
    %c0_i32_0 = arith.constant 0 : i32
    %c0_i32_1 = arith.constant 0 : i32
    return %c0_i32, %c0_i32_0 : i32, i32
  }
  func.func @transform_3(%arg0: i32) -> (i32, i32) {
    %c0_i32 = arith.constant 0 : i32
    %c0_i32_0 = arith.constant 0 : i32
    %c0_i32_1 = arith.constant 0 : i32
    return %c0_i32, %c0_i32_0 : i32, i32
  }
  func.func @transform_4(%arg0: i32) -> (i32, i32) {
    %c0_i32 = arith.constant 0 : i32
    %c0_i32_0 = arith.constant 0 : i32
    %c0_i32_1 = arith.constant 0 : i32
    return %c0_i32, %c0_i32_0 : i32, i32
  }
  func.func @transform_5(%arg0: i32) -> (i32, i32) {
    %c0_i32 = arith.constant 0 : i32
    %c0_i32_0 = arith.constant 0 : i32
    %c0_i32_1 = arith.constant 0 : i32
    return %c0_i32, %c0_i32_0 : i32, i32
  }
  func.func @transform_6(%arg0: i32) -> (i32, i32) {
    %c0_i32 = arith.constant 0 : i32
    %c0_i32_0 = arith.constant 0 : i32
    %c0_i32_1 = arith.constant 0 : i32
    return %c0_i32, %c0_i32_0 : i32, i32
  }
}

</mosaic_0001>

<llo_original>
// kernel: rnn_layer_forward.1
$region0: #{rnn_layer_forward.1}
  #allocation0 [shape = 'u32[]', space=smem, size = 0x4, offset = 0x4, fixed_abs, tag = 'smem constant byte address 0x4 - core index']
  #allocation1 [shape = 'u32[144,128]{1,0:T(1,128)}', space=vmem, size = 0x12000, scoped, tag = 'internal scratch']
  %s0 = inlined_call_operand.hbm [shape: f32[64,32], index: 0, kind: input, shape index: {}]
  %s1 = inlined_call_operand.vmem [shape: f32[8,128], index: 1, kind: input, shape index: {}]
  %s2 = inlined_call_operand.hbm [shape: f32[32,128], index: 2, kind: input, shape index: {}]
  %s3 = inlined_call_operand.hbm [shape: f32[128,128], index: 3, kind: input, shape index: {}]
  %s4 = inlined_call_operand.vmem [shape: f32[1,128], index: 4, kind: input, shape index: {}]
  %s5 = inlined_call_operand.hbm [shape: f32[64,128], index: 5, kind: output, shape index: {0}]
  %s6 = inlined_call_operand.hbm [shape: f32[8,128], index: 6, kind: output, shape index: {1}]
  %7 = xla_tuple %s5, %s6
  %s8 = sld [smem:[#allocation0]]
  $region50: #{rnn_layer_forward.1} parent=0
    _
  %s10 = ssub.s32 1, %s8
  %s11 = scalar_select 0, %s10, %s8
  $region1: #{rnn_layer_forward.1} parent=0
    #allocation2 [shape = 'u8[32768]{0}', space=vmem, size = 0x8000, scoped, tag = 'input window, operand 0, single buffered']
    #allocation3 [shape = 's32[1]{0}', space=sflag, size = 0x4, scoped, tag = 'scoped memory for rnn_layer_forward.1']
    #allocation4 [shape = 's32[1]{0}', space=sflag, size = 0x4, scoped, tag = 'scoped memory for rnn_layer_forward.1']
    #allocation5 [shape = 'u8[16384]{0}', space=vmem, size = 0x4000, scoped, tag = 'input window, operand 2, single buffered']
    #allocation6 [shape = 's32[1]{0}', space=sflag, size = 0x4, scoped, tag = 'scoped memory for rnn_layer_forward.1']
    #allocation7 [shape = 'u8[65536]{0}', space=vmem, size = 0x10000, scoped, tag = 'input window, operand 3, single buffered']
    #allocation8 [shape = 'u8[32768]{0}', space=vmem, size = 0x8000, scoped, tag = 'output window, operand 0, single buffered']
    #allocation9 [shape = 'u8[4096]{0}', space=vmem, size = 0x1000, scoped, tag = 'output window, operand 1, single buffered']
    #allocation10 [shape = 's32[1]{0}', space=sflag, size = 0x4, scoped, tag = 'scoped memory for rnn_layer_forward.1']
    %12 = vsyncpa [#allocation3], 0
    %13 = vsyncpa [#allocation6], 0
    %14 = vsyncpa [#allocation4], 0
    %15 = vsyncpa [#allocation10], 0
    // Predicated region
    $region2: #{rnn_layer_forward.1} parent=1 // pred_check
      _
    $region3: #{rnn_layer_forward.1} parent=1 // pred_check_branch
      %17 = sbr.rel (0) target = $region5
    $region4: #{rnn_layer_forward.1} parent=1 // pred_region
      %s19 = ssub.s32 1024, 1024
      %20 = vsyncadd [#allocation3], %s19
      %s21 = sshll.u32 [#allocation2], 4
      %s22 = int_to_ptr.vmem [resolvable:$true] %s21
      %27 = dma.hbm_to_vmem [thread:$0]  %s0, 1024, %s22, [#allocation3], 128, 128, 8
    $region5: #{rnn_layer_forward.1} parent=1 // pred_fallthru
      _
    // Predicated region
    $region6: #{rnn_layer_forward.1} parent=1 // pred_check
      _
    $region7: #{rnn_layer_forward.1} parent=1 // pred_check_branch
      %29 = sbr.rel (0) target = $region9
    $region8: #{rnn_layer_forward.1} parent=1 // pred_region
      _
    $region9: #{rnn_layer_forward.1} parent=1 // pred_fallthru
      _
    // Predicated region
    $region10: #{rnn_layer_forward.1} parent=1 // pred_check
      _
    $region11: #{rnn_layer_forward.1} parent=1 // pred_check_branch
      %31 = sbr.rel (0) target = $region13
    $region12: #{rnn_layer_forward.1} parent=1 // pred_region
      %s33 = ssub.s32 512, 512
      %34 = vsyncadd [#allocation6], %s33
      %s35 = sshll.u32 [#allocation5], 4
      %s36 = int_to_ptr.vmem [resolvable:$true] %s35
      %41 = dma.hbm_to_vmem [thread:$0]  %s2, 512, %s36, [#allocation6], 128, 128, 8
    $region13: #{rnn_layer_forward.1} parent=1 // pred_fallthru
      _
    // Predicated region
    $region14: #{rnn_layer_forward.1} parent=1 // pred_check
      _
    $region15: #{rnn_layer_forward.1} parent=1 // pred_check_branch
      %43 = sbr.rel (0) target = $region17
    $region16: #{rnn_layer_forward.1} parent=1 // pred_region
      %s45 = ssub.s32 2048, 2048
      %46 = vsyncadd [#allocation6], %s45
      %s47 = sshll.u32 [#allocation7], 4
      %s48 = int_to_ptr.vmem [resolvable:$true] %s47
      %53 = dma.hbm_to_vmem [thread:$0]  %s3, 2048, %s48, [#allocation6], 128, 128, 8
    $region17: #{rnn_layer_forward.1} parent=1 // pred_fallthru
      _
    // Predicated region
    $region18: #{rnn_layer_forward.1} parent=1 // pred_check
      _
    $region19: #{rnn_layer_forward.1} parent=1 // pred_check_branch
      %55 = sbr.rel (0) target = $region21
    $region20: #{rnn_layer_forward.1} parent=1 // pred_region
      _
    $region21: #{rnn_layer_forward.1} parent=1 // pred_fallthru
      _
    // Predicated region
    $region22: #{rnn_layer_forward.1} parent=1 // pred_check
      _
    $region23: #{rnn_layer_forward.1} parent=1 // pred_check_branch
      %57 = sbr.rel (0) target = $region25
    $region24: #{rnn_layer_forward.1} parent=1 // pred_region
      %58 = dma.done [#allocation3], 1024
    $region25: #{rnn_layer_forward.1} parent=1 // pred_fallthru
      _
    // Predicated region
    $region26: #{rnn_layer_forward.1} parent=1 // pred_check
      _
    $region27: #{rnn_layer_forward.1} parent=1 // pred_check_branch
      %60 = sbr.rel (0) target = $region29
    $region28: #{rnn_layer_forward.1} parent=1 // pred_region
      %61 = dma.done [#allocation6], 512
    $region29: #{rnn_layer_forward.1} parent=1 // pred_fallthru
      _
    // Predicated region
    $region30: #{rnn_layer_forward.1} parent=1 // pred_check
      _
    $region31: #{rnn_layer_forward.1} parent=1 // pred_check_branch
      %63 = sbr.rel (0) target = $region33
    $region32: #{rnn_layer_forward.1} parent=1 // pred_region
      %64 = dma.done [#allocation6], 2048
    $region33: #{rnn_layer_forward.1} parent=1 // pred_fallthru
      _
    %v65 = vld [vmem:[#allocation5] sm:$0xff]
    %v66 = vld [vmem:[#allocation5 + $0x8] sm:$0xff]
    %v67 = vld [vmem:[#allocation5 + $0x10] sm:$0xff]
    %v68 = vld [vmem:[#allocation5 + $0x18] sm:$0xff]
    %v69 = vld [vmem:[#allocation7] sm:$0xff]
    %v70 = vld [vmem:[#allocation7 + $0x8] sm:$0xff]
    %v71 = vld [vmem:[#allocation7 + $0x10] sm:$0xff]
    %v72 = vld [vmem:[#allocation7 + $0x18] sm:$0xff]
    %v73 = vld [vmem:[#allocation7 + $0x20] sm:$0xff]
    %v74 = vld [vmem:[#allocation7 + $0x28] sm:$0xff]
    %v75 = vld [vmem:[#allocation7 + $0x30] sm:$0xff]
    %v76 = vld [vmem:[#allocation7 + $0x38] sm:$0xff]
    %v77 = vld [vmem:[#allocation7 + $0x40] sm:$0xff]
    %v78 = vld [vmem:[#allocation7 + $0x48] sm:$0xff]
    %v79 = vld [vmem:[#allocation7 + $0x50] sm:$0xff]
    %v80 = vld [vmem:[#allocation7 + $0x58] sm:$0xff]
    %v81 = vld [vmem:[#allocation7 + $0x60] sm:$0xff]
    %v82 = vld [vmem:[#allocation7 + $0x68] sm:$0xff]
    %v83 = vld [vmem:[#allocation7 + $0x70] sm:$0xff]
    %v84 = vld [vmem:[#allocation7 + $0x78] sm:$0xff]
    %v85 = vld [vmem:[%s4] sm:$0x1]
    %v86 = vld [vmem:[#allocation2] sm:$0xff]
    %v87 = vld [vmem:[#allocation2 + $0x8] sm:$0xff]
    %v88 = vld [vmem:[#allocation2 + $0x10] sm:$0xff]
    %v89 = vld [vmem:[#allocation2 + $0x18] sm:$0xff]
    %v90 = vld [vmem:[#allocation2 + $0x20] sm:$0xff]
    %v91 = vld [vmem:[#allocation2 + $0x28] sm:$0xff]
    %v92 = vld [vmem:[#allocation2 + $0x30] sm:$0xff]
    %v93 = vld [vmem:[#allocation2 + $0x38] sm:$0xff]
    %v95 = vlaneseq
    %v96 = vshrl.u32 %v95, 7
    %v97 = vsub.s32 0, %v96
    %v98 = vrot.slane %v85, %v97
    %vm100 = vcmask 261120
    %v102 = vsel %vm100, %v86, 0
    %v105 = vsel %vm100, %v87, 0
    %v108 = vsel %vm100, %v88, 0
    %v111 = vsel %vm100, %v89, 0
    %v114 = vsel %vm100, %v90, 0
    %v117 = vsel %vm100, %v91, 0
    %v120 = vsel %vm100, %v92, 0
    %v123 = vsel %vm100, %v93, 0
    %125 = vmatprep.subr.mxu0 0.0
    %v126 = vand.u32 %v65, 4294901760
    %127 = vmatpush1.msra.mxu0 %v126
    %128 = vmatprep.subr.mxu0 0.0
    %v129 = vand.u32 %v66, 4294901760
    %130 = vmatpush1.msra.mxu0 %v129
    %131 = vmatprep.subr.mxu0 0.0
    %v132 = vand.u32 %v67, 4294901760
    %133 = vmatpush1.msra.mxu0 %v132
    %134 = vmatprep.subr.mxu0 0.0
    %v135 = vand.u32 %v68, 4294901760
    %136 = vmatpush1.msra.mxu0 %v135
    %137 = vmatprep.subr.mxu0 0.0
    %138 = vmatpush1.msra.mxu0 0.0
    %139 = vmatprep.subr.mxu0 0.0
    %140 = vmatpush1.msra.mxu0 0.0
    %141 = vmatprep.subr.mxu0 0.0
    %142 = vmatpush1.msra.mxu0 0.0
    %143 = vmatprep.subr.mxu0 0.0
    %144 = vmatpush1.msra.mxu0 0.0
    %145 = vmatprep.subr.mxu0 0.0
    %146 = vmatpush1.msra.mxu0 0.0
    %147 = vmatprep.subr.mxu0 0.0
    %148 = vmatpush1.msra.mxu0 0.0
    %149 = vmatprep.subr.mxu0 0.0
    %150 = vmatpush1.msra.mxu0 0.0
    %151 = vmatprep.subr.mxu0 0.0
    %152 = vmatpush1.msra.mxu0 0.0
    %153 = vmatprep.subr.mxu0 0.0
    %154 = vmatpush1.msra.mxu0 0.0
    %155 = vmatprep.subr.mxu0 0.0
    %156 = vmatpush1.msra.mxu0 0.0
    %157 = vmatprep.subr.mxu0 0.0
    %158 = vmatpush1.msra.mxu0 0.0
    %159 = vmatprep.subr.mxu0 0.0
    %160 = vmatpush1.msra.mxu0 0.0
    %161 = vmatprep.subr.mxu0 0.0
    %162 = vmatpush1.msra.mxu0 0.0
    %163 = vmatprep.subr.mxu0 0.0
    %164 = vmatpush1.msra.mxu0 0.0
    %165 = vmatprep.subr.mxu0 0.0
    %166 = vmatpush1.msra.mxu0 0.0
    %167 = vmatprep.subr.mxu0 0.0
    %168 = vmatpush1.msra.mxu0 0.0
    %169 = vmatprep.subr.mxu0 0.0
    %170 = vmatpush1.msra.mxu0 0.0
    %171 = vmatprep.subr.mxu0 0.0
    %172 = vmatpush1.msra.mxu0 0.0
    %173 = vmatprep.subr.mxu0 0.0
    %174 = vmatpush1.msra.mxu0 0.0
    %175 = vmatprep.subr.mxu0 0.0
    %176 = vmatpush1.msra.mxu0 0.0
    %177 = vmatprep.subr.mxu0 0.0
    %178 = vmatpush1.msra.mxu0 0.0
    %179 = vmatprep.subr.mxu0 0.0
    %180 = vmatpush1.msra.mxu0 0.0
    %181 = vmatprep.subr.mxu0 0.0
    %182 = vmatpush1.msra.mxu0 0.0
    %183 = vmatprep.subr.mxu0 0.0
    %184 = vmatpush1.msra.mxu0 0.0
    %185 = vmatprep.subr.mxu0 0.0
    %186 = vmatpush1.msra.mxu0 0.0
    %187 = vmatprep.subr.mxu0 0.0
    %188 = vmatpush1.msra.mxu0 0.0
    %189 = vmatprep.subr.mxu0 0.0
    %190 = vmatpush1.msra.mxu0 0.0
    %191 = vmatprep.subr.mxu0 0.0
    %192 = vmatpush1.msra.mxu0 0.0
    %193 = vmatprep.mubr.f32.mxu0 0.0
    %v194 = vand.u32 %v102, 4294901760
    %v195 = vsub.f32 %v102, %v194
    %v196 = vand.u32 %v195, 4294901760
    %v197 = vsub.f32 %v195, %v196
    %v198 = vand.u32 %v197, 4294901760
    %199 = vmatmul.mubr.f32.gmra.mrb[0].mxu0 %v198
    %v200 = vpop.f32.mrb[0].mxu0
    %v201 = vadd.f32 %v98, %v200
    %v202 = vpop.f32.mrb[0].mxu0
    %203 = vmatprep.mubr.f32.mxu0 0.0
    %v204 = vand.u32 %v105, 4294901760
    %v205 = vsub.f32 %v105, %v204
    %v206 = vand.u32 %v205, 4294901760
    %v207 = vsub.f32 %v205, %v206
    %v208 = vand.u32 %v207, 4294901760
    %209 = vmatmul.mubr.f32.gmra.mrb[0].mxu0 %v208
    %v210 = vpop.f32.mrb[0].mxu0
    %v211 = vadd.f32 %v98, %v210
    %v212 = vpop.f32.mrb[0].mxu0
    %213 = vmatprep.mubr.f32.mxu0 0.0
    %v214 = vand.u32 %v108, 4294901760
    %v215 = vsub.f32 %v108, %v214
    %v216 = vand.u32 %v215, 4294901760
    %v217 = vsub.f32 %v215, %v216
    %v218 = vand.u32 %v217, 4294901760
    %219 = vmatmul.mubr.f32.gmra.mrb[0].mxu0 %v218
    %v220 = vpop.f32.mrb[0].mxu0
    %v221 = vadd.f32 %v98, %v220
    %v222 = vpop.f32.mrb[0].mxu0
    %223 = vmatprep.mubr.f32.mxu0 0.0
    %v224 = vand.u32 %v111, 4294901760
    %v225 = vsub.f32 %v111, %v224
    %v226 = vand.u32 %v225, 4294901760
    %v227 = vsub.f32 %v225, %v226
    %v228 = vand.u32 %v227, 4294901760
    %229 = vmatmul.mubr.f32.gmra.mrb[0].mxu0 %v228
    %v230 = vpop.f32.mrb[0].mxu0
    %v231 = vadd.f32 %v98, %v230
    %v232 = vpop.f32.mrb[0].mxu0
    %233 = vmatprep.mubr.f32.mxu0 0.0
    %v234 = vand.u32 %v114, 4294901760
    %v235 = vsub.f32 %v114, %v234
    %v236 = vand.u32 %v235, 4294901760
    %v237 = vsub.f32 %v235, %v236
    %v238 = vand.u32 %v237, 4294901760
    %239 = vmatmul.mubr.f32.gmra.mrb[0].mxu0 %v238
    %v240 = vpop.f32.mrb[0].mxu0
    %v241 = vadd.f32 %v98, %v240
    %v242 = vpop.f32.mrb[0].mxu0
    %243 = vmatprep.mubr.f32.mxu0 0.0
    %v244 = vand.u32 %v117, 4294901760
    %v245 = vsub.f32 %v117, %v244
    %v246 = vand.u32 %v245, 4294901760
    %v247 = vsub.f32 %v245, %v246
    %v248 = vand.u32 %v247, 4294901760
    %249 = vmatmul.mubr.f32.gmra.mrb[0].mxu0 %v248
    %v250 = vpop.f32.mrb[0].mxu0
    %v251 = vadd.f32 %v98, %v250
    %v252 = vpop.f32.mrb[0].mxu0
    %253 = vmatprep.mubr.f32.mxu0 0.0
    %v254 = vand.u32 %v120, 4294901760
    %v255 = vsub.f32 %v120, %v254
    %v256 = vand.u32 %v255, 4294901760
    %v257 = vsub.f32 %v255, %v256
    %v258 = vand.u32 %v257, 4294901760
    %259 = vmatmul.mubr.f32.gmra.mrb[0].mxu0 %v258
    %v260 = vpop.f32.mrb[0].mxu0
    %v261 = vadd.f32 %v98, %v260
    %v262 = vpop.f32.mrb[0].mxu0
    %263 = vmatprep.mubr.f32.mxu0 0.0
    %v264 = vand.u32 %v123, 4294901760
    %v265 = vsub.f32 %v123, %v264
    %v266 = vand.u32 %v265, 4294901760
    %v267 = vsub.f32 %v265, %v266
    %v268 = vand.u32 %v267, 4294901760
    %269 = vmatmul.mubr.f32.gmra.mrb[0].mxu0 %v268
    %v270 = vpop.f32.mrb[0].mxu0
    %v271 = vadd.f32 %v98, %v270
    %v272 = vpop.f32.mrb[0].mxu0
    %273 = vdwg.mxu0
    %274 = vmatprep.subr.mxu0 0.0
    %v275 = vand.u32 %v65, 4294901760
    %v276 = vsub.f32 %v65, %v275
    %v277 = vand.u32 %v276, 4294901760
    %v278 = vsub.f32 %v276, %v277
    %v279 = vand.u32 %v278, 4294901760
    %280 = vmatpush1.msra.mxu0 %v279
    %281 = vmatprep.subr.mxu0 0.0
    %v282 = vand.u32 %v66, 4294901760
    %v283 = vsub.f32 %v66, %v282
    %v284 = vand.u32 %v283, 4294901760
    %v285 = vsub.f32 %v283, %v284
    %v286 = vand.u32 %v285, 4294901760
    %287 = vmatpush1.msra.mxu0 %v286
    %288 = vmatprep.subr.mxu0 0.0
    %v289 = vand.u32 %v67, 4294901760
    %v290 = vsub.f32 %v67, %v289
    %v291 = vand.u32 %v290, 4294901760
    %v292 = vsub.f32 %v290, %v291
    %v293 = vand.u32 %v292, 4294901760
    %294 = vmatpush1.msra.mxu0 %v293
    %295 = vmatprep.subr.mxu0 0.0
    %v296 = vand.u32 %v68, 4294901760
    %v297 = vsub.f32 %v68, %v296
    %v298 = vand.u32 %v297, 4294901760
    %v299 = vsub.f32 %v297, %v298
    %v300 = vand.u32 %v299, 4294901760
    %301 = vmatpush1.msra.mxu0 %v300
    %302 = vmatprep.subr.mxu0 0.0
    %303 = vmatpush1.msra.mxu0 0.0
    %304 = vmatprep.subr.mxu0 0.0
    %305 = vmatpush1.msra.mxu0 0.0
    %306 = vmatprep.subr.mxu0 0.0
    %307 = vmatpush1.msra.mxu0 0.0
    %308 = vmatprep.subr.mxu0 0.0
    %309 = vmatpush1.msra.mxu0 0.0
    %310 = vmatprep.subr.mxu0 0.0
    %311 = vmatpush1.msra.mxu0 0.0
    %312 = vmatprep.subr.mxu0 0.0
    %313 = vmatpush1.msra.mxu0 0.0
    %314 = vmatprep.subr.mxu0 0.0
    %315 = vmatpush1.msra.mxu0 0.0
    %316 = vmatprep.subr.mxu0 0.0
    %317 = vmatpush1.msra.mxu0 0.0
    %318 = vmatprep.subr.mxu0 0.0
    %319 = vmatpush1.msra.mxu0 0.0
    %320 = vmatprep.subr.mxu0 0.0
    %321 = vmatpush1.msra.mxu0 0.0
    %322 = vmatprep.subr.mxu0 0.0
    %323 = vmatpush1.msra.mxu0 0.0
    %324 = vmatprep.subr.mxu0 0.0
    %325 = vmatpush1.msra.mxu0 0.0
    %326 = vmatprep.subr.mxu0 0.0
    %327 = vmatpush1.msra.mxu0 0.0
    %328 = vmatprep.subr.mxu0 0.0
    %329 = vmatpush1.msra.mxu0 0.0
    %330 = vmatprep.subr.mxu0 0.0
    %331 = vmatpush1.msra.mxu0 0.0
    %332 = vmatprep.subr.mxu0 0.0
    %333 = vmatpush1.msra.mxu0 0.0
    %334 = vmatprep.subr.mxu0 0.0
    %335 = vmatpush1.msra.mxu0 0.0
    %336 = vmatprep.subr.mxu0 0.0
    %337 = vmatpush1.msra.mxu0 0.0
    %338 = vmatprep.subr.mxu0 0.0
    %339 = vmatpush1.msra.mxu0 0.0
    %340 = vmatprep.subr.mxu0 0.0
    %341 = vmatpush1.msra.mxu0 0.0
    %342 = vmatprep.subr.mxu0 0.0
    %343 = vmatpush1.msra.mxu0 0.0
    %344 = vmatprep.subr.mxu0 0.0
    %345 = vmatpush1.msra.mxu0 0.0
    %346 = vmatprep.subr.mxu0 0.0
    %347 = vmatpush1.msra.mxu0 0.0
    %348 = vmatprep.subr.mxu0 0.0
    %349 = vmatpush1.msra.mxu0 0.0
    %350 = vmatprep.subr.mxu0 0.0
    %351 = vmatpush1.msra.mxu0 0.0
    %352 = vmatprep.subr.mxu0 0.0
    %353 = vmatpush1.msra.mxu0 0.0
    %354 = vmatprep.subr.mxu0 0.0
    %355 = vmatpush1.msra.mxu0 0.0
    %356 = vmatprep.subr.mxu0 0.0
    %357 = vmatpush1.msra.mxu0 0.0
    %358 = vmatprep.mubr.f32.mxu0 0.0
    %v359 = vand.u32 %v102, 4294901760
    %360 = vmatmul.mubr.f32.gmra.mrb[0].mxu0 %v359
    %v361 = vpop.f32.mrb[0].mxu0
    %v362 = vadd.f32 %v201, %v361
    %v363 = vpop.f32.mrb[0].mxu0
    %364 = vmatprep.mubr.f32.mxu0 0.0
    %v365 = vand.u32 %v105, 4294901760
    %366 = vmatmul.mubr.f32.gmra.mrb[0].mxu0 %v365
    %v367 = vpop.f32.mrb[0].mxu0
    %v368 = vadd.f32 %v211, %v367
    %v369 = vpop.f32.mrb[0].mxu0
    %370 = vmatprep.mubr.f32.mxu0 0.0
    %v371 = vand.u32 %v108, 4294901760
    %372 = vmatmul.mubr.f32.gmra.mrb[0].mxu0 %v371
    %v373 = vpop.f32.mrb[0].mxu0
    %v374 = vadd.f32 %v221, %v373
    %v375 = vpop.f32.mrb[0].mxu0
    %376 = vmatprep.mubr.f32.mxu0 0.0
    %v377 = vand.u32 %v111, 4294901760
    %378 = vmatmul.mubr.f32.gmra.mrb[0].mxu0 %v377
    %v379 = vpop.f32.mrb[0].mxu0
    %v380 = vadd.f32 %v231, %v379
    %v381 = vpop.f32.mrb[0].mxu0
    %382 = vmatprep.mubr.f32.mxu0 0.0
    %v383 = vand.u32 %v114, 4294901760
    %384 = vmatmul.mubr.f32.gmra.mrb[0].mxu0 %v383
    %v385 = vpop.f32.mrb[0].mxu0
    %v386 = vadd.f32 %v241, %v385
    %v387 = vpop.f32.mrb[0].mxu0
    %388 = vmatprep.mubr.f32.mxu0 0.0
    %v389 = vand.u32 %v117, 4294901760
    %390 = vmatmul.mubr.f32.gmra.mrb[0].mxu0 %v389
    %v391 = vpop.f32.mrb[0].mxu0
    %v392 = vadd.f32 %v251, %v391
    %v393 = vpop.f32.mrb[0].mxu0
    %394 = vmatprep.mubr.f32.mxu0 0.0
    %v395 = vand.u32 %v120, 4294901760
    %396 = vmatmul.mubr.f32.gmra.mrb[0].mxu0 %v395
    %v397 = vpop.f32.mrb[0].mxu0
    %v398 = vadd.f32 %v261, %v397
    %v399 = vpop.f32.mrb[0].mxu0
    %400 = vmatprep.mubr.f32.mxu0 0.0
    %v401 = vand.u32 %v123, 4294901760
    %402 = vmatmul.mubr.f32.gmra.mrb[0].mxu0 %v401
    %v403 = vpop.f32.mrb[0].mxu0
    %v404 = vadd.f32 %v271, %v403
    %v405 = vpop.f32.mrb[0].mxu0
    %406 = vdwg.mxu0
    %407 = vmatprep.subr.mxu0 0.0
    %v408 = vand.u32 %v65, 4294901760
    %v409 = vsub.f32 %v65, %v408
    %410 = vmatpush1.msra.mxu0 %v409
    %411 = vmatprep.subr.mxu0 0.0
    %v412 = vand.u32 %v66, 4294901760
    %v413 = vsub.f32 %v66, %v412
    %414 = vmatpush1.msra.mxu0 %v413
    %415 = vmatprep.subr.mxu0 0.0
    %v416 = vand.u32 %v67, 4294901760
    %v417 = vsub.f32 %v67, %v416
    %418 = vmatpush1.msra.mxu0 %v417
    %419 = vmatprep.subr.mxu0 0.0
    %v420 = vand.u32 %v68, 4294901760
    %v421 = vsub.f32 %v68, %v420
    %422 = vmatpush1.msra.mxu0 %v421
    %423 = vmatprep.subr.mxu0 0.0
    %424 = vmatpush1.msra.mxu0 0.0
    %425 = vmatprep.subr.mxu0 0.0
    %426 = vmatpush1.msra.mxu0 0.0
    %427 = vmatprep.subr.mxu0 0.0
    %428 = vmatpush1.msra.mxu0 0.0
    %429 = vmatprep.subr.mxu0 0.0
    %430 = vmatpush1.msra.mxu0 0.0
    %431 = vmatprep.subr.mxu0 0.0
    %432 = vmatpush1.msra.mxu0 0.0
    %433 = vmatprep.subr.mxu0 0.0
    %434 = vmatpush1.msra.mxu0 0.0
    %435 = vmatprep.subr.mxu0 0.0
    %436 = vmatpush1.msra.mxu0 0.0
    %437 = vmatprep.subr.mxu0 0.0
    %438 = vmatpush1.msra.mxu0 0.0
    %439 = vmatprep.subr.mxu0 0.0
    %440 = vmatpush1.msra.mxu0 0.0
    %441 = vmatprep.subr.mxu0 0.0
    %442 = vmatpush1.msra.mxu0 0.0
    %443 = vmatprep.subr.mxu0 0.0
    %444 = vmatpush1.msra.mxu0 0.0
    %445 = vmatprep.subr.mxu0 0.0
    %446 = vmatpush1.msra.mxu0 0.0
    %447 = vmatprep.subr.mxu0 0.0
    %448 = vmatpush1.msra.mxu0 0.0
    %449 = vmatprep.subr.mxu0 0.0
    %450 = vmatpush1.msra.mxu0 0.0
    %451 = vmatprep.subr.mxu0 0.0
    %452 = vmatpush1.msra.mxu0 0.0
    %453 = vmatprep.subr.mxu0 0.0
    %454 = vmatpush1.msra.mxu0 0.0
    %455 = vmatprep.subr.mxu0 0.0
    %456 = vmatpush1.msra.mxu0 0.0
    %457 = vmatprep.subr.mxu0 0.0
    %458 = vmatpush1.msra.mxu0 0.0
    %459 = vmatprep.subr.mxu0 0.0
    %460 = vmatpush1.msra.mxu0 0.0
    %461 = vmatprep.subr.mxu0 0.0
    %462 = vmatpush1.msra.mxu0 0.0
    %463 = vmatprep.subr.mxu0 0.0
    %464 = vmatpush1.msra.mxu0 0.0
    %465 = vmatprep.subr.mxu0 0.0
    %466 = vmatpush1.msra.mxu0 0.0
    %467 = vmatprep.subr.mxu0 0.0
    %468 = vmatpush1.msra.mxu0 0.0
    %469 = vmatprep.subr.mxu0 0.0
    %470 = vmatpush1.msra.mxu0 0.0
    %471 = vmatprep.subr.mxu0 0.0
    %472 = vmatpush1.msra.mxu0 0.0
    %473 = vmatprep.subr.mxu0 0.0
    %474 = vmatpush1.msra.mxu0 0.0
    %475 = vmatprep.subr.mxu0 0.0
    %476 = vmatpush1.msra.mxu0 0.0
    %477 = vmatprep.subr.mxu0 0.0
    %478 = vmatpush1.msra.mxu0 0.0
    %479 = vmatprep.mubr.f32.mxu0 0.0
    %v480 = vand.u32 %v102, 4294901760
    %v481 = vsub.f32 %v102, %v480
    %482 = vmatmul.mubr.f32.gmra.mrb[0].mxu0 %v481
    %v483 = vpop.f32.mrb[0].mxu0
    %v484 = vadd.f32 %v362, %v483
    %v485 = vpop.f32.mrb[0].mxu0
    %486 = vmatprep.mubr.f32.mxu0 0.0
    %v487 = vand.u32 %v105, 4294901760
    %v488 = vsub.f32 %v105, %v487
    %489 = vmatmul.mubr.f32.gmra.mrb[0].mxu0 %v488
    %v490 = vpop.f32.mrb[0].mxu0
    %v491 = vadd.f32 %v368, %v490
    %v492 = vpop.f32.mrb[0].mxu0
    %493 = vmatprep.mubr.f32.mxu0 0.0
    %v494 = vand.u32 %v108, 4294901760
    %v495 = vsub.f32 %v108, %v494
    %496 = vmatmul.mubr.f32.gmra.mrb[0].mxu0 %v495
    %v497 = vpop.f32.mrb[0].mxu0
    %v498 = vadd.f32 %v374, %v497
    %v499 = vpop.f32.mrb[0].mxu0
    %500 = vmatprep.mubr.f32.mxu0 0.0
    %v501 = vand.u32 %v111, 4294901760
    %v502 = vsub.f32 %v111, %v501
    %503 = vmatmul.mubr.f32.gmra.mrb[0].mxu0 %v502
    %v504 = vpop.f32.mrb[0].mxu0
    %v505 = vadd.f32 %v380, %v504
    %v506 = vpop.f32.mrb[0].mxu0
    %507 = vmatprep.mubr.f32.mxu0 0.0
    %v508 = vand.u32 %v114, 4294901760
    %v509 = vsub.f32 %v114, %v508
    %510 = vmatmul.mubr.f32.gmra.mrb[0].mxu0 %v509
    %v511 = vpop.f32.mrb[0].mxu0
    %v512 = vadd.f32 %v386, %v511
    %v513 = vpop.f32.mrb[0].mxu0
    %514 = vmatprep.mubr.f32.mxu0 0.0
    %v515 = vand.u32 %v117, 4294901760
    %v516 = vsub.f32 %v117, %v515
    %517 = vmatmul.mubr.f32.gmra.mrb[0].mxu0 %v516
    %v518 = vpop.f32.mrb[0].mxu0
    %v519 = vadd.f32 %v392, %v518
    %v520 = vpop.f32.mrb[0].mxu0
    %521 = vmatprep.mubr.f32.mxu0 0.0
    %v522 = vand.u32 %v120, 4294901760
    %v523 = vsub.f32 %v120, %v522
    %524 = vmatmul.mubr.f32.gmra.mrb[0].mxu0 %v523
    %v525 = vpop.f32.mrb[0].mxu0
    %v526 = vadd.f32 %v398, %v525
    %v527 = vpop.f32.mrb[0].mxu0
    %528 = vmatprep.mubr.f32.mxu0 0.0
    %v529 = vand.u32 %v123, 4294901760
    %v530 = vsub.f32 %v123, %v529
    %531 = vmatmul.mubr.f32.gmra.mrb[0].mxu0 %v530
    %v532 = vpop.f32.mrb[0].mxu0
    %v533 = vadd.f32 %v404, %v532
    %v534 = vpop.f32.mrb[0].mxu0
    %535 = vdwg.mxu0
    %536 = vmatprep.subr.mxu0 0.0
    %v537 = vand.u32 %v65, 4294901760
    %538 = vmatpush1.msra.mxu0 %v537
    %539 = vmatprep.subr.mxu0 0.0
    %v540 = vand.u32 %v66, 4294901760
    %541 = vmatpush1.msra.mxu0 %v540
    %542 = vmatprep.subr.mxu0 0.0
    %v543 = vand.u32 %v67, 4294901760
    %544 = vmatpush1.msra.mxu0 %v543
    %545 = vmatprep.subr.mxu0 0.0
    %v546 = vand.u32 %v68, 4294901760
    %547 = vmatpush1.msra.mxu0 %v546
    %548 = vmatprep.subr.mxu0 0.0
    %549 = vmatpush1.msra.mxu0 0.0
    %550 = vmatprep.subr.mxu0 0.0
    %551 = vmatpush1.msra.mxu0 0.0
    %552 = vmatprep.subr.mxu0 0.0
    %553 = vmatpush1.msra.mxu0 0.0
    %554 = vmatprep.subr.mxu0 0.0
    %555 = vmatpush1.msra.mxu0 0.0
    %556 = vmatprep.subr.mxu0 0.0
    %557 = vmatpush1.msra.mxu0 0.0
    %558 = vmatprep.subr.mxu0 0.0
    %559 = vmatpush1.msra.mxu0 0.0
    %560 = vmatprep.subr.mxu0 0.0
    %561 = vmatpush1.msra.mxu0 0.0
    %562 = vmatprep.subr.mxu0 0.0
    %563 = vmatpush1.msra.mxu0 0.0
    %564 = vmatprep.subr.mxu0 0.0
    %565 = vmatpush1.msra.mxu0 0.0
    %566 = vmatprep.subr.mxu0 0.0
    %567 = vmatpush1.msra.mxu0 0.0
    %568 = vmatprep.subr.mxu0 0.0
    %569 = vmatpush1.msra.mxu0 0.0
    %570 = vmatprep.subr.mxu0 0.0
    %571 = vmatpush1.msra.mxu0 0.0
    %572 = vmatprep.subr.mxu0 0.0
    %573 = vmatpush1.msra.mxu0 0.0
    %574 = vmatprep.subr.mxu0 0.0
    %575 = vmatpush1.msra.mxu0 0.0
    %576 = vmatprep.subr.mxu0 0.0
    %577 = vmatpush1.msra.mxu0 0.0
    %578 = vmatprep.subr.mxu0 0.0
    %579 = vmatpush1.msra.mxu0 0.0
    %580 = vmatprep.subr.mxu0 0.0
    %581 = vmatpush1.msra.mxu0 0.0
    %582 = vmatprep.subr.mxu0 0.0
    %583 = vmatpush1.msra.mxu0 0.0
    %584 = vmatprep.subr.mxu0 0.0
    %585 = vmatpush1.msra.mxu0 0.0
    %586 = vmatprep.subr.mxu0 0.0
    %587 = vmatpush1.msra.mxu0 0.0
    %588 = vmatprep.subr.mxu0 0.0
    %589 = vmatpush1.msra.mxu0 0.0
    %590 = vmatprep.subr.mxu0 0.0
    %591 = vmatpush1.msra.mxu0 0.0
    %592 = vmatprep.subr.mxu0 0.0
    %593 = vmatpush1.msra.mxu0 0.0
    %594 = vmatprep.subr.mxu0 0.0
    %595 = vmatpush1.msra.mxu0 0.0
    %596 = vmatprep.subr.mxu0 0.0
    %597 = vmatpush1.msra.mxu0 0.0
    %598 = vmatprep.subr.mxu0 0.0
    %599 = vmatpush1.msra.mxu0 0.0
    %600 = vmatprep.subr.mxu0 0.0
    %601 = vmatpush1.msra.mxu0 0.0
    %602 = vmatprep.subr.mxu0 0.0
    %603 = vmatpush1.msra.mxu0 0.0
    %604 = vmatprep.mubr.f32.mxu0 0.0
    %v605 = vand.u32 %v102, 4294901760
    %v606 = vsub.f32 %v102, %v605
    %v607 = vand.u32 %v606, 4294901760
    %608 = vmatmul.mubr.f32.gmra.mrb[0].mxu0 %v607
    %v609 = vpop.f32.mrb[0].mxu0
    %v610 = vadd.f32 %v484, %v609
    %v611 = vpop.f32.mrb[0].mxu0
    %612 = vmatprep.mubr.f32.mxu0 0.0
    %v613 = vand.u32 %v105, 4294901760
    %v614 = vsub.f32 %v105, %v613
    %v615 = vand.u32 %v614, 4294901760
    %616 = vmatmul.mubr.f32.gmra.mrb[0].mxu0 %v615
    %v617 = vpop.f32.mrb[0].mxu0
    %v618 = vadd.f32 %v491, %v617
    %v619 = vpop.f32.mrb[0].mxu0
    %620 = vmatprep.mubr.f32.mxu0 0.0
    %v621 = vand.u32 %v108, 4294901760
    %v622 = vsub.f32 %v108, %v621
    %v623 = vand.u32 %v622, 4294901760
    %624 = vmatmul.mubr.f32.gmra.mrb[0].mxu0 %v623
    %v625 = vpop.f32.mrb[0].mxu0
    %v626 = vadd.f32 %v498, %v625
    %v627 = vpop.f32.mrb[0].mxu0
    %628 = vmatprep.mubr.f32.mxu0 0.0
    %v629 = vand.u32 %v111, 4294901760
    %v630 = vsub.f32 %v111, %v629
    %v631 = vand.u32 %v630, 4294901760
    %632 = vmatmul.mubr.f32.gmra.mrb[0].mxu0 %v631
    %v633 = vpop.f32.mrb[0].mxu0
    %v634 = vadd.f32 %v505, %v633
    %v635 = vpop.f32.mrb[0].mxu0
    %636 = vmatprep.mubr.f32.mxu0 0.0
    %v637 = vand.u32 %v114, 4294901760
    %v638 = vsub.f32 %v114, %v637
    %v639 = vand.u32 %v638, 4294901760
    %640 = vmatmul.mubr.f32.gmra.mrb[0].mxu0 %v639
    %v641 = vpop.f32.mrb[0].mxu0
    %v642 = vadd.f32 %v512, %v641
    %v643 = vpop.f32.mrb[0].mxu0
    %644 = vmatprep.mubr.f32.mxu0 0.0
    %v645 = vand.u32 %v117, 4294901760
    %v646 = vsub.f32 %v117, %v645
    %v647 = vand.u32 %v646, 4294901760
    %648 = vmatmul.mubr.f32.gmra.mrb[0].mxu0 %v647
    %v649 = vpop.f32.mrb[0].mxu0
    %v650 = vadd.f32 %v519, %v649
    %v651 = vpop.f32.mrb[0].mxu0
    %652 = vmatprep.mubr.f32.mxu0 0.0
    %v653 = vand.u32 %v120, 4294901760
    %v654 = vsub.f32 %v120, %v653
    %v655 = vand.u32 %v654, 4294901760
    %656 = vmatmul.mubr.f32.gmra.mrb[0].mxu0 %v655
    %v657 = vpop.f32.mrb[0].mxu0
    %v658 = vadd.f32 %v526, %v657
    %v659 = vpop.f32.mrb[0].mxu0
    %660 = vmatprep.mubr.f32.mxu0 0.0
    %v661 = vand.u32 %v123, 4294901760
    %v662 = vsub.f32 %v123, %v661
    %v663 = vand.u32 %v662, 4294901760
    %664 = vmatmul.mubr.f32.gmra.mrb[0].mxu0 %v663
    %v665 = vpop.f32.mrb[0].mxu0
    %v666 = vadd.f32 %v533, %v665
    %v667 = vpop.f32.mrb[0].mxu0
    %668 = vdwg.mxu0
    %669 = vmatprep.subr.mxu0 0.0
    %v670 = vand.u32 %v65, 4294901760
    %v671 = vsub.f32 %v65, %v670
    %v672 = vand.u32 %v671, 4294901760
    %673 = vmatpush1.msra.mxu0 %v672
    %674 = vmatprep.subr.mxu0 0.0
    %v675 = vand.u32 %v66, 4294901760
    %v676 = vsub.f32 %v66, %v675
    %v677 = vand.u32 %v676, 4294901760
    %678 = vmatpush1.msra.mxu0 %v677
    %679 = vmatprep.subr.mxu0 0.0
    %v680 = vand.u32 %v67, 4294901760
    %v681 = vsub.f32 %v67, %v680
    %v682 = vand.u32 %v681, 4294901760
    %683 = vmatpush1.msra.mxu0 %v682
    %684 = vmatprep.subr.mxu0 0.0
    %v685 = vand.u32 %v68, 4294901760
    %v686 = vsub.f32 %v68, %v685
    %v687 = vand.u32 %v686, 4294901760
    %688 = vmatpush1.msra.mxu0 %v687
    %689 = vmatprep.subr.mxu0 0.0
    %690 = vmatpush1.msra.mxu0 0.0
    %691 = vmatprep.subr.mxu0 0.0
    %692 = vmatpush1.msra.mxu0 0.0
    %693 = vmatprep.subr.mxu0 0.0
    %694 = vmatpush1.msra.mxu0 0.0
    %695 = vmatprep.subr.mxu0 0.0
    %696 = vmatpush1.msra.mxu0 0.0
    %697 = vmatprep.subr.mxu0 0.0
    %698 = vmatpush1.msra.mxu0 0.0
    %699 = vmatprep.subr.mxu0 0.0
    %700 = vmatpush1.msra.mxu0 0.0
    %701 = vmatprep.subr.mxu0 0.0
    %702 = vmatpush1.msra.mxu0 0.0
    %703 = vmatprep.subr.mxu0 0.0
    %704 = vmatpush1.msra.mxu0 0.0
    %705 = vmatprep.subr.mxu0 0.0
    %706 = vmatpush1.msra.mxu0 0.0
    %707 = vmatprep.subr.mxu0 0.0
    %708 = vmatpush1.msra.mxu0 0.0
    %709 = vmatprep.subr.mxu0 0.0
    %710 = vmatpush1.msra.mxu0 0.0
    %711 = vmatprep.subr.mxu0 0.0
    %712 = vmatpush1.msra.mxu0 0.0
    %713 = vmatprep.subr.mxu0 0.0
    %714 = vmatpush1.msra.mxu0 0.0
    %715 = vmatprep.subr.mxu0 0.0
    %716 = vmatpush1.msra.mxu0 0.0
    %717 = vmatprep.subr.mxu0 0.0
    %718 = vmatpush1.msra.mxu0 0.0
    %719 = vmatprep.subr.mxu0 0.0
    %720 = vmatpush1.msra.mxu0 0.0
    %721 = vmatprep.subr.mxu0 0.0
    %722 = vmatpush1.msra.mxu0 0.0
    %723 = vmatprep.subr.mxu0 0.0
    %724 = vmatpush1.msra.mxu0 0.0
    %725 = vmatprep.subr.mxu0 0.0
    %726 = vmatpush1.msra.mxu0 0.0
    %727 = vmatprep.subr.mxu0 0.0
    %728 = vmatpush1.msra.mxu0 0.0
    %729 = vmatprep.subr.mxu0 0.0
    %730 = vmatpush1.msra.mxu0 0.0
    %731 = vmatprep.subr.mxu0 0.0
    %732 = vmatpush1.msra.mxu0 0.0
    %733 = vmatprep.subr.mxu0 0.0
    %734 = vmatpush1.msra.mxu0 0.0
    %735 = vmatprep.subr.mxu0 0.0
    %736 = vmatpush1.msra.mxu0 0.0
    %737 = vmatprep.subr.mxu0 0.0
    %738 = vmatpush1.msra.mxu0 0.0
    %739 = vmatprep.subr.mxu0 0.0
    %740 = vmatpush1.msra.mxu0 0.0
    %741 = vmatprep.subr.mxu0 0.0
    %742 = vmatpush1.msra.mxu0 0.0
    %743 = vmatprep.subr.mxu0 0.0
    %744 = vmatpush1.msra.mxu0 0.0
    %745 = vmatprep.mubr.f32.mxu0 0.0
    %v746 = vand.u32 %v102, 4294901760
    %747 = vmatmul.mubr.f32.gmra.mrb[0].mxu0 %v746
    %v748 = vpop.f32.mrb[0].mxu0
    %v749 = vadd.f32 %v610, %v748
    %v750 = vpop.f32.mrb[0].mxu0
    %751 = vmatprep.mubr.f32.mxu0 0.0
    %v752 = vand.u32 %v105, 4294901760
    %753 = vmatmul.mubr.f32.gmra.mrb[0].mxu0 %v752
    %v754 = vpop.f32.mrb[0].mxu0
    %v755 = vadd.f32 %v618, %v754
    %v756 = vpop.f32.mrb[0].mxu0
    %757 = vmatprep.mubr.f32.mxu0 0.0
    %v758 = vand.u32 %v108, 4294901760
    %759 = vmatmul.mubr.f32.gmra.mrb[0].mxu0 %v758
    %v760 = vpop.f32.mrb[0].mxu0
    %v761 = vadd.f32 %v626, %v760
    %v762 = vpop.f32.mrb[0].mxu0
    %763 = vmatprep.mubr.f32.mxu0 0.0
    %v764 = vand.u32 %v111, 4294901760
    %765 = vmatmul.mubr.f32.gmra.mrb[0].mxu0 %v764
    %v766 = vpop.f32.mrb[0].mxu0
    %v767 = vadd.f32 %v634, %v766
    %v768 = vpop.f32.mrb[0].mxu0
    %769 = vmatprep.mubr.f32.mxu0 0.0
    %v770 = vand.u32 %v114, 4294901760
    %771 = vmatmul.mubr.f32.gmra.mrb[0].mxu0 %v770
    %v772 = vpop.f32.mrb[0].mxu0
    %v773 = vadd.f32 %v642, %v772
    %v774 = vpop.f32.mrb[0].mxu0
    %775 = vmatprep.mubr.f32.mxu0 0.0
    %v776 = vand.u32 %v117, 4294901760
    %777 = vmatmul.mubr.f32.gmra.mrb[0].mxu0 %v776
    %v778 = vpop.f32.mrb[0].mxu0
    %v779 = vadd.f32 %v650, %v778
    %v780 = vpop.f32.mrb[0].mxu0
    %781 = vmatprep.mubr.f32.mxu0 0.0
    %v782 = vand.u32 %v120, 4294901760
    %783 = vmatmul.mubr.f32.gmra.mrb[0].mxu0 %v782
    %v784 = vpop.f32.mrb[0].mxu0
    %v785 = vadd.f32 %v658, %v784
    %v786 = vpop.f32.mrb[0].mxu0
    %787 = vmatprep.mubr.f32.mxu0 0.0
    %v788 = vand.u32 %v123, 4294901760
    %789 = vmatmul.mubr.f32.gmra.mrb[0].mxu0 %v788
    %v790 = vpop.f32.mrb[0].mxu0
    %v791 = vadd.f32 %v666, %v790
    %v792 = vpop.f32.mrb[0].mxu0
    %793 = vdwg.mxu0
    %794 = vmatprep.subr.mxu0 0.0
    %v795 = vand.u32 %v65, 4294901760
    %796 = vmatpush1.msra.mxu0 %v795
    %797 = vmatprep.subr.mxu0 0.0
    %v798 = vand.u32 %v66, 4294901760
    %799 = vmatpush1.msra.mxu0 %v798
    %800 = vmatprep.subr.mxu0 0.0
    %v801 = vand.u32 %v67, 4294901760
    %802 = vmatpush1.msra.mxu0 %v801
    %803 = vmatprep.subr.mxu0 0.0
    %v804 = vand.u32 %v68, 4294901760
    %805 = vmatpush1.msra.mxu0 %v804
    %806 = vmatprep.subr.mxu0 0.0
    %807 = vmatpush1.msra.mxu0 0.0
    %808 = vmatprep.subr.mxu0 0.0
    %809 = vmatpush1.msra.mxu0 0.0
    %810 = vmatprep.subr.mxu0 0.0
    %811 = vmatpush1.msra.mxu0 0.0
    %812 = vmatprep.subr.mxu0 0.0
    %813 = vmatpush1.msra.mxu0 0.0
    %814 = vmatprep.subr.mxu0 0.0
    %815 = vmatpush1.msra.mxu0 0.0
    %816 = vmatprep.subr.mxu0 0.0
    %817 = vmatpush1.msra.mxu0 0.0
    %818 = vmatprep.subr.mxu0 0.0
    %819 = vmatpush1.msra.mxu0 0.0
    %820 = vmatprep.subr.mxu0 0.0
    %821 = vmatpush1.msra.mxu0 0.0
    %822 = vmatprep.subr.mxu0 0.0
    %823 = vmatpush1.msra.mxu0 0.0
    %824 = vmatprep.subr.mxu0 0.0
    %825 = vmatpush1.msra.mxu0 0.0
    %826 = vmatprep.subr.mxu0 0.0
    %827 = vmatpush1.msra.mxu0 0.0
    %828 = vmatprep.subr.mxu0 0.0
    %829 = vmatpush1.msra.mxu0 0.0
    %830 = vmatprep.subr.mxu0 0.0
    %831 = vmatpush1.msra.mxu0 0.0
    %832 = vmatprep.subr.mxu0 0.0
    %833 = vmatpush1.msra.mxu0 0.0
    %834 = vmatprep.subr.mxu0 0.0
    %835 = vmatpush1.msra.mxu0 0.0
    %836 = vmatprep.subr.mxu0 0.0
    %837 = vmatpush1.msra.mxu0 0.0
    %838 = vmatprep.subr.mxu0 0.0
    %839 = vmatpush1.msra.mxu0 0.0
    %840 = vmatprep.subr.mxu0 0.0
    %841 = vmatpush1.msra.mxu0 0.0
    %842 = vmatprep.subr.mxu0 0.0
    %843 = vmatpush1.msra.mxu0 0.0
    %844 = vmatprep.subr.mxu0 0.0
    %845 = vmatpush1.msra.mxu0 0.0
    %846 = vmatprep.subr.mxu0 0.0
    %847 = vmatpush1.msra.mxu0 0.0
    %848 = vmatprep.subr.mxu0 0.0
    %849 = vmatpush1.msra.mxu0 0.0
    %850 = vmatprep.subr.mxu0 0.0
    %851 = vmatpush1.msra.mxu0 0.0
    %852 = vmatprep.subr.mxu0 0.0
    %853 = vmatpush1.msra.mxu0 0.0
    %854 = vmatprep.subr.mxu0 0.0
    %855 = vmatpush1.msra.mxu0 0.0
    %856 = vmatprep.subr.mxu0 0.0
    %857 = vmatpush1.msra.mxu0 0.0
    %858 = vmatprep.subr.mxu0 0.0
    %859 = vmatpush1.msra.mxu0 0.0
    %860 = vmatprep.subr.mxu0 0.0
    %861 = vmatpush1.msra.mxu0 0.0
    %862 = vmatprep.mubr.f32.mxu0 0.0
    %v863 = vand.u32 %v102, 4294901760
    %864 = vmatmul.mubr.f32.gmra.mrb[0].mxu0 %v863
    %v865 = vpop.f32.mrb[0].mxu0
    %v866 = vadd.f32 %v749, %v865
    %v867 = vpop.f32.mrb[0].mxu0
    %868 = vmatprep.mubr.f32.mxu0 0.0
    %v869 = vand.u32 %v105, 4294901760
    %870 = vmatmul.mubr.f32.gmra.mrb[0].mxu0 %v869
    %v871 = vpop.f32.mrb[0].mxu0
    %v872 = vadd.f32 %v755, %v871
    %v873 = vpop.f32.mrb[0].mxu0
    %874 = vmatprep.mubr.f32.mxu0 0.0
    %v875 = vand.u32 %v108, 4294901760
    %876 = vmatmul.mubr.f32.gmra.mrb[0].mxu0 %v875
    %v877 = vpop.f32.mrb[0].mxu0
    %v878 = vadd.f32 %v761, %v877
    %v879 = vpop.f32.mrb[0].mxu0
    %880 = vmatprep.mubr.f32.mxu0 0.0
    %v881 = vand.u32 %v111, 4294901760
    %882 = vmatmul.mubr.f32.gmra.mrb[0].mxu0 %v881
    %v883 = vpop.f32.mrb[0].mxu0
    %v884 = vadd.f32 %v767, %v883
    %v885 = vpop.f32.mrb[0].mxu0
    %886 = vmatprep.mubr.f32.mxu0 0.0
    %v887 = vand.u32 %v114, 4294901760
    %888 = vmatmul.mubr.f32.gmra.mrb[0].mxu0 %v887
    %v889 = vpop.f32.mrb[0].mxu0
    %v890 = vadd.f32 %v773, %v889
    %v891 = vpop.f32.mrb[0].mxu0
    %892 = vmatprep.mubr.f32.mxu0 0.0
    %v893 = vand.u32 %v117, 4294901760
    %894 = vmatmul.mubr.f32.gmra.mrb[0].mxu0 %v893
    %v895 = vpop.f32.mrb[0].mxu0
    %v896 = vadd.f32 %v779, %v895
    %v897 = vpop.f32.mrb[0].mxu0
    %898 = vmatprep.mubr.f32.mxu0 0.0
    %v899 = vand.u32 %v120, 4294901760
    %900 = vmatmul.mubr.f32.gmra.mrb[0].mxu0 %v899
    %v901 = vpop.f32.mrb[0].mxu0
    %v902 = vadd.f32 %v785, %v901
    %v903 = vpop.f32.mrb[0].mxu0
    %904 = vmatprep.mubr.f32.mxu0 0.0
    %v905 = vand.u32 %v123, 4294901760
    %906 = vmatmul.mubr.f32.gmra.mrb[0].mxu0 %v905
    %v907 = vpop.f32.mrb[0].mxu0
    %v908 = vadd.f32 %v791, %v907
    %v909 = vpop.f32.mrb[0].mxu0
    %910 = vdwg.mxu0
    %v911 = vld [vmem:[%s1] sm:$0xff]
    %912 = vmatprep.subr.mxu0 0.0
    %v913 = vand.u32 %v69, 4294901760
    %914 = vmatpush1.msra.mxu0 %v913
    %915 = vmatprep.subr.mxu0 0.0
    %v916 = vand.u32 %v70, 4294901760
    %917 = vmatpush1.msra.mxu0 %v916
    %918 = vmatprep.subr.mxu0 0.0
    %v919 = vand.u32 %v71, 4294901760
    %920 = vmatpush1.msra.mxu0 %v919
    %921 = vmatprep.subr.mxu0 0.0
    %v922 = vand.u32 %v72, 4294901760
    %923 = vmatpush1.msra.mxu0 %v922
    %924 = vmatprep.subr.mxu0 0.0
    %v925 = vand.u32 %v73, 4294901760
    %926 = vmatpush1.msra.mxu0 %v925
    %927 = vmatprep.subr.mxu0 0.0
    %v928 = vand.u32 %v74, 4294901760
    %929 = vmatpush1.msra.mxu0 %v928
    %930 = vmatprep.subr.mxu0 0.0
    %v931 = vand.u32 %v75, 4294901760
    %932 = vmatpush1.msra.mxu0 %v931
    %933 = vmatprep.subr.mxu0 0.0
    %v934 = vand.u32 %v76, 4294901760
    %935 = vmatpush1.msra.mxu0 %v934
    %936 = vmatprep.subr.mxu0 0.0
    %v937 = vand.u32 %v77, 4294901760
    %938 = vmatpush1.msra.mxu0 %v937
    %939 = vmatprep.subr.mxu0 0.0
    %v940 = vand.u32 %v78, 4294901760
    %941 = vmatpush1.msra.mxu0 %v940
    %942 = vmatprep.subr.mxu0 0.0
    %v943 = vand.u32 %v79, 4294901760
    %944 = vmatpush1.msra.mxu0 %v943
    %945 = vmatprep.subr.mxu0 0.0
    %v946 = vand.u32 %v80, 4294901760
    %947 = vmatpush1.msra.mxu0 %v946
    %948 = vmatprep.subr.mxu0 0.0
    %v949 = vand.u32 %v81, 4294901760
    %950 = vmatpush1.msra.mxu0 %v949
    %951 = vmatprep.subr.mxu0 0.0
    %v952 = vand.u32 %v82, 4294901760
    %953 = vmatpush1.msra.mxu0 %v952
    %954 = vmatprep.subr.mxu0 0.0
    %v955 = vand.u32 %v83, 4294901760
    %956 = vmatpush1.msra.mxu0 %v955
    %957 = vmatprep.subr.mxu0 0.0
    %v958 = vand.u32 %v84, 4294901760
    %959 = vmatpush1.msra.mxu0 %v958
    %960 = vmatprep.subr.mxu0 0.0
    %961 = vmatpush1.msra.mxu0 0.0
    %962 = vmatprep.subr.mxu0 0.0
    %963 = vmatpush1.msra.mxu0 0.0
    %964 = vmatprep.subr.mxu0 0.0
    %965 = vmatpush1.msra.mxu0 0.0
    %966 = vmatprep.subr.mxu0 0.0
    %967 = vmatpush1.msra.mxu0 0.0
    %968 = vmatprep.subr.mxu0 0.0
    %969 = vmatpush1.msra.mxu0 0.0
    %970 = vmatprep.subr.mxu0 0.0
    %971 = vmatpush1.msra.mxu0 0.0
    %972 = vmatprep.subr.mxu0 0.0
    %973 = vmatpush1.msra.mxu0 0.0
    %974 = vmatprep.subr.mxu0 0.0
    %975 = vmatpush1.msra.mxu0 0.0
    %976 = vmatprep.subr.mxu0 0.0
    %977 = vmatpush1.msra.mxu0 0.0
    %978 = vmatprep.subr.mxu0 0.0
    %979 = vmatpush1.msra.mxu0 0.0
    %980 = vmatprep.subr.mxu0 0.0
    %981 = vmatpush1.msra.mxu0 0.0
    %982 = vmatprep.subr.mxu0 0.0
    %983 = vmatpush1.msra.mxu0 0.0
    %984 = vmatprep.subr.mxu0 0.0
    %985 = vmatpush1.msra.mxu0 0.0
    %986 = vmatprep.subr.mxu0 0.0
    %987 = vmatpush1.msra.mxu0 0.0
    %988 = vmatprep.subr.mxu0 0.0
    %989 = vmatpush1.msra.mxu0 0.0
    %990 = vmatprep.subr.mxu0 0.0
    %991 = vmatpush1.msra.mxu0 0.0
    %992 = vmatprep.mubr.f32.mxu0 0.0
    %v993 = vand.u32 %v911, 4294901760
    %v994 = vsub.f32 %v911, %v993
    %v995 = vand.u32 %v994, 4294901760
    %v996 = vsub.f32 %v994, %v995
    %v997 = vand.u32 %v996, 4294901760
    %998 = vmatmul.mubr.f32.gmra.mrb[0].mxu0 %v997
    %v999 = vpop.f32.mrb[0].mxu0
    %v1000 = vadd.f32 0.0, %v999
    %v1001 = vpop.f32.mrb[0].mxu0
    %1002 = vdwg.mxu0
    %1003 = vmatprep.subr.mxu0 0.0
    %v1004 = vand.u32 %v69, 4294901760
    %v1005 = vsub.f32 %v69, %v1004
    %v1006 = vand.u32 %v1005, 4294901760
    %v1007 = vsub.f32 %v1005, %v1006
    %v1008 = vand.u32 %v1007, 4294901760
    %1009 = vmatpush1.msra.mxu0 %v1008
    %1010 = vmatprep.subr.mxu0 0.0
    %v1011 = vand.u32 %v70, 4294901760
    %v1012 = vsub.f32 %v70, %v1011
    %v1013 = vand.u32 %v1012, 4294901760
    %v1014 = vsub.f32 %v1012, %v1013
    %v1015 = vand.u32 %v1014, 4294901760
    %1016 = vmatpush1.msra.mxu0 %v1015
    %1017 = vmatprep.subr.mxu0 0.0
    %v1018 = vand.u32 %v71, 4294901760
    %v1019 = vsub.f32 %v71, %v1018
    %v1020 = vand.u32 %v1019, 4294901760
    %v1021 = vsub.f32 %v1019, %v1020
    %v1022 = vand.u32 %v1021, 4294901760
    %1023 = vmatpush1.msra.mxu0 %v1022
    %1024 = vmatprep.subr.mxu0 0.0
    %v1025 = vand.u32 %v72, 4294901760
    %v1026 = vsub.f32 %v72, %v1025
    %v1027 = vand.u32 %v1026, 4294901760
    %v1028 = vsub.f32 %v1026, %v1027
    %v1029 = vand.u32 %v1028, 4294901760
    %1030 = vmatpush1.msra.mxu0 %v1029
    %1031 = vmatprep.subr.mxu0 0.0
    %v1032 = vand.u32 %v73, 4294901760
    %v1033 = vsub.f32 %v73, %v1032
    %v1034 = vand.u32 %v1033, 4294901760
    %v1035 = vsub.f32 %v1033, %v1034
    %v1036 = vand.u32 %v1035, 4294901760
    %1037 = vmatpush1.msra.mxu0 %v1036
    %1038 = vmatprep.subr.mxu0 0.0
    %v1039 = vand.u32 %v74, 4294901760
    %v1040 = vsub.f32 %v74, %v1039
    %v1041 = vand.u32 %v1040, 4294901760
    %v1042 = vsub.f32 %v1040, %v1041
    %v1043 = vand.u32 %v1042, 4294901760
    %1044 = vmatpush1.msra.mxu0 %v1043
    %1045 = vmatprep.subr.mxu0 0.0
    %v1046 = vand.u32 %v75, 4294901760
    %v1047 = vsub.f32 %v75, %v1046
    %v1048 = vand.u32 %v1047, 4294901760
    %v1049 = vsub.f32 %v1047, %v1048
    %v1050 = vand.u32 %v1049, 4294901760
    %1051 = vmatpush1.msra.mxu0 %v1050
    %1052 = vmatprep.subr.mxu0 0.0
    %v1053 = vand.u32 %v76, 4294901760
    %v1054 = vsub.f32 %v76, %v1053
    %v1055 = vand.u32 %v1054, 4294901760
    %v1056 = vsub.f32 %v1054, %v1055
    %v1057 = vand.u32 %v1056, 4294901760
    %1058 = vmatpush1.msra.mxu0 %v1057
    %1059 = vmatprep.subr.mxu0 0.0
    %v1060 = vand.u32 %v77, 4294901760
    %v1061 = vsub.f32 %v77, %v1060
    %v1062 = vand.u32 %v1061, 4294901760
    %v1063 = vsub.f32 %v1061, %v1062
    %v1064 = vand.u32 %v1063, 4294901760
    %1065 = vmatpush1.msra.mxu0 %v1064
    %1066 = vmatprep.subr.mxu0 0.0
    %v1067 = vand.u32 %v78, 4294901760
    %v1068 = vsub.f32 %v78, %v1067
    %v1069 = vand.u32 %v1068, 4294901760
    %v1070 = vsub.f32 %v1068, %v1069
    %v1071 = vand.u32 %v1070, 4294901760
    %1072 = vmatpush1.msra.mxu0 %v1071
    %1073 = vmatprep.subr.mxu0 0.0
    %v1074 = vand.u32 %v79, 4294901760
    %v1075 = vsub.f32 %v79, %v1074
    %v1076 = vand.u32 %v1075, 4294901760
    %v1077 = vsub.f32 %v1075, %v1076
    %v1078 = vand.u32 %v1077, 4294901760
    %1079 = vmatpush1.msra.mxu0 %v1078
    %1080 = vmatprep.subr.mxu0 0.0
    %v1081 = vand.u32 %v80, 4294901760
    %v1082 = vsub.f32 %v80, %v1081
    %v1083 = vand.u32 %v1082, 4294901760
    %v1084 = vsub.f32 %v1082, %v1083
    %v1085 = vand.u32 %v1084, 4294901760
    %1086 = vmatpush1.msra.mxu0 %v1085
    %1087 = vmatprep.subr.mxu0 0.0
    %v1088 = vand.u32 %v81, 4294901760
    %v1089 = vsub.f32 %v81, %v1088
    %v1090 = vand.u32 %v1089, 4294901760
    %v1091 = vsub.f32 %v1089, %v1090
    %v1092 = vand.u32 %v1091, 4294901760
    %1093 = vmatpush1.msra.mxu0 %v1092
    %1094 = vmatprep.subr.mxu0 0.0
    %v1095 = vand.u32 %v82, 4294901760
    %v1096 = vsub.f32 %v82, %v1095
    %v1097 = vand.u32 %v1096, 4294901760
    %v1098 = vsub.f32 %v1096, %v1097
    %v1099 = vand.u32 %v1098, 4294901760
    %1100 = vmatpush1.msra.mxu0 %v1099
    %1101 = vmatprep.subr.mxu0 0.0
    %v1102 = vand.u32 %v83, 4294901760
    %v1103 = vsub.f32 %v83, %v1102
    %v1104 = vand.u32 %v1103, 4294901760
    %v1105 = vsub.f32 %v1103, %v1104
    %v1106 = vand.u32 %v1105, 4294901760
    %1107 = vmatpush1.msra.mxu0 %v1106
    %1108 = vmatprep.subr.mxu0 0.0
    %v1109 = vand.u32 %v84, 4294901760
    %v1110 = vsub.f32 %v84, %v1109
    %v1111 = vand.u32 %v1110, 4294901760
    %v1112 = vsub.f32 %v1110, %v1111
    %v1113 = vand.u32 %v1112, 4294901760
    %1114 = vmatpush1.msra.mxu0 %v1113
    %1115 = vmatprep.subr.mxu0 0.0
    %1116 = vmatpush1.msra.mxu0 0.0
    %1117 = vmatprep.subr.mxu0 0.0
    %1118 = vmatpush1.msra.mxu0 0.0
    %1119 = vmatprep.subr.mxu0 0.0
    %1120 = vmatpush1.msra.mxu0 0.0
    %1121 = vmatprep.subr.mxu0 0.0
    %1122 = vmatpush1.msra.mxu0 0.0
    %1123 = vmatprep.subr.mxu0 0.0
    %1124 = vmatpush1.msra.mxu0 0.0
    %1125 = vmatprep.subr.mxu0 0.0
    %1126 = vmatpush1.msra.mxu0 0.0
    %1127 = vmatprep.subr.mxu0 0.0
    %1128 = vmatpush1.msra.mxu0 0.0
    %1129 = vmatprep.subr.mxu0 0.0
    %1130 = vmatpush1.msra.mxu0 0.0
    %1131 = vmatprep.subr.mxu0 0.0
    %1132 = vmatpush1.msra.mxu0 0.0
    %1133 = vmatprep.subr.mxu0 0.0
    %1134 = vmatpush1.msra.mxu0 0.0
    %1135 = vmatprep.subr.mxu0 0.0
    %1136 = vmatpush1.msra.mxu0 0.0
    %1137 = vmatprep.subr.mxu0 0.0
    %1138 = vmatpush1.msra.mxu0 0.0
    %1139 = vmatprep.subr.mxu0 0.0
    %1140 = vmatpush1.msra.mxu0 0.0
    %1141 = vmatprep.subr.mxu0 0.0
    %1142 = vmatpush1.msra.mxu0 0.0
    %1143 = vmatprep.subr.mxu0 0.0
    %1144 = vmatpush1.msra.mxu0 0.0
    %1145 = vmatprep.subr.mxu0 0.0
    %1146 = vmatpush1.msra.mxu0 0.0
    %1147 = vmatprep.mubr.f32.mxu0 0.0
    %v1148 = vand.u32 %v911, 4294901760
    %1149 = vmatmul.mubr.f32.gmra.mrb[0].mxu0 %v1148
    %v1150 = vpop.f32.mrb[0].mxu0
    %v1151 = vadd.f32 %v1000, %v1150
    %v1152 = vpop.f32.mrb[0].mxu0
    %1153 = vdwg.mxu0
    %1154 = vmatprep.subr.mxu0 0.0
    %v1155 = vand.u32 %v69, 4294901760
    %v1156 = vsub.f32 %v69, %v1155
    %1157 = vmatpush1.msra.mxu0 %v1156
    %1158 = vmatprep.subr.mxu0 0.0
    %v1159 = vand.u32 %v70, 4294901760
    %v1160 = vsub.f32 %v70, %v1159
    %1161 = vmatpush1.msra.mxu0 %v1160
    %1162 = vmatprep.subr.mxu0 0.0
    %v1163 = vand.u32 %v71, 4294901760
    %v1164 = vsub.f32 %v71, %v1163
    %1165 = vmatpush1.msra.mxu0 %v1164
    %1166 = vmatprep.subr.mxu0 0.0
    %v1167 = vand.u32 %v72, 4294901760
    %v1168 = vsub.f32 %v72, %v1167
    %1169 = vmatpush1.msra.mxu0 %v1168
    %1170 = vmatprep.subr.mxu0 0.0
    %v1171 = vand.u32 %v73, 4294901760
    %v1172 = vsub.f32 %v73, %v1171
    %1173 = vmatpush1.msra.mxu0 %v1172
    %1174 = vmatprep.subr.mxu0 0.0
    %v1175 = vand.u32 %v74, 4294901760
    %v1176 = vsub.f32 %v74, %v1175
    %1177 = vmatpush1.msra.mxu0 %v1176
    %1178 = vmatprep.subr.mxu0 0.0
    %v1179 = vand.u32 %v75, 4294901760
    %v1180 = vsub.f32 %v75, %v1179
    %1181 = vmatpush1.msra.mxu0 %v1180
    %1182 = vmatprep.subr.mxu0 0.0
    %v1183 = vand.u32 %v76, 4294901760
    %v1184 = vsub.f32 %v76, %v1183
    %1185 = vmatpush1.msra.mxu0 %v1184
    %1186 = vmatprep.subr.mxu0 0.0
    %v1187 = vand.u32 %v77, 4294901760
    %v1188 = vsub.f32 %v77, %v1187
    %1189 = vmatpush1.msra.mxu0 %v1188
    %1190 = vmatprep.subr.mxu0 0.0
    %v1191 = vand.u32 %v78, 4294901760
    %v1192 = vsub.f32 %v78, %v1191
    %1193 = vmatpush1.msra.mxu0 %v1192
    %1194 = vmatprep.subr.mxu0 0.0
    %v1195 = vand.u32 %v79, 4294901760
    %v1196 = vsub.f32 %v79, %v1195
    %1197 = vmatpush1.msra.mxu0 %v1196
    %1198 = vmatprep.subr.mxu0 0.0
    %v1199 = vand.u32 %v80, 4294901760
    %v1200 = vsub.f32 %v80, %v1199
    %1201 = vmatpush1.msra.mxu0 %v1200
    %1202 = vmatprep.subr.mxu0 0.0
    %v1203 = vand.u32 %v81, 4294901760
    %v1204 = vsub.f32 %v81, %v1203
    %1205 = vmatpush1.msra.mxu0 %v1204
    %1206 = vmatprep.subr.mxu0 0.0
    %v1207 = vand.u32 %v82, 4294901760
    %v1208 = vsub.f32 %v82, %v1207
    %1209 = vmatpush1.msra.mxu0 %v1208
    %1210 = vmatprep.subr.mxu0 0.0
    %v1211 = vand.u32 %v83, 4294901760
    %v1212 = vsub.f32 %v83, %v1211
    %1213 = vmatpush1.msra.mxu0 %v1212
    %1214 = vmatprep.subr.mxu0 0.0
    %v1215 = vand.u32 %v84, 4294901760
    %v1216 = vsub.f32 %v84, %v1215
    %1217 = vmatpush1.msra.mxu0 %v1216
    %1218 = vmatprep.subr.mxu0 0.0
    %1219 = vmatpush1.msra.mxu0 0.0
    %1220 = vmatprep.subr.mxu0 0.0
    %1221 = vmatpush1.msra.mxu0 0.0
    %1222 = vmatprep.subr.mxu0 0.0
    %1223 = vmatpush1.msra.mxu0 0.0
    %1224 = vmatprep.subr.mxu0 0.0
    %1225 = vmatpush1.msra.mxu0 0.0
    %1226 = vmatprep.subr.mxu0 0.0
    %1227 = vmatpush1.msra.mxu0 0.0
    %1228 = vmatprep.subr.mxu0 0.0
    %1229 = vmatpush1.msra.mxu0 0.0
    %1230 = vmatprep.subr.mxu0 0.0
    %1231 = vmatpush1.msra.mxu0 0.0
    %1232 = vmatprep.subr.mxu0 0.0
    %1233 = vmatpush1.msra.mxu0 0.0
    %1234 = vmatprep.subr.mxu0 0.0
    %1235 = vmatpush1.msra.mxu0 0.0
    %1236 = vmatprep.subr.mxu0 0.0
    %1237 = vmatpush1.msra.mxu0 0.0
    %1238 = vmatprep.subr.mxu0 0.0
    %1239 = vmatpush1.msra.mxu0 0.0
    %1240 = vmatprep.subr.mxu0 0.0
    %1241 = vmatpush1.msra.mxu0 0.0
    %1242 = vmatprep.subr.mxu0 0.0
    %1243 = vmatpush1.msra.mxu0 0.0
    %1244 = vmatprep.subr.mxu0 0.0
    %1245 = vmatpush1.msra.mxu0 0.0
    %1246 = vmatprep.subr.mxu0 0.0
    %1247 = vmatpush1.msra.mxu0 0.0
    %1248 = vmatprep.subr.mxu0 0.0
    %1249 = vmatpush1.msra.mxu0 0.0
    %1250 = vmatprep.mubr.f32.mxu0 0.0
    %v1251 = vand.u32 %v911, 4294901760
    %v1252 = vsub.f32 %v911, %v1251
    %1253 = vmatmul.mubr.f32.gmra.mrb[0].mxu0 %v1252
    %v1254 = vpop.f32.mrb[0].mxu0
    %v1255 = vadd.f32 %v1151, %v1254
    %v1256 = vpop.f32.mrb[0].mxu0
    %1257 = vdwg.mxu0
    %1258 = vmatprep.subr.mxu0 0.0
    %v1259 = vand.u32 %v69, 4294901760
    %1260 = vmatpush1.msra.mxu0 %v1259
    %1261 = vmatprep.subr.mxu0 0.0
    %v1262 = vand.u32 %v70, 4294901760
    %1263 = vmatpush1.msra.mxu0 %v1262
    %1264 = vmatprep.subr.mxu0 0.0
    %v1265 = vand.u32 %v71, 4294901760
    %1266 = vmatpush1.msra.mxu0 %v1265
    %1267 = vmatprep.subr.mxu0 0.0
    %v1268 = vand.u32 %v72, 4294901760
    %1269 = vmatpush1.msra.mxu0 %v1268
    %1270 = vmatprep.subr.mxu0 0.0
    %v1271 = vand.u32 %v73, 4294901760
    %1272 = vmatpush1.msra.mxu0 %v1271
    %1273 = vmatprep.subr.mxu0 0.0
    %v1274 = vand.u32 %v74, 4294901760
    %1275 = vmatpush1.msra.mxu0 %v1274
    %1276 = vmatprep.subr.mxu0 0.0
    %v1277 = vand.u32 %v75, 4294901760
    %1278 = vmatpush1.msra.mxu0 %v1277
    %1279 = vmatprep.subr.mxu0 0.0
    %v1280 = vand.u32 %v76, 4294901760
    %1281 = vmatpush1.msra.mxu0 %v1280
    %1282 = vmatprep.subr.mxu0 0.0
    %v1283 = vand.u32 %v77, 4294901760
    %1284 = vmatpush1.msra.mxu0 %v1283
    %1285 = vmatprep.subr.mxu0 0.0
    %v1286 = vand.u32 %v78, 4294901760
    %1287 = vmatpush1.msra.mxu0 %v1286
    %1288 = vmatprep.subr.mxu0 0.0
    %v1289 = vand.u32 %v79, 4294901760
    %1290 = vmatpush1.msra.mxu0 %v1289
    %1291 = vmatprep.subr.mxu0 0.0
    %v1292 = vand.u32 %v80, 4294901760
    %1293 = vmatpush1.msra.mxu0 %v1292
    %1294 = vmatprep.subr.mxu0 0.0
    %v1295 = vand.u32 %v81, 4294901760
    %1296 = vmatpush1.msra.mxu0 %v1295
    %1297 = vmatprep.subr.mxu0 0.0
    %v1298 = vand.u32 %v82, 4294901760
    %1299 = vmatpush1.msra.mxu0 %v1298
    %1300 = vmatprep.subr.mxu0 0.0
    %v1301 = vand.u32 %v83, 4294901760
    %1302 = vmatpush1.msra.mxu0 %v1301
    %1303 = vmatprep.subr.mxu0 0.0
    %v1304 = vand.u32 %v84, 4294901760
    %1305 = vmatpush1.msra.mxu0 %v1304
    %1306 = vmatprep.subr.mxu0 0.0
    %1307 = vmatpush1.msra.mxu0 0.0
    %1308 = vmatprep.subr.mxu0 0.0
    %1309 = vmatpush1.msra.mxu0 0.0
    %1310 = vmatprep.subr.mxu0 0.0
    %1311 = vmatpush1.msra.mxu0 0.0
    %1312 = vmatprep.subr.mxu0 0.0
    %1313 = vmatpush1.msra.mxu0 0.0
    %1314 = vmatprep.subr.mxu0 0.0
    %1315 = vmatpush1.msra.mxu0 0.0
    %1316 = vmatprep.subr.mxu0 0.0
    %1317 = vmatpush1.msra.mxu0 0.0
    %1318 = vmatprep.subr.mxu0 0.0
    %1319 = vmatpush1.msra.mxu0 0.0
    %1320 = vmatprep.subr.mxu0 0.0
    %1321 = vmatpush1.msra.mxu0 0.0
    %1322 = vmatprep.subr.mxu0 0.0
    %1323 = vmatpush1.msra.mxu0 0.0
    %1324 = vmatprep.subr.mxu0 0.0
    %1325 = vmatpush1.msra.mxu0 0.0
    %1326 = vmatprep.subr.mxu0 0.0
    %1327 = vmatpush1.msra.mxu0 0.0
    %1328 = vmatprep.subr.mxu0 0.0
    %1329 = vmatpush1.msra.mxu0 0.0
    %1330 = vmatprep.subr.mxu0 0.0
    %1331 = vmatpush1.msra.mxu0 0.0
    %1332 = vmatprep.subr.mxu0 0.0
    %1333 = vmatpush1.msra.mxu0 0.0
    %1334 = vmatprep.subr.mxu0 0.0
    %1335 = vmatpush1.msra.mxu0 0.0
    %1336 = vmatprep.subr.mxu0 0.0
    %1337 = vmatpush1.msra.mxu0 0.0
    %1338 = vmatprep.mubr.f32.mxu0 0.0
    %v1339 = vand.u32 %v911, 4294901760
    %v1340 = vsub.f32 %v911, %v1339
    %v1341 = vand.u32 %v1340, 4294901760
    %1342 = vmatmul.mubr.f32.gmra.mrb[0].mxu0 %v1341
    %v1343 = vpop.f32.mrb[0].mxu0
    %v1344 = vadd.f32 %v1255, %v1343
    %v1345 = vpop.f32.mrb[0].mxu0
    %1346 = vdwg.mxu0
    %1347 = vmatprep.subr.mxu0 0.0
    %v1348 = vand.u32 %v69, 4294901760
    %v1349 = vsub.f32 %v69, %v1348
    %v1350 = vand.u32 %v1349, 4294901760
    %1351 = vmatpush1.msra.mxu0 %v1350
    %1352 = vmatprep.subr.mxu0 0.0
    %v1353 = vand.u32 %v70, 4294901760
    %v1354 = vsub.f32 %v70, %v1353
    %v1355 = vand.u32 %v1354, 4294901760
    %1356 = vmatpush1.msra.mxu0 %v1355
    %1357 = vmatprep.subr.mxu0 0.0
    %v1358 = vand.u32 %v71, 4294901760
    %v1359 = vsub.f32 %v71, %v1358
    %v1360 = vand.u32 %v1359, 4294901760
    %1361 = vmatpush1.msra.mxu0 %v1360
    %1362 = vmatprep.subr.mxu0 0.0
    %v1363 = vand.u32 %v72, 4294901760
    %v1364 = vsub.f32 %v72, %v1363
    %v1365 = vand.u32 %v1364, 4294901760
    %1366 = vmatpush1.msra.mxu0 %v1365
    %1367 = vmatprep.subr.mxu0 0.0
    %v1368 = vand.u32 %v73, 4294901760
    %v1369 = vsub.f32 %v73, %v1368
    %v1370 = vand.u32 %v1369, 4294901760
    %1371 = vmatpush1.msra.mxu0 %v1370
    %1372 = vmatprep.subr.mxu0 0.0
    %v1373 = vand.u32 %v74, 4294901760
    %v1374 = vsub.f32 %v74, %v1373
    %v1375 = vand.u32 %v1374, 4294901760
    %1376 = vmatpush1.msra.mxu0 %v1375
    %1377 = vmatprep.subr.mxu0 0.0
    %v1378 = vand.u32 %v75, 4294901760
    %v1379 = vsub.f32 %v75, %v1378
    %v1380 = vand.u32 %v1379, 4294901760
    %1381 = vmatpush1.msra.mxu0 %v1380
    %1382 = vmatprep.subr.mxu0 0.0
    %v1383 = vand.u32 %v76, 4294901760
    %v1384 = vsub.f32 %v76, %v1383
    %v1385 = vand.u32 %v1384, 4294901760
    %1386 = vmatpush1.msra.mxu0 %v1385
    %1387 = vmatprep.subr.mxu0 0.0
    %v1388 = vand.u32 %v77, 4294901760
    %v1389 = vsub.f32 %v77, %v1388
    %v1390 = vand.u32 %v1389, 4294901760
    %1391 = vmatpush1.msra.mxu0 %v1390
    %1392 = vmatprep.subr.mxu0 0.0
    %v1393 = vand.u32 %v78, 4294901760
    %v1394 = vsub.f32 %v78, %v1393
    %v1395 = vand.u32 %v1394, 4294901760
    %1396 = vmatpush1.msra.mxu0 %v1395
    %1397 = vmatprep.subr.mxu0 0.0
    %v1398 = vand.u32 %v79, 4294901760
    %v1399 = vsub.f32 %v79, %v1398
    %v1400 = vand.u32 %v1399, 4294901760
    %1401 = vmatpush1.msra.mxu0 %v1400
    %1402 = vmatprep.subr.mxu0 0.0
    %v1403 = vand.u32 %v80, 4294901760
    %v1404 = vsub.f32 %v80, %v1403
    %v1405 = vand.u32 %v1404, 4294901760
    %1406 = vmatpush1.msra.mxu0 %v1405
    %1407 = vmatprep.subr.mxu0 0.0
    %v1408 = vand.u32 %v81, 4294901760
    %v1409 = vsub.f32 %v81, %v1408
    %v1410 = vand.u32 %v1409, 4294901760
    %1411 = vmatpush1.msra.mxu0 %v1410
    %1412 = vmatprep.subr.mxu0 0.0
    %v1413 = vand.u32 %v82, 4294901760
    %v1414 = vsub.f32 %v82, %v1413
    %v1415 = vand.u32 %v1414, 4294901760
    %1416 = vmatpush1.msra.mxu0 %v1415
    %1417 = vmatprep.subr.mxu0 0.0
    %v1418 = vand.u32 %v83, 4294901760
    %v1419 = vsub.f32 %v83, %v1418
    %v1420 = vand.u32 %v1419, 4294901760
    %1421 = vmatpush1.msra.mxu0 %v1420
    %1422 = vmatprep.subr.mxu0 0.0
    %v1423 = vand.u32 %v84, 4294901760
    %v1424 = vsub.f32 %v84, %v1423
    %v1425 = vand.u32 %v1424, 4294901760
    %1426 = vmatpush1.msra.mxu0 %v1425
    %1427 = vmatprep.subr.mxu0 0.0
    %1428 = vmatpush1.msra.mxu0 0.0
    %1429 = vmatprep.subr.mxu0 0.0
    %1430 = vmatpush1.msra.mxu0 0.0
    %1431 = vmatprep.subr.mxu0 0.0
    %1432 = vmatpush1.msra.mxu0 0.0
    %1433 = vmatprep.subr.mxu0 0.0
    %1434 = vmatpush1.msra.mxu0 0.0
    %1435 = vmatprep.subr.mxu0 0.0
    %1436 = vmatpush1.msra.mxu0 0.0
    %1437 = vmatprep.subr.mxu0 0.0
    %1438 = vmatpush1.msra.mxu0 0.0
    %1439 = vmatprep.subr.mxu0 0.0
    %1440 = vmatpush1.msra.mxu0 0.0
    %1441 = vmatprep.subr.mxu0 0.0
    %1442 = vmatpush1.msra.mxu0 0.0
    %1443 = vmatprep.subr.mxu0 0.0
    %1444 = vmatpush1.msra.mxu0 0.0
    %1445 = vmatprep.subr.mxu0 0.0
    %1446 = vmatpush1.msra.mxu0 0.0
    %1447 = vmatprep.subr.mxu0 0.0
    %1448 = vmatpush1.msra.mxu0 0.0
    %1449 = vmatprep.subr.mxu0 0.0
    %1450 = vmatpush1.msra.mxu0 0.0
    %1451 = vmatprep.subr.mxu0 0.0
    %1452 = vmatpush1.msra.mxu0 0.0
    %1453 = vmatprep.subr.mxu0 0.0
    %1454 = vmatpush1.msra.mxu0 0.0
    %1455 = vmatprep.subr.mxu0 0.0
    %1456 = vmatpush1.msra.mxu0 0.0
    %1457 = vmatprep.subr.mxu0 0.0
    %1458 = vmatpush1.msra.mxu0 0.0
    %1459 = vmatprep.mubr.f32.mxu0 0.0
    %v1460 = vand.u32 %v911, 4294901760
    %1461 = vmatmul.mubr.f32.gmra.mrb[0].mxu0 %v1460
    %v1462 = vpop.f32.mrb[0].mxu0
    %v1463 = vadd.f32 %v1344, %v1462
    %v1464 = vpop.f32.mrb[0].mxu0
    %1465 = vdwg.mxu0
    %1466 = vmatprep.subr.mxu0 0.0
    %v1467 = vand.u32 %v69, 4294901760
    %1468 = vmatpush1.msra.mxu0 %v1467
    %1469 = vmatprep.subr.mxu0 0.0
    %v1470 = vand.u32 %v70, 4294901760
    %1471 = vmatpush1.msra.mxu0 %v1470
    %1472 = vmatprep.subr.mxu0 0.0
    %v1473 = vand.u32 %v71, 4294901760
    %1474 = vmatpush1.msra.mxu0 %v1473
    %1475 = vmatprep.subr.mxu0 0.0
    %v1476 = vand.u32 %v72, 4294901760
    %1477 = vmatpush1.msra.mxu0 %v1476
    %1478 = vmatprep.subr.mxu0 0.0
    %v1479 = vand.u32 %v73, 4294901760
    %1480 = vmatpush1.msra.mxu0 %v1479
    %1481 = vmatprep.subr.mxu0 0.0
    %v1482 = vand.u32 %v74, 4294901760
    %1483 = vmatpush1.msra.mxu0 %v1482
    %1484 = vmatprep.subr.mxu0 0.0
    %v1485 = vand.u32 %v75, 4294901760
    %1486 = vmatpush1.msra.mxu0 %v1485
    %1487 = vmatprep.subr.mxu0 0.0
    %v1488 = vand.u32 %v76, 4294901760
    %1489 = vmatpush1.msra.mxu0 %v1488
    %1490 = vmatprep.subr.mxu0 0.0
    %v1491 = vand.u32 %v77, 4294901760
    %1492 = vmatpush1.msra.mxu0 %v1491
    %1493 = vmatprep.subr.mxu0 0.0
    %v1494 = vand.u32 %v78, 4294901760
    %1495 = vmatpush1.msra.mxu0 %v1494
    %1496 = vmatprep.subr.mxu0 0.0
    %v1497 = vand.u32 %v79, 4294901760
    %1498 = vmatpush1.msra.mxu0 %v1497
    %1499 = vmatprep.subr.mxu0 0.0
    %v1500 = vand.u32 %v80, 4294901760
    %1501 = vmatpush1.msra.mxu0 %v1500
    %1502 = vmatprep.subr.mxu0 0.0
    %v1503 = vand.u32 %v81, 4294901760
    %1504 = vmatpush1.msra.mxu0 %v1503
    %1505 = vmatprep.subr.mxu0 0.0
    %v1506 = vand.u32 %v82, 4294901760
    %1507 = vmatpush1.msra.mxu0 %v1506
    %1508 = vmatprep.subr.mxu0 0.0
    %v1509 = vand.u32 %v83, 4294901760
    %1510 = vmatpush1.msra.mxu0 %v1509
    %1511 = vmatprep.subr.mxu0 0.0
    %v1512 = vand.u32 %v84, 4294901760
    %1513 = vmatpush1.msra.mxu0 %v1512
    %1514 = vmatprep.subr.mxu0 0.0
    %1515 = vmatpush1.msra.mxu0 0.0
    %1516 = vmatprep.subr.mxu0 0.0
    %1517 = vmatpush1.msra.mxu0 0.0
    %1518 = vmatprep.subr.mxu0 0.0
    %1519 = vmatpush1.msra.mxu0 0.0
    %1520 = vmatprep.subr.mxu0 0.0
    %1521 = vmatpush1.msra.mxu0 0.0
    %1522 = vmatprep.subr.mxu0 0.0
    %1523 = vmatpush1.msra.mxu0 0.0
    %1524 = vmatprep.subr.mxu0 0.0
    %1525 = vmatpush1.msra.mxu0 0.0
    %1526 = vmatprep.subr.mxu0 0.0
    %1527 = vmatpush1.msra.mxu0 0.0
    %1528 = vmatprep.subr.mxu0 0.0
    %1529 = vmatpush1.msra.mxu0 0.0
    %1530 = vmatprep.subr.mxu0 0.0
    %1531 = vmatpush1.msra.mxu0 0.0
    %1532 = vmatprep.subr.mxu0 0.0
    %1533 = vmatpush1.msra.mxu0 0.0
    %1534 = vmatprep.subr.mxu0 0.0
    %1535 = vmatpush1.msra.mxu0 0.0
    %1536 = vmatprep.subr.mxu0 0.0
    %1537 = vmatpush1.msra.mxu0 0.0
    %1538 = vmatprep.subr.mxu0 0.0
    %1539 = vmatpush1.msra.mxu0 0.0
    %1540 = vmatprep.subr.mxu0 0.0
    %1541 = vmatpush1.msra.mxu0 0.0
    %1542 = vmatprep.subr.mxu0 0.0
    %1543 = vmatpush1.msra.mxu0 0.0
    %1544 = vmatprep.subr.mxu0 0.0
    %1545 = vmatpush1.msra.mxu0 0.0
    %1546 = vmatprep.mubr.f32.mxu0 0.0
    %v1547 = vand.u32 %v911, 4294901760
    %1548 = vmatmul.mubr.f32.gmra.mrb[0].mxu0 %v1547
    %v1549 = vpop.f32.mrb[0].mxu0
    %v1550 = vadd.f32 %v1463, %v1549
    %v1551 = vpop.f32.mrb[0].mxu0
    %1552 = vdwg.mxu0
    %v1553 = vadd.f32 %v866, %v1550
    %v1554 = vtanh.pop %v1553
    %1555 = vst [vmem:[#allocation8] sm:$0xff] %v1554
    %1556 = vmatprep.subr.mxu0 0.0
    %v1557 = vand.u32 %v69, 4294901760
    %1558 = vmatpush1.msra.mxu0 %v1557
    %1559 = vmatprep.subr.mxu0 0.0
    %v1560 = vand.u32 %v70, 4294901760
    %1561 = vmatpush1.msra.mxu0 %v1560
    %1562 = vmatprep.subr.mxu0 0.0
    %v1563 = vand.u32 %v71, 4294901760
    %1564 = vmatpush1.msra.mxu0 %v1563
    %1565 = vmatprep.subr.mxu0 0.0
    %v1566 = vand.u32 %v72, 4294901760
    %1567 = vmatpush1.msra.mxu0 %v1566
    %1568 = vmatprep.subr.mxu0 0.0
    %v1569 = vand.u32 %v73, 4294901760
    %1570 = vmatpush1.msra.mxu0 %v1569
    %1571 = vmatprep.subr.mxu0 0.0
    %v1572 = vand.u32 %v74, 4294901760
    %1573 = vmatpush1.msra.mxu0 %v1572
    %1574 = vmatprep.subr.mxu0 0.0
    %v1575 = vand.u32 %v75, 4294901760
    %1576 = vmatpush1.msra.mxu0 %v1575
    %1577 = vmatprep.subr.mxu0 0.0
    %v1578 = vand.u32 %v76, 4294901760
    %1579 = vmatpush1.msra.mxu0 %v1578
    %1580 = vmatprep.subr.mxu0 0.0
    %v1581 = vand.u32 %v77, 4294901760
    %1582 = vmatpush1.msra.mxu0 %v1581
    %1583 = vmatprep.subr.mxu0 0.0
    %v1584 = vand.u32 %v78, 4294901760
    %1585 = vmatpush1.msra.mxu0 %v1584
    %1586 = vmatprep.subr.mxu0 0.0
    %v1587 = vand.u32 %v79, 4294901760
    %1588 = vmatpush1.msra.mxu0 %v1587
    %1589 = vmatprep.subr.mxu0 0.0
    %v1590 = vand.u32 %v80, 4294901760
    %1591 = vmatpush1.msra.mxu0 %v1590
    %1592 = vmatprep.subr.mxu0 0.0
    %v1593 = vand.u32 %v81, 4294901760
    %1594 = vmatpush1.msra.mxu0 %v1593
    %1595 = vmatprep.subr.mxu0 0.0
    %v1596 = vand.u32 %v82, 4294901760
    %1597 = vmatpush1.msra.mxu0 %v1596
    %1598 = vmatprep.subr.mxu0 0.0
    %v1599 = vand.u32 %v83, 4294901760
    %1600 = vmatpush1.msra.mxu0 %v1599
    %1601 = vmatprep.subr.mxu0 0.0
    %v1602 = vand.u32 %v84, 4294901760
    %1603 = vmatpush1.msra.mxu0 %v1602
    %1604 = vmatprep.subr.mxu0 0.0
    %1605 = vmatpush1.msra.mxu0 0.0
    %1606 = vmatprep.subr.mxu0 0.0
    %1607 = vmatpush1.msra.mxu0 0.0
    %1608 = vmatprep.subr.mxu0 0.0
    %1609 = vmatpush1.msra.mxu0 0.0
    %1610 = vmatprep.subr.mxu0 0.0
    %1611 = vmatpush1.msra.mxu0 0.0
    %1612 = vmatprep.subr.mxu0 0.0
    %1613 = vmatpush1.msra.mxu0 0.0
    %1614 = vmatprep.subr.mxu0 0.0
    %1615 = vmatpush1.msra.mxu0 0.0
    %1616 = vmatprep.subr.mxu0 0.0
    %1617 = vmatpush1.msra.mxu0 0.0
    %1618 = vmatprep.subr.mxu0 0.0
    %1619 = vmatpush1.msra.mxu0 0.0
    %1620 = vmatprep.subr.mxu0 0.0
    %1621 = vmatpush1.msra.mxu0 0.0
    %1622 = vmatprep.subr.mxu0 0.0
    %1623 = vmatpush1.msra.mxu0 0.0
    %1624 = vmatprep.subr.mxu0 0.0
    %1625 = vmatpush1.msra.mxu0 0.0
    %1626 = vmatprep.subr.mxu0 0.0
    %1627 = vmatpush1.msra.mxu0 0.0
    %1628 = vmatprep.subr.mxu0 0.0
    %1629 = vmatpush1.msra.mxu0 0.0
    %1630 = vmatprep.subr.mxu0 0.0
    %1631 = vmatpush1.msra.mxu0 0.0
    %1632 = vmatprep.subr.mxu0 0.0
    %1633 = vmatpush1.msra.mxu0 0.0
    %1634 = vmatprep.subr.mxu0 0.0
    %1635 = vmatpush1.msra.mxu0 0.0
    %1636 = vmatprep.mubr.f32.mxu0 0.0
    %v1637 = vand.u32 %v1554, 4294901760
    %v1638 = vsub.f32 %v1554, %v1637
    %v1639 = vand.u32 %v1638, 4294901760
    %v1640 = vsub.f32 %v1638, %v1639
    %v1641 = vand.u32 %v1640, 4294901760
    %1642 = vmatmul.mubr.f32.gmra.mrb[0].mxu0 %v1641
    %v1643 = vpop.f32.mrb[0].mxu0
    %v1644 = vadd.f32 0.0, %v1643
    %v1645 = vpop.f32.mrb[0].mxu0
    %1646 = vdwg.mxu0
    %1647 = vmatprep.subr.mxu0 0.0
    %v1648 = vand.u32 %v69, 4294901760
    %v1649 = vsub.f32 %v69, %v1648
    %v1650 = vand.u32 %v1649, 4294901760
    %v1651 = vsub.f32 %v1649, %v1650
    %v1652 = vand.u32 %v1651, 4294901760
    %1653 = vmatpush1.msra.mxu0 %v1652
    %1654 = vmatprep.subr.mxu0 0.0
    %v1655 = vand.u32 %v70, 4294901760
    %v1656 = vsub.f32 %v70, %v1655
    %v1657 = vand.u32 %v1656, 4294901760
    %v1658 = vsub.f32 %v1656, %v1657
    %v1659 = vand.u32 %v1658, 4294901760
    %1660 = vmatpush1.msra.mxu0 %v1659
    %1661 = vmatprep.subr.mxu0 0.0
    %v1662 = vand.u32 %v71, 4294901760
    %v1663 = vsub.f32 %v71, %v1662
    %v1664 = vand.u32 %v1663, 4294901760
    %v1665 = vsub.f32 %v1663, %v1664
    %v1666 = vand.u32 %v1665, 4294901760
    %1667 = vmatpush1.msra.mxu0 %v1666
    %1668 = vmatprep.subr.mxu0 0.0
    %v1669 = vand.u32 %v72, 4294901760
    %v1670 = vsub.f32 %v72, %v1669
    %v1671 = vand.u32 %v1670, 4294901760
    %v1672 = vsub.f32 %v1670, %v1671
    %v1673 = vand.u32 %v1672, 4294901760
    %1674 = vmatpush1.msra.mxu0 %v1673
    %1675 = vmatprep.subr.mxu0 0.0
    %v1676 = vand.u32 %v73, 4294901760
    %v1677 = vsub.f32 %v73, %v1676
    %v1678 = vand.u32 %v1677, 4294901760
    %v1679 = vsub.f32 %v1677, %v1678
    %v1680 = vand.u32 %v1679, 4294901760
    %1681 = vmatpush1.msra.mxu0 %v1680
    %1682 = vmatprep.subr.mxu0 0.0
    %v1683 = vand.u32 %v74, 4294901760
    %v1684 = vsub.f32 %v74, %v1683
    %v1685 = vand.u32 %v1684, 4294901760
    %v1686 = vsub.f32 %v1684, %v1685
    %v1687 = vand.u32 %v1686, 4294901760
    %1688 = vmatpush1.msra.mxu0 %v1687
    %1689 = vmatprep.subr.mxu0 0.0
    %v1690 = vand.u32 %v75, 4294901760
    %v1691 = vsub.f32 %v75, %v1690
    %v1692 = vand.u32 %v1691, 4294901760
    %v1693 = vsub.f32 %v1691, %v1692
    %v1694 = vand.u32 %v1693, 4294901760
    %1695 = vmatpush1.msra.mxu0 %v1694
    %1696 = vmatprep.subr.mxu0 0.0
    %v1697 = vand.u32 %v76, 4294901760
    %v1698 = vsub.f32 %v76, %v1697
    %v1699 = vand.u32 %v1698, 4294901760
    %v1700 = vsub.f32 %v1698, %v1699
    %v1701 = vand.u32 %v1700, 4294901760
    %1702 = vmatpush1.msra.mxu0 %v1701
    %1703 = vmatprep.subr.mxu0 0.0
    %v1704 = vand.u32 %v77, 4294901760
    %v1705 = vsub.f32 %v77, %v1704
    %v1706 = vand.u32 %v1705, 4294901760
    %v1707 = vsub.f32 %v1705, %v1706
    %v1708 = vand.u32 %v1707, 4294901760
    %1709 = vmatpush1.msra.mxu0 %v1708
    %1710 = vmatprep.subr.mxu0 0.0
    %v1711 = vand.u32 %v78, 4294901760
    %v1712 = vsub.f32 %v78, %v1711
    %v1713 = vand.u32 %v1712, 4294901760
    %v1714 = vsub.f32 %v1712, %v1713
    %v1715 = vand.u32 %v1714, 4294901760
    %1716 = vmatpush1.msra.mxu0 %v1715
    %1717 = vmatprep.subr.mxu0 0.0
    %v1718 = vand.u32 %v79, 4294901760
    %v1719 = vsub.f32 %v79, %v1718
    %v1720 = vand.u32 %v1719, 4294901760
    %v1721 = vsub.f32 %v1719, %v1720
    %v1722 = vand.u32 %v1721, 4294901760
    %1723 = vmatpush1.msra.mxu0 %v1722
    %1724 = vmatprep.subr.mxu0 0.0
    %v1725 = vand.u32 %v80, 4294901760
    %v1726 = vsub.f32 %v80, %v1725
    %v1727 = vand.u32 %v1726, 4294901760
    %v1728 = vsub.f32 %v1726, %v1727
    %v1729 = vand.u32 %v1728, 4294901760
    %1730 = vmatpush1.msra.mxu0 %v1729
    %1731 = vmatprep.subr.mxu0 0.0
    %v1732 = vand.u32 %v81, 4294901760
    %v1733 = vsub.f32 %v81, %v1732
    %v1734 = vand.u32 %v1733, 4294901760
    %v1735 = vsub.f32 %v1733, %v1734
    %v1736 = vand.u32 %v1735, 4294901760
    %1737 = vmatpush1.msra.mxu0 %v1736
    %1738 = vmatprep.subr.mxu0 0.0
    %v1739 = vand.u32 %v82, 4294901760
    %v1740 = vsub.f32 %v82, %v1739
    %v1741 = vand.u32 %v1740, 4294901760
    %v1742 = vsub.f32 %v1740, %v1741
    %v1743 = vand.u32 %v1742, 4294901760
    %1744 = vmatpush1.msra.mxu0 %v1743
    %1745 = vmatprep.subr.mxu0 0.0
    %v1746 = vand.u32 %v83, 4294901760
    %v1747 = vsub.f32 %v83, %v1746
    %v1748 = vand.u32 %v1747, 4294901760
    %v1749 = vsub.f32 %v1747, %v1748
    %v1750 = vand.u32 %v1749, 4294901760
    %1751 = vmatpush1.msra.mxu0 %v1750
    %1752 = vmatprep.subr.mxu0 0.0
    %v1753 = vand.u32 %v84, 4294901760
    %v1754 = vsub.f32 %v84, %v1753
    %v1755 = vand.u32 %v1754, 4294901760
    %v1756 = vsub.f32 %v1754, %v1755
    %v1757 = vand.u32 %v1756, 4294901760
    %1758 = vmatpush1.msra.mxu0 %v1757
    %1759 = vmatprep.subr.mxu0 0.0
    %1760 = vmatpush1.msra.mxu0 0.0
    %1761 = vmatprep.subr.mxu0 0.0
    %1762 = vmatpush1.msra.mxu0 0.0
    %1763 = vmatprep.subr.mxu0 0.0
    %1764 = vmatpush1.msra.mxu0 0.0
    %1765 = vmatprep.subr.mxu0 0.0
    %1766 = vmatpush1.msra.mxu0 0.0
    %1767 = vmatprep.subr.mxu0 0.0
    %1768 = vmatpush1.msra.mxu0 0.0
    %1769 = vmatprep.subr.mxu0 0.0
    %1770 = vmatpush1.msra.mxu0 0.0
    %1771 = vmatprep.subr.mxu0 0.0
    %1772 = vmatpush1.msra.mxu0 0.0
    %1773 = vmatprep.subr.mxu0 0.0
    %1774 = vmatpush1.msra.mxu0 0.0
    %1775 = vmatprep.subr.mxu0 0.0
    %1776 = vmatpush1.msra.mxu0 0.0
    %1777 = vmatprep.subr.mxu0 0.0
    %1778 = vmatpush1.msra.mxu0 0.0
    %1779 = vmatprep.subr.mxu0 0.0
    %1780 = vmatpush1.msra.mxu0 0.0
    %1781 = vmatprep.subr.mxu0 0.0
    %1782 = vmatpush1.msra.mxu0 0.0
    %1783 = vmatprep.subr.mxu0 0.0
    %1784 = vmatpush1.msra.mxu0 0.0
    %1785 = vmatprep.subr.mxu0 0.0
    %1786 = vmatpush1.msra.mxu0 0.0
    %1787 = vmatprep.subr.mxu0 0.0
    %1788 = vmatpush1.msra.mxu0 0.0
    %1789 = vmatprep.subr.mxu0 0.0
    %1790 = vmatpush1.msra.mxu0 0.0
    %1791 = vmatprep.mubr.f32.mxu0 0.0
    %v1792 = vand.u32 %v1554, 4294901760
    %1793 = vmatmul.mubr.f32.gmra.mrb[0].mxu0 %v1792
    %v1794 = vpop.f32.mrb[0].mxu0
    %v1795 = vadd.f32 %v1644, %v1794
    %v1796 = vpop.f32.mrb[0].mxu0
    %1797 = vdwg.mxu0
    %1798 = vmatprep.subr.mxu0 0.0
    %v1799 = vand.u32 %v69, 4294901760
    %v1800 = vsub.f32 %v69, %v1799
    %1801 = vmatpush1.msra.mxu0 %v1800
    %1802 = vmatprep.subr.mxu0 0.0
    %v1803 = vand.u32 %v70, 4294901760
    %v1804 = vsub.f32 %v70, %v1803
    %1805 = vmatpush1.msra.mxu0 %v1804
    %1806 = vmatprep.subr.mxu0 0.0
    %v1807 = vand.u32 %v71, 4294901760
    %v1808 = vsub.f32 %v71, %v1807
    %1809 = vmatpush1.msra.mxu0 %v1808
    %1810 = vmatprep.subr.mxu0 0.0
    %v1811 = vand.u32 %v72, 4294901760
    %v1812 = vsub.f32 %v72, %v1811
    %1813 = vmatpush1.msra.mxu0 %v1812
    %1814 = vmatprep.subr.mxu0 0.0
    %v1815 = vand.u32 %v73, 4294901760
    %v1816 = vsub.f32 %v73, %v1815
    %1817 = vmatpush1.msra.mxu0 %v1816
    %1818 = vmatprep.subr.mxu0 0.0
    %v1819 = vand.u32 %v74, 4294901760
    %v1820 = vsub.f32 %v74, %v1819
    %1821 = vmatpush1.msra.mxu0 %v1820
    %1822 = vmatprep.subr.mxu0 0.0
    %v1823 = vand.u32 %v75, 4294901760
    %v1824 = vsub.f32 %v75, %v1823
    %1825 = vmatpush1.msra.mxu0 %v1824
    %1826 = vmatprep.subr.mxu0 0.0
    %v1827 = vand.u32 %v76, 4294901760
    %v1828 = vsub.f32 %v76, %v1827
    %1829 = vmatpush1.msra.mxu0 %v1828
    %1830 = vmatprep.subr.mxu0 0.0
    %v1831 = vand.u32 %v77, 4294901760
    %v1832 = vsub.f32 %v77, %v1831
    %1833 = vmatpush1.msra.mxu0 %v1832
    %1834 = vmatprep.subr.mxu0 0.0
    %v1835 = vand.u32 %v78, 4294901760
    %v1836 = vsub.f32 %v78, %v1835
    %1837 = vmatpush1.msra.mxu0 %v1836
    %1838 = vmatprep.subr.mxu0 0.0
    %v1839 = vand.u32 %v79, 4294901760
    %v1840 = vsub.f32 %v79, %v1839
    %1841 = vmatpush1.msra.mxu0 %v1840
    %1842 = vmatprep.subr.mxu0 0.0
    %v1843 = vand.u32 %v80, 4294901760
    %v1844 = vsub.f32 %v80, %v1843
    %1845 = vmatpush1.msra.mxu0 %v1844
    %1846 = vmatprep.subr.mxu0 0.0
    %v1847 = vand.u32 %v81, 4294901760
    %v1848 = vsub.f32 %v81, %v1847
    %1849 = vmatpush1.msra.mxu0 %v1848
    %1850 = vmatprep.subr.mxu0 0.0
    %v1851 = vand.u32 %v82, 4294901760
    %v1852 = vsub.f32 %v82, %v1851
    %1853 = vmatpush1.msra.mxu0 %v1852
    %1854 = vmatprep.subr.mxu0 0.0
    %v1855 = vand.u32 %v83, 4294901760
    %v1856 = vsub.f32 %v83, %v1855
    %1857 = vmatpush1.msra.mxu0 %v1856
    %1858 = vmatprep.subr.mxu0 0.0
    %v1859 = vand.u32 %v84, 4294901760
    %v1860 = vsub.f32 %v84, %v1859
    %1861 = vmatpush1.msra.mxu0 %v1860
    %1862 = vmatprep.subr.mxu0 0.0
    %1863 = vmatpush1.msra.mxu0 0.0
    %1864 = vmatprep.subr.mxu0 0.0
    %1865 = vmatpush1.msra.mxu0 0.0
    %1866 = vmatprep.subr.mxu0 0.0
    %1867 = vmatpush1.msra.mxu0 0.0
    %1868 = vmatprep.subr.mxu0 0.0
    %1869 = vmatpush1.msra.mxu0 0.0
    %1870 = vmatprep.subr.mxu0 0.0
    %1871 = vmatpush1.msra.mxu0 0.0
    %1872 = vmatprep.subr.mxu0 0.0
    %1873 = vmatpush1.msra.mxu0 0.0
    %1874 = vmatprep.subr.mxu0 0.0
    %1875 = vmatpush1.msra.mxu0 0.0
    %1876 = vmatprep.subr.mxu0 0.0
    %1877 = vmatpush1.msra.mxu0 0.0
    %1878 = vmatprep.subr.mxu0 0.0
    %1879 = vmatpush1.msra.mxu0 0.0
    %1880 = vmatprep.subr.mxu0 0.0
    %1881 = vmatpush1.msra.mxu0 0.0
    %1882 = vmatprep.subr.mxu0 0.0
    %1883 = vmatpush1.msra.mxu0 0.0
    %1884 = vmatprep.subr.mxu0 0.0
    %1885 = vmatpush1.msra.mxu0 0.0
    %1886 = vmatprep.subr.mxu0 0.0
    %1887 = vmatpush1.msra.mxu0 0.0
    %1888 = vmatprep.subr.mxu0 0.0
    %1889 = vmatpush1.msra.mxu0 0.0
    %1890 = vmatprep.subr.mxu0 0.0
    %1891 = vmatpush1.msra.mxu0 0.0
    %1892 = vmatprep.subr.mxu0 0.0
    %1893 = vmatpush1.msra.mxu0 0.0
    %1894 = vmatprep.mubr.f32.mxu0 0.0
    %v1895 = vand.u32 %v1554, 4294901760
    %v1896 = vsub.f32 %v1554, %v1895
    %1897 = vmatmul.mubr.f32.gmra.mrb[0].mxu0 %v1896
    %v1898 = vpop.f32.mrb[0].mxu0
    %v1899 = vadd.f32 %v1795, %v1898
    %v1900 = vpop.f32.mrb[0].mxu0
    %1901 = vdwg.mxu0
    %1902 = vmatprep.subr.mxu0 0.0
    %v1903 = vand.u32 %v69, 4294901760
    %1904 = vmatpush1.msra.mxu0 %v1903
    %1905 = vmatprep.subr.mxu0 0.0
    %v1906 = vand.u32 %v70, 4294901760
    %1907 = vmatpush1.msra.mxu0 %v1906
    %1908 = vmatprep.subr.mxu0 0.0
    %v1909 = vand.u32 %v71, 4294901760
    %1910 = vmatpush1.msra.mxu0 %v1909
    %1911 = vmatprep.subr.mxu0 0.0
    %v1912 = vand.u32 %v72, 4294901760
    %1913 = vmatpush1.msra.mxu0 %v1912
    %1914 = vmatprep.subr.mxu0 0.0
    %v1915 = vand.u32 %v73, 4294901760
    %1916 = vmatpush1.msra.mxu0 %v1915
    %1917 = vmatprep.subr.mxu0 0.0
    %v1918 = vand.u32 %v74, 4294901760
    %1919 = vmatpush1.msra.mxu0 %v1918
    %1920 = vmatprep.subr.mxu0 0.0
    %v1921 = vand.u32 %v75, 4294901760
    %1922 = vmatpush1.msra.mxu0 %v1921
    %1923 = vmatprep.subr.mxu0 0.0
    %v1924 = vand.u32 %v76, 4294901760
    %1925 = vmatpush1.msra.mxu0 %v1924
    %1926 = vmatprep.subr.mxu0 0.0
    %v1927 = vand.u32 %v77, 4294901760
    %1928 = vmatpush1.msra.mxu0 %v1927
    %1929 = vmatprep.subr.mxu0 0.0
    %v1930 = vand.u32 %v78, 4294901760
    %1931 = vmatpush1.msra.mxu0 %v1930
    %1932 = vmatprep.subr.mxu0 0.0
    %v1933 = vand.u32 %v79, 4294901760
    %1934 = vmatpush1.msra.mxu0 %v1933
    %1935 = vmatprep.subr.mxu0 0.0
    %v1936 = vand.u32 %v80, 4294901760
    %1937 = vmatpush1.msra.mxu0 %v1936
    %1938 = vmatprep.subr.mxu0 0.0
    %v1939 = vand.u32 %v81, 4294901760
    %1940 = vmatpush1.msra.mxu0 %v1939
    %1941 = vmatprep.subr.mxu0 0.0
    %v1942 = vand.u32 %v82, 4294901760
    %1943 = vmatpush1.msra.mxu0 %v1942
    %1944 = vmatprep.subr.mxu0 0.0
    %v1945 = vand.u32 %v83, 4294901760
    %1946 = vmatpush1.msra.mxu0 %v1945
    %1947 = vmatprep.subr.mxu0 0.0
    %v1948 = vand.u32 %v84, 4294901760
    %1949 = vmatpush1.msra.mxu0 %v1948
    %1950 = vmatprep.subr.mxu0 0.0
    %1951 = vmatpush1.msra.mxu0 0.0
    %1952 = vmatprep.subr.mxu0 0.0
    %1953 = vmatpush1.msra.mxu0 0.0
    %1954 = vmatprep.subr.mxu0 0.0
    %1955 = vmatpush1.msra.mxu0 0.0
    %1956 = vmatprep.subr.mxu0 0.0
    %1957 = vmatpush1.msra.mxu0 0.0
    %1958 = vmatprep.subr.mxu0 0.0
    %1959 = vmatpush1.msra.mxu0 0.0
    %1960 = vmatprep.subr.mxu0 0.0
    %1961 = vmatpush1.msra.mxu0 0.0
    %1962 = vmatprep.subr.mxu0 0.0
    %1963 = vmatpush1.msra.mxu0 0.0
    %1964 = vmatprep.subr.mxu0 0.0
    %1965 = vmatpush1.msra.mxu0 0.0
    %1966 = vmatprep.subr.mxu0 0.0
    %1967 = vmatpush1.msra.mxu0 0.0
    %1968 = vmatprep.subr.mxu0 0.0
    %1969 = vmatpush1.msra.mxu0 0.0
    %1970 = vmatprep.subr.mxu0 0.0
    %1971 = vmatpush1.msra.mxu0 0.0
    %1972 = vmatprep.subr.mxu0 0.0
    %1973 = vmatpush1.msra.mxu0 0.0
    %1974 = vmatprep.subr.mxu0 0.0
    %1975 = vmatpush1.msra.mxu0 0.0
    %1976 = vmatprep.subr.mxu0 0.0
    %1977 = vmatpush1.msra.mxu0 0.0
    %1978 = vmatprep.subr.mxu0 0.0
    %1979 = vmatpush1.msra.mxu0 0.0
    %1980 = vmatprep.subr.mxu0 0.0
    %1981 = vmatpush1.msra.mxu0 0.0
    %1982 = vmatprep.mubr.f32.mxu0 0.0
    %v1983 = vand.u32 %v1554, 4294901760
    %v1984 = vsub.f32 %v1554, %v1983
    %v1985 = vand.u32 %v1984, 4294901760
    %1986 = vmatmul.mubr.f32.gmra.mrb[0].mxu0 %v1985
    %v1987 = vpop.f32.mrb[0].mxu0
    %v1988 = vadd.f32 %v1899, %v1987
    %v1989 = vpop.f32.mrb[0].mxu0
    %1990 = vdwg.mxu0
    %1991 = vmatprep.subr.mxu0 0.0
    %v1992 = vand.u32 %v69, 4294901760
    %v1993 = vsub.f32 %v69, %v1992
    %v1994 = vand.u32 %v1993, 4294901760
    %1995 = vmatpush1.msra.mxu0 %v1994
    %1996 = vmatprep.subr.mxu0 0.0
    %v1997 = vand.u32 %v70, 4294901760
    %v1998 = vsub.f32 %v70, %v1997
    %v1999 = vand.u32 %v1998, 4294901760
    %2000 = vmatpush1.msra.mxu0 %v1999
    %2001 = vmatprep.subr.mxu0 0.0
    %v2002 = vand.u32 %v71, 4294901760
    %v2003 = vsub.f32 %v71, %v2002
    %v2004 = vand.u32 %v2003, 4294901760
    %2005 = vmatpush1.msra.mxu0 %v2004
    %2006 = vmatprep.subr.mxu0 0.0
    %v2007 = vand.u32 %v72, 4294901760
    %v2008 = vsub.f32 %v72, %v2007
    %v2009 = vand.u32 %v2008, 4294901760
    %2010 = vmatpush1.msra.mxu0 %v2009
    %2011 = vmatprep.subr.mxu0 0.0
    %v2012 = vand.u32 %v73, 4294901760
    %v2013 = vsub.f32 %v73, %v2012
    %v2014 = vand.u32 %v2013, 4294901760
    %2015 = vmatpush1.msra.mxu0 %v2014
    %2016 = vmatprep.subr.mxu0 0.0
    %v2017 = vand.u32 %v74, 4294901760
    %v2018 = vsub.f32 %v74, %v2017
    %v2019 = vand.u32 %v2018, 4294901760
    %2020 = vmatpush1.msra.mxu0 %v2019
    %2021 = vmatprep.subr.mxu0 0.0
    %v2022 = vand.u32 %v75, 4294901760
    %v2023 = vsub.f32 %v75, %v2022
    %v2024 = vand.u32 %v2023, 4294901760
    %2025 = vmatpush1.msra.mxu0 %v2024
    %2026 = vmatprep.subr.mxu0 0.0
    %v2027 = vand.u32 %v76, 4294901760
    %v2028 = vsub.f32 %v76, %v2027
    %v2029 = vand.u32 %v2028, 4294901760
    %2030 = vmatpush1.msra.mxu0 %v2029
    %2031 = vmatprep.subr.mxu0 0.0
    %v2032 = vand.u32 %v77, 4294901760
    %v2033 = vsub.f32 %v77, %v2032
    %v2034 = vand.u32 %v2033, 4294901760
    %2035 = vmatpush1.msra.mxu0 %v2034
    %2036 = vmatprep.subr.mxu0 0.0
    %v2037 = vand.u32 %v78, 4294901760
    %v2038 = vsub.f32 %v78, %v2037
    %v2039 = vand.u32 %v2038, 4294901760
    %2040 = vmatpush1.msra.mxu0 %v2039
    %2041 = vmatprep.subr.mxu0 0.0
    %v2042 = vand.u32 %v79, 4294901760
    %v2043 = vsub.f32 %v79, %v2042
    %v2044 = vand.u32 %v2043, 4294901760
    %2045 = vmatpush1.msra.mxu0 %v2044
    %2046 = vmatprep.subr.mxu0 0.0
    %v2047 = vand.u32 %v80, 4294901760
    %v2048 = vsub.f32 %v80, %v2047
    %v2049 = vand.u32 %v2048, 4294901760
    %2050 = vmatpush1.msra.mxu0 %v2049
    %2051 = vmatprep.subr.mxu0 0.0
    %v2052 = vand.u32 %v81, 4294901760
    %v2053 = vsub.f32 %v81, %v2052
    %v2054 = vand.u32 %v2053, 4294901760
    %2055 = vmatpush1.msra.mxu0 %v2054
    %2056 = vmatprep.subr.mxu0 0.0
    %v2057 = vand.u32 %v82, 4294901760
    %v2058 = vsub.f32 %v82, %v2057
    %v2059 = vand.u32 %v2058, 4294901760
    %2060 = vmatpush1.msra.mxu0 %v2059
    %2061 = vmatprep.subr.mxu0 0.0
    %v2062 = vand.u32 %v83, 4294901760
    %v2063 = vsub.f32 %v83, %v2062
    %v2064 = vand.u32 %v2063, 4294901760
    %2065 = vmatpush1.msra.mxu0 %v2064
    %2066 = vmatprep.subr.mxu0 0.0
    %v2067 = vand.u32 %v84, 4294901760
    %v2068 = vsub.f32 %v84, %v2067
    %v2069 = vand.u32 %v2068, 4294901760
    %2070 = vmatpush1.msra.mxu0 %v2069
    %2071 = vmatprep.subr.mxu0 0.0
    %2072 = vmatpush1.msra.mxu0 0.0
    %2073 = vmatprep.subr.mxu0 0.0
    %2074 = vmatpush1.msra.mxu0 0.0
    %2075 = vmatprep.subr.mxu0 0.0
    %2076 = vmatpush1.msra.mxu0 0.0
    %2077 = vmatprep.subr.mxu0 0.0
    %2078 = vmatpush1.msra.mxu0 0.0
    %2079 = vmatprep.subr.mxu0 0.0
    %2080 = vmatpush1.msra.mxu0 0.0
    %2081 = vmatprep.subr.mxu0 0.0
    %2082 = vmatpush1.msra.mxu0 0.0
    %2083 = vmatprep.subr.mxu0 0.0
    %2084 = vmatpush1.msra.mxu0 0.0
    %2085 = vmatprep.subr.mxu0 0.0
    %2086 = vmatpush1.msra.mxu0 0.0
    %2087 = vmatprep.subr.mxu0 0.0
    %2088 = vmatpush1.msra.mxu0 0.0
    %2089 = vmatprep.subr.mxu0 0.0
    %2090 = vmatpush1.msra.mxu0 0.0
    %2091 = vmatprep.subr.mxu0 0.0
    %2092 = vmatpush1.msra.mxu0 0.0
    %2093 = vmatprep.subr.mxu0 0.0
    %2094 = vmatpush1.msra.mxu0 0.0
    %2095 = vmatprep.subr.mxu0 0.0
    %2096 = vmatpush1.msra.mxu0 0.0
    %2097 = vmatprep.subr.mxu0 0.0
    %2098 = vmatpush1.msra.mxu0 0.0
    %2099 = vmatprep.subr.mxu0 0.0
    %2100 = vmatpush1.msra.mxu0 0.0
    %2101 = vmatprep.subr.mxu0 0.0
    %2102 = vmatpush1.msra.mxu0 0.0
    %2103 = vmatprep.mubr.f32.mxu0 0.0
    %v2104 = vand.u32 %v1554, 4294901760
    %2105 = vmatmul.mubr.f32.gmra.mrb[0].mxu0 %v2104
    %v2106 = vpop.f32.mrb[0].mxu0
    %v2107 = vadd.f32 %v1988, %v2106
    %v2108 = vpop.f32.mrb[0].mxu0
    %2109 = vdwg.mxu0
    %2110 = vmatprep.subr.mxu0 0.0
    %v2111 = vand.u32 %v69, 4294901760
    %2112 = vmatpush1.msra.mxu0 %v2111
    %2113 = vmatprep.subr.mxu0 0.0
    %v2114 = vand.u32 %v70, 4294901760
    %2115 = vmatpush1.msra.mxu0 %v2114
    %2116 = vmatprep.subr.mxu0 0.0
    %v2117 = vand.u32 %v71, 4294901760
    %2118 = vmatpush1.msra.mxu0 %v2117
    %2119 = vmatprep.subr.mxu0 0.0
    %v2120 = vand.u32 %v72, 4294901760
    %2121 = vmatpush1.msra.mxu0 %v2120
    %2122 = vmatprep.subr.mxu0 0.0
    %v2123 = vand.u32 %v73, 4294901760
    %2124 = vmatpush1.msra.mxu0 %v2123
    %2125 = vmatprep.subr.mxu0 0.0
    %v2126 = vand.u32 %v74, 4294901760
    %2127 = vmatpush1.msra.mxu0 %v2126
    %2128 = vmatprep.subr.mxu0 0.0
    %v2129 = vand.u32 %v75, 4294901760
    %2130 = vmatpush1.msra.mxu0 %v2129
    %2131 = vmatprep.subr.mxu0 0.0
    %v2132 = vand.u32 %v76, 4294901760
    %2133 = vmatpush1.msra.mxu0 %v2132
    %2134 = vmatprep.subr.mxu0 0.0
    %v2135 = vand.u32 %v77, 4294901760
    %2136 = vmatpush1.msra.mxu0 %v2135
    %2137 = vmatprep.subr.mxu0 0.0
    %v2138 = vand.u32 %v78, 4294901760
    %2139 = vmatpush1.msra.mxu0 %v2138
    %2140 = vmatprep.subr.mxu0 0.0
    %v2141 = vand.u32 %v79, 4294901760
    %2142 = vmatpush1.msra.mxu0 %v2141
    %2143 = vmatprep.subr.mxu0 0.0
    %v2144 = vand.u32 %v80, 4294901760
    %2145 = vmatpush1.msra.mxu0 %v2144
    %2146 = vmatprep.subr.mxu0 0.0
    %v2147 = vand.u32 %v81, 4294901760
    %2148 = vmatpush1.msra.mxu0 %v2147
    %2149 = vmatprep.subr.mxu0 0.0
    %v2150 = vand.u32 %v82, 4294901760
    %2151 = vmatpush1.msra.mxu0 %v2150
    %2152 = vmatprep.subr.mxu0 0.0
    %v2153 = vand.u32 %v83, 4294901760
    %2154 = vmatpush1.msra.mxu0 %v2153
    %2155 = vmatprep.subr.mxu0 0.0
    %v2156 = vand.u32 %v84, 4294901760
    %2157 = vmatpush1.msra.mxu0 %v2156
    %2158 = vmatprep.subr.mxu0 0.0
    %2159 = vmatpush1.msra.mxu0 0.0
    %2160 = vmatprep.subr.mxu0 0.0
    %2161 = vmatpush1.msra.mxu0 0.0
    %2162 = vmatprep.subr.mxu0 0.0
    %2163 = vmatpush1.msra.mxu0 0.0
    %2164 = vmatprep.subr.mxu0 0.0
    %2165 = vmatpush1.msra.mxu0 0.0
    %2166 = vmatprep.subr.mxu0 0.0
    %2167 = vmatpush1.msra.mxu0 0.0
    %2168 = vmatprep.subr.mxu0 0.0
    %2169 = vmatpush1.msra.mxu0 0.0
    %2170 = vmatprep.subr.mxu0 0.0
    %2171 = vmatpush1.msra.mxu0 0.0
    %2172 = vmatprep.subr.mxu0 0.0
    %2173 = vmatpush1.msra.mxu0 0.0
    %2174 = vmatprep.subr.mxu0 0.0
    %2175 = vmatpush1.msra.mxu0 0.0
    %2176 = vmatprep.subr.mxu0 0.0
    %2177 = vmatpush1.msra.mxu0 0.0
    %2178 = vmatprep.subr.mxu0 0.0
    %2179 = vmatpush1.msra.mxu0 0.0
    %2180 = vmatprep.subr.mxu0 0.0
    %2181 = vmatpush1.msra.mxu0 0.0
    %2182 = vmatprep.subr.mxu0 0.0
    %2183 = vmatpush1.msra.mxu0 0.0
    %2184 = vmatprep.subr.mxu0 0.0
    %2185 = vmatpush1.msra.mxu0 0.0
    %2186 = vmatprep.subr.mxu0 0.0
    %2187 = vmatpush1.msra.mxu0 0.0
    %2188 = vmatprep.subr.mxu0 0.0
    %2189 = vmatpush1.msra.mxu0 0.0
    %2190 = vmatprep.mubr.f32.mxu0 0.0
    %v2191 = vand.u32 %v1554, 4294901760
    %2192 = vmatmul.mubr.f32.gmra.mrb[0].mxu0 %v2191
    %v2193 = vpop.f32.mrb[0].mxu0
    %v2194 = vadd.f32 %v2107, %v2193
    %v2195 = vpop.f32.mrb[0].mxu0
    %2196 = vdwg.mxu0
    %v2197 = vadd.f32 %v872, %v2194
    %v2198 = vtanh.pop %v2197
    %2199 = vst [vmem:[#allocation8 + $0x8] sm:$0xff] %v2198
    %2200 = vmatprep.subr.mxu0 0.0
    %v2201 = vand.u32 %v69, 4294901760
    %2202 = vmatpush1.msra.mxu0 %v2201
    %2203 = vmatprep.subr.mxu0 0.0
    %v2204 = vand.u32 %v70, 4294901760
    %2205 = vmatpush1.msra.mxu0 %v2204
    %2206 = vmatprep.subr.mxu0 0.0
    %v2207 = vand.u32 %v71, 4294901760
    %2208 = vmatpush1.msra.mxu0 %v2207
    %2209 = vmatprep.subr.mxu0 0.0
    %v2210 = vand.u32 %v72, 4294901760
    %2211 = vmatpush1.msra.mxu0 %v2210
    %2212 = vmatprep.subr.mxu0 0.0
    %v2213 = vand.u32 %v73, 4294901760
    %2214 = vmatpush1.msra.mxu0 %v2213
    %2215 = vmatprep.subr.mxu0 0.0
    %v2216 = vand.u32 %v74, 4294901760
    %2217 = vmatpush1.msra.mxu0 %v2216
    %2218 = vmatprep.subr.mxu0 0.0
    %v2219 = vand.u32 %v75, 4294901760
    %2220 = vmatpush1.msra.mxu0 %v2219
    %2221 = vmatprep.subr.mxu0 0.0
    %v2222 = vand.u32 %v76, 4294901760
    %2223 = vmatpush1.msra.mxu0 %v2222
    %2224 = vmatprep.subr.mxu0 0.0
    %v2225 = vand.u32 %v77, 4294901760
    %2226 = vmatpush1.msra.mxu0 %v2225
    %2227 = vmatprep.subr.mxu0 0.0
    %v2228 = vand.u32 %v78, 4294901760
    %2229 = vmatpush1.msra.mxu0 %v2228
    %2230 = vmatprep.subr.mxu0 0.0
    %v2231 = vand.u32 %v79, 4294901760
    %2232 = vmatpush1.msra.mxu0 %v2231
    %2233 = vmatprep.subr.mxu0 0.0
    %v2234 = vand.u32 %v80, 4294901760
    %2235 = vmatpush1.msra.mxu0 %v2234
    %2236 = vmatprep.subr.mxu0 0.0
    %v2237 = vand.u32 %v81, 4294901760
    %2238 = vmatpush1.msra.mxu0 %v2237
    %2239 = vmatprep.subr.mxu0 0.0
    %v2240 = vand.u32 %v82, 4294901760
    %2241 = vmatpush1.msra.mxu0 %v2240
    %2242 = vmatprep.subr.mxu0 0.0
    %v2243 = vand.u32 %v83, 4294901760
    %2244 = vmatpush1.msra.mxu0 %v2243
    %2245 = vmatprep.subr.mxu0 0.0
    %v2246 = vand.u32 %v84, 4294901760
    %2247 = vmatpush1.msra.mxu0 %v2246
    %2248 = vmatprep.subr.mxu0 0.0
    %2249 = vmatpush1.msra.mxu0 0.0
    %2250 = vmatprep.subr.mxu0 0.0
    %2251 = vmatpush1.msra.mxu0 0.0
    %2252 = vmatprep.subr.mxu0 0.0
    %2253 = vmatpush1.msra.mxu0 0.0
    %2254 = vmatprep.subr.mxu0 0.0
    %2255 = vmatpush1.msra.mxu0 0.0
    %2256 = vmatprep.subr.mxu0 0.0
    %2257 = vmatpush1.msra.mxu0 0.0
    %2258 = vmatprep.subr.mxu0 0.0
    %2259 = vmatpush1.msra.mxu0 0.0
    %2260 = vmatprep.subr.mxu0 0.0
    %2261 = vmatpush1.msra.mxu0 0.0
    %2262 = vmatprep.subr.mxu0 0.0
    %2263 = vmatpush1.msra.mxu0 0.0
    %2264 = vmatprep.subr.mxu0 0.0
    %2265 = vmatpush1.msra.mxu0 0.0
    %2266 = vmatprep.subr.mxu0 0.0
    %2267 = vmatpush1.msra.mxu0 0.0
    %2268 = vmatprep.subr.mxu0 0.0
    %2269 = vmatpush1.msra.mxu0 0.0
    %2270 = vmatprep.subr.mxu0 0.0
    %2271 = vmatpush1.msra.mxu0 0.0
    %2272 = vmatprep.subr.mxu0 0.0
    %2273 = vmatpush1.msra.mxu0 0.0
    %2274 = vmatprep.subr.mxu0 0.0
    %2275 = vmatpush1.msra.mxu0 0.0
    %2276 = vmatprep.subr.mxu0 0.0
    %2277 = vmatpush1.msra.mxu0 0.0
    %2278 = vmatprep.subr.mxu0 0.0
    %2279 = vmatpush1.msra.mxu0 0.0
    %2280 = vmatprep.mubr.f32.mxu0 0.0
    %v2281 = vand.u32 %v2198, 4294901760
    %v2282 = vsub.f32 %v2198, %v2281
    %v2283 = vand.u32 %v2282, 4294901760
    %v2284 = vsub.f32 %v2282, %v2283
    %v2285 = vand.u32 %v2284, 4294901760
    %2286 = vmatmul.mubr.f32.gmra.mrb[0].mxu0 %v2285
    %v2287 = vpop.f32.mrb[0].mxu0
    %v2288 = vadd.f32 0.0, %v2287
    %v2289 = vpop.f32.mrb[0].mxu0
    %2290 = vdwg.mxu0
    %2291 = vmatprep.subr.mxu0 0.0
    %v2292 = vand.u32 %v69, 4294901760
    %v2293 = vsub.f32 %v69, %v2292
    %v2294 = vand.u32 %v2293, 4294901760
    %v2295 = vsub.f32 %v2293, %v2294
    %v2296 = vand.u32 %v2295, 4294901760
    %2297 = vmatpush1.msra.mxu0 %v2296
    %2298 = vmatprep.subr.mxu0 0.0
    %v2299 = vand.u32 %v70, 4294901760
    %v2300 = vsub.f32 %v70, %v2299
    %v2301 = vand.u32 %v2300, 4294901760
    %v2302 = vsub.f32 %v2300, %v2301
    %v2303 = vand.u32 %v2302, 4294901760
    %2304 = vmatpush1.msra.mxu0 %v2303
    %2305 = vmatprep.subr.mxu0 0.0
    %v2306 = vand.u32 %v71, 4294901760
    %v2307 = vsub.f32 %v71, %v2306
    %v2308 = vand.u32 %v2307, 4294901760
    %v2309 = vsub.f32 %v2307, %v2308
    %v2310 = vand.u32 %v2309, 4294901760
    %2311 = vmatpush1.msra.mxu0 %v2310
    %2312 = vmatprep.subr.mxu0 0.0
    %v2313 = vand.u32 %v72, 4294901760
    %v2314 = vsub.f32 %v72, %v2313
    %v2315 = vand.u32 %v2314, 4294901760
    %v2316 = vsub.f32 %v2314, %v2315
    %v2317 = vand.u32 %v2316, 4294901760
    %2318 = vmatpush1.msra.mxu0 %v2317
    %2319 = vmatprep.subr.mxu0 0.0
    %v2320 = vand.u32 %v73, 4294901760
    %v2321 = vsub.f32 %v73, %v2320
    %v2322 = vand.u32 %v2321, 4294901760
    %v2323 = vsub.f32 %v2321, %v2322
    %v2324 = vand.u32 %v2323, 4294901760
    %2325 = vmatpush1.msra.mxu0 %v2324
    %2326 = vmatprep.subr.mxu0 0.0
    %v2327 = vand.u32 %v74, 4294901760
    %v2328 = vsub.f32 %v74, %v2327
    %v2329 = vand.u32 %v2328, 4294901760
    %v2330 = vsub.f32 %v2328, %v2329
    %v2331 = vand.u32 %v2330, 4294901760
    %2332 = vmatpush1.msra.mxu0 %v2331
    %2333 = vmatprep.subr.mxu0 0.0
    %v2334 = vand.u32 %v75, 4294901760
    %v2335 = vsub.f32 %v75, %v2334
    %v2336 = vand.u32 %v2335, 4294901760
    %v2337 = vsub.f32 %v2335, %v2336
    %v2338 = vand.u32 %v2337, 4294901760
    %2339 = vmatpush1.msra.mxu0 %v2338
    %2340 = vmatprep.subr.mxu0 0.0
    %v2341 = vand.u32 %v76, 4294901760
    %v2342 = vsub.f32 %v76, %v2341
    %v2343 = vand.u32 %v2342, 4294901760
    %v2344 = vsub.f32 %v2342, %v2343
    %v2345 = vand.u32 %v2344, 4294901760
    %2346 = vmatpush1.msra.mxu0 %v2345
    %2347 = vmatprep.subr.mxu0 0.0
    %v2348 = vand.u32 %v77, 4294901760
    %v2349 = vsub.f32 %v77, %v2348
    %v2350 = vand.u32 %v2349, 4294901760
    %v2351 = vsub.f32 %v2349, %v2350
    %v2352 = vand.u32 %v2351, 4294901760
    %2353 = vmatpush1.msra.mxu0 %v2352
    %2354 = vmatprep.subr.mxu0 0.0
    %v2355 = vand.u32 %v78, 4294901760
    %v2356 = vsub.f32 %v78, %v2355
    %v2357 = vand.u32 %v2356, 4294901760
    %v2358 = vsub.f32 %v2356, %v2357
    %v2359 = vand.u32 %v2358, 4294901760
    %2360 = vmatpush1.msra.mxu0 %v2359
    %2361 = vmatprep.subr.mxu0 0.0
    %v2362 = vand.u32 %v79, 4294901760
    %v2363 = vsub.f32 %v79, %v2362
    %v2364 = vand.u32 %v2363, 4294901760
    %v2365 = vsub.f32 %v2363, %v2364
    %v2366 = vand.u32 %v2365, 4294901760
    %2367 = vmatpush1.msra.mxu0 %v2366
    %2368 = vmatprep.subr.mxu0 0.0
    %v2369 = vand.u32 %v80, 4294901760
    %v2370 = vsub.f32 %v80, %v2369
    %v2371 = vand.u32 %v2370, 4294901760
    %v2372 = vsub.f32 %v2370, %v2371
    %v2373 = vand.u32 %v2372, 4294901760
    %2374 = vmatpush1.msra.mxu0 %v2373
    %2375 = vmatprep.subr.mxu0 0.0
    %v2376 = vand.u32 %v81, 4294901760
    %v2377 = vsub.f32 %v81, %v2376
    %v2378 = vand.u32 %v2377, 4294901760
    %v2379 = vsub.f32 %v2377, %v2378
    %v2380 = vand.u32 %v2379, 4294901760
    %2381 = vmatpush1.msra.mxu0 %v2380
    %2382 = vmatprep.subr.mxu0 0.0
    %v2383 = vand.u32 %v82, 4294901760
    %v2384 = vsub.f32 %v82, %v2383
    %v2385 = vand.u32 %v2384, 4294901760
    %v2386 = vsub.f32 %v2384, %v2385
    %v2387 = vand.u32 %v2386, 4294901760
    %2388 = vmatpush1.msra.mxu0 %v2387
    %2389 = vmatprep.subr.mxu0 0.0
    %v2390 = vand.u32 %v83, 4294901760
    %v2391 = vsub.f32 %v83, %v2390
    %v2392 = vand.u32 %v2391, 4294901760
    %v2393 = vsub.f32 %v2391, %v2392
    %v2394 = vand.u32 %v2393, 4294901760
    %2395 = vmatpush1.msra.mxu0 %v2394
    %2396 = vmatprep.subr.mxu0 0.0
    %v2397 = vand.u32 %v84, 4294901760
    %v2398 = vsub.f32 %v84, %v2397
    %v2399 = vand.u32 %v2398, 4294901760
    %v2400 = vsub.f32 %v2398, %v2399
    %v2401 = vand.u32 %v2400, 4294901760
    %2402 = vmatpush1.msra.mxu0 %v2401
    %2403 = vmatprep.subr.mxu0 0.0
    %2404 = vmatpush1.msra.mxu0 0.0
    %2405 = vmatprep.subr.mxu0 0.0
    %2406 = vmatpush1.msra.mxu0 0.0
    %2407 = vmatprep.subr.mxu0 0.0
    %2408 = vmatpush1.msra.mxu0 0.0
    %2409 = vmatprep.subr.mxu0 0.0
    %2410 = vmatpush1.msra.mxu0 0.0
    %2411 = vmatprep.subr.mxu0 0.0
    %2412 = vmatpush1.msra.mxu0 0.0
    %2413 = vmatprep.subr.mxu0 0.0
    %2414 = vmatpush1.msra.mxu0 0.0
    %2415 = vmatprep.subr.mxu0 0.0
    %2416 = vmatpush1.msra.mxu0 0.0
    %2417 = vmatprep.subr.mxu0 0.0
    %2418 = vmatpush1.msra.mxu0 0.0
    %2419 = vmatprep.subr.mxu0 0.0
    %2420 = vmatpush1.msra.mxu0 0.0
    %2421 = vmatprep.subr.mxu0 0.0
    %2422 = vmatpush1.msra.mxu0 0.0
    %2423 = vmatprep.subr.mxu0 0.0
    %2424 = vmatpush1.msra.mxu0 0.0
    %2425 = vmatprep.subr.mxu0 0.0
    %2426 = vmatpush1.msra.mxu0 0.0
    %2427 = vmatprep.subr.mxu0 0.0
    %2428 = vmatpush1.msra.mxu0 0.0
    %2429 = vmatprep.subr.mxu0 0.0
    %2430 = vmatpush1.msra.mxu0 0.0
    %2431 = vmatprep.subr.mxu0 0.0
    %2432 = vmatpush1.msra.mxu0 0.0
    %2433 = vmatprep.subr.mxu0 0.0
    %2434 = vmatpush1.msra.mxu0 0.0
    %2435 = vmatprep.mubr.f32.mxu0 0.0
    %v2436 = vand.u32 %v2198, 4294901760
    %2437 = vmatmul.mubr.f32.gmra.mrb[0].mxu0 %v2436
    %v2438 = vpop.f32.mrb[0].mxu0
    %v2439 = vadd.f32 %v2288, %v2438
    %v2440 = vpop.f32.mrb[0].mxu0
    %2441 = vdwg.mxu0
    %2442 = vmatprep.subr.mxu0 0.0
    %v2443 = vand.u32 %v69, 4294901760
    %v2444 = vsub.f32 %v69, %v2443
    %2445 = vmatpush1.msra.mxu0 %v2444
    %2446 = vmatprep.subr.mxu0 0.0
    %v2447 = vand.u32 %v70, 4294901760
    %v2448 = vsub.f32 %v70, %v2447
    %2449 = vmatpush1.msra.mxu0 %v2448
    %2450 = vmatprep.subr.mxu0 0.0
    %v2451 = vand.u32 %v71, 4294901760
    %v2452 = vsub.f32 %v71, %v2451
    %2453 = vmatpush1.msra.mxu0 %v2452
    %2454 = vmatprep.subr.mxu0 0.0
    %v2455 = vand.u32 %v72, 4294901760
    %v2456 = vsub.f32 %v72, %v2455
    %2457 = vmatpush1.msra.mxu0 %v2456
    %2458 = vmatprep.subr.mxu0 0.0
    %v2459 = vand.u32 %v73, 4294901760
    %v2460 = vsub.f32 %v73, %v2459
    %2461 = vmatpush1.msra.mxu0 %v2460
    %2462 = vmatprep.subr.mxu0 0.0
    %v2463 = vand.u32 %v74, 4294901760
    %v2464 = vsub.f32 %v74, %v2463
    %2465 = vmatpush1.msra.mxu0 %v2464
    %2466 = vmatprep.subr.mxu0 0.0
    %v2467 = vand.u32 %v75, 4294901760
    %v2468 = vsub.f32 %v75, %v2467
    %2469 = vmatpush1.msra.mxu0 %v2468
    %2470 = vmatprep.subr.mxu0 0.0
    %v2471 = vand.u32 %v76, 4294901760
    %v2472 = vsub.f32 %v76, %v2471
    %2473 = vmatpush1.msra.mxu0 %v2472
    %2474 = vmatprep.subr.mxu0 0.0
    %v2475 = vand.u32 %v77, 4294901760
    %v2476 = vsub.f32 %v77, %v2475
    %2477 = vmatpush1.msra.mxu0 %v2476
    %2478 = vmatprep.subr.mxu0 0.0
    %v2479 = vand.u32 %v78, 4294901760
    %v2480 = vsub.f32 %v78, %v2479
    %2481 = vmatpush1.msra.mxu0 %v2480
    %2482 = vmatprep.subr.mxu0 0.0
    %v2483 = vand.u32 %v79, 4294901760
    %v2484 = vsub.f32 %v79, %v2483
    %2485 = vmatpush1.msra.mxu0 %v2484
    %2486 = vmatprep.subr.mxu0 0.0
    %v2487 = vand.u32 %v80, 4294901760
    %v2488 = vsub.f32 %v80, %v2487
    %2489 = vmatpush1.msra.mxu0 %v2488
    %2490 = vmatprep.subr.mxu0 0.0
    %v2491 = vand.u32 %v81, 4294901760
    %v2492 = vsub.f32 %v81, %v2491
    %2493 = vmatpush1.msra.mxu0 %v2492
    %2494 = vmatprep.subr.mxu0 0.0
    %v2495 = vand.u32 %v82, 4294901760
    %v2496 = vsub.f32 %v82, %v2495
    %2497 = vmatpush1.msra.mxu0 %v2496
    %2498 = vmatprep.subr.mxu0 0.0
    %v2499 = vand.u32 %v83, 4294901760
    %v2500 = vsub.f32 %v83, %v2499
    %2501 = vmatpush1.msra.mxu0 %v2500
    %2502 = vmatprep.subr.mxu0 0.0
    %v2503 = vand.u32 %v84, 4294901760
    %v2504 = vsub.f32 %v84, %v2503
    %2505 = vmatpush1.msra.mxu0 %v2504
    %2506 = vmatprep.subr.mxu0 0.0
    %2507 = vmatpush1.msra.mxu0 0.0
    %2508 = vmatprep.subr.mxu0 0.0
    %2509 = vmatpush1.msra.mxu0 0.0
    %2510 = vmatprep.subr.mxu0 0.0
    %2511 = vmatpush1.msra.mxu0 0.0
    %2512 = vmatprep.subr.mxu0 0.0
    %2513 = vmatpush1.msra.mxu0 0.0
    %2514 = vmatprep.subr.mxu0 0.0
    %2515 = vmatpush1.msra.mxu0 0.0
    %2516 = vmatprep.subr.mxu0 0.0
    %2517 = vmatpush1.msra.mxu0 0.0
    %2518 = vmatprep.subr.mxu0 0.0
    %2519 = vmatpush1.msra.mxu0 0.0
    %2520 = vmatprep.subr.mxu0 0.0
    %2521 = vmatpush1.msra.mxu0 0.0
    %2522 = vmatprep.subr.mxu0 0.0
    %2523 = vmatpush1.msra.mxu0 0.0
    %2524 = vmatprep.subr.mxu0 0.0
    %2525 = vmatpush1.msra.mxu0 0.0
    %2526 = vmatprep.subr.mxu0 0.0
    %2527 = vmatpush1.msra.mxu0 0.0
    %2528 = vmatprep.subr.mxu0 0.0
    %2529 = vmatpush1.msra.mxu0 0.0
    %2530 = vmatprep.subr.mxu0 0.0
    %2531 = vmatpush1.msra.mxu0 0.0
    %2532 = vmatprep.subr.mxu0 0.0
    %2533 = vmatpush1.msra.mxu0 0.0
    %2534 = vmatprep.subr.mxu0 0.0
    %2535 = vmatpush1.msra.mxu0 0.0
    %2536 = vmatprep.subr.mxu0 0.0
    %2537 = vmatpush1.msra.mxu0 0.0
    %2538 = vmatprep.mubr.f32.mxu0 0.0
    %v2539 = vand.u32 %v2198, 4294901760
    %v2540 = vsub.f32 %v2198, %v2539
    %2541 = vmatmul.mubr.f32.gmra.mrb[0].mxu0 %v2540
    %v2542 = vpop.f32.mrb[0].mxu0
    %v2543 = vadd.f32 %v2439, %v2542
    %v2544 = vpop.f32.mrb[0].mxu0
    %2545 = vdwg.mxu0
    %2546 = vmatprep.subr.mxu0 0.0
    %v2547 = vand.u32 %v69, 4294901760
    %2548 = vmatpush1.msra.mxu0 %v2547
    %2549 = vmatprep.subr.mxu0 0.0
    %v2550 = vand.u32 %v70, 4294901760
    %2551 = vmatpush1.msra.mxu0 %v2550
    %2552 = vmatprep.subr.mxu0 0.0
    %v2553 = vand.u32 %v71, 4294901760
    %2554 = vmatpush1.msra.mxu0 %v2553
    %2555 = vmatprep.subr.mxu0 0.0
    %v2556 = vand.u32 %v72, 4294901760
    %2557 = vmatpush1.msra.mxu0 %v2556
    %2558 = vmatprep.subr.mxu0 0.0
    %v2559 = vand.u32 %v73, 4294901760
    %2560 = vmatpush1.msra.mxu0 %v2559
    %2561 = vmatprep.subr.mxu0 0.0
    %v2562 = vand.u32 %v74, 4294901760
    %2563 = vmatpush1.msra.mxu0 %v2562
    %2564 = vmatprep.subr.mxu0 0.0
    %v2565 = vand.u32 %v75, 4294901760
    %2566 = vmatpush1.msra.mxu0 %v2565
    %2567 = vmatprep.subr.mxu0 0.0
    %v2568 = vand.u32 %v76, 4294901760
    %2569 = vmatpush1.msra.mxu0 %v2568
    %2570 = vmatprep.subr.mxu0 0.0
    %v2571 = vand.u32 %v77, 4294901760
    %2572 = vmatpush1.msra.mxu0 %v2571
    %2573 = vmatprep.subr.mxu0 0.0
    %v2574 = vand.u32 %v78, 4294901760
    %2575 = vmatpush1.msra.mxu0 %v2574
    %2576 = vmatprep.subr.mxu0 0.0
    %v2577 = vand.u32 %v79, 4294901760
    %2578 = vmatpush1.msra.mxu0 %v2577
    %2579 = vmatprep.subr.mxu0 0.0
    %v2580 = vand.u32 %v80, 4294901760
    %2581 = vmatpush1.msra.mxu0 %v2580
    %2582 = vmatprep.subr.mxu0 0.0
    %v2583 = vand.u32 %v81, 4294901760
    %2584 = vmatpush1.msra.mxu0 %v2583
    %2585 = vmatprep.subr.mxu0 0.0
    %v2586 = vand.u32 %v82, 4294901760
    %2587 = vmatpush1.msra.mxu0 %v2586
    %2588 = vmatprep.subr.mxu0 0.0
    %v2589 = vand.u32 %v83, 4294901760
    %2590 = vmatpush1.msra.mxu0 %v2589
    %2591 = vmatprep.subr.mxu0 0.0
    %v2592 = vand.u32 %v84, 4294901760
    %2593 = vmatpush1.msra.mxu0 %v2592
    %2594 = vmatprep.subr.mxu0 0.0
    %2595 = vmatpush1.msra.mxu0 0.0
    %2596 = vmatprep.subr.mxu0 0.0
    %2597 = vmatpush1.msra.mxu0 0.0
    %2598 = vmatprep.subr.mxu0 0.0
    %2599 = vmatpush1.msra.mxu0 0.0
    %2600 = vmatprep.subr.mxu0 0.0
    %2601 = vmatpush1.msra.mxu0 0.0
    %2602 = vmatprep.subr.mxu0 0.0
    %2603 = vmatpush1.msra.mxu0 0.0
    %2604 = vmatprep.subr.mxu0 0.0
    %2605 = vmatpush1.msra.mxu0 0.0
    %2606 = vmatprep.subr.mxu0 0.0
    %2607 = vmatpush1.msra.mxu0 0.0
    %2608 = vmatprep.subr.mxu0 0.0
    %2609 = vmatpush1.msra.mxu0 0.0
    %2610 = vmatprep.subr.mxu0 0.0
    %2611 = vmatpush1.msra.mxu0 0.0
    %2612 = vmatprep.subr.mxu0 0.0
    %2613 = vmatpush1.msra.mxu0 0.0
    %2614 = vmatprep.subr.mxu0 0.0
    %2615 = vmatpush1.msra.mxu0 0.0
    %2616 = vmatprep.subr.mxu0 0.0
    %2617 = vmatpush1.msra.mxu0 0.0
    %2618 = vmatprep.subr.mxu0 0.0
    %2619 = vmatpush1.msra.mxu0 0.0
    %2620 = vmatprep.subr.mxu0 0.0
    %2621 = vmatpush1.msra.mxu0 0.0
    %2622 = vmatprep.subr.mxu0 0.0
    %2623 = vmatpush1.msra.mxu0 0.0
    %2624 = vmatprep.subr.mxu0 0.0
    %2625 = vmatpush1.msra.mxu0 0.0
    %2626 = vmatprep.mubr.f32.mxu0 0.0
    %v2627 = vand.u32 %v2198, 4294901760
    %v2628 = vsub.f32 %v2198, %v2627
    %v2629 = vand.u32 %v2628, 4294901760
    %2630 = vmatmul.mubr.f32.gmra.mrb[0].mxu0 %v2629
    %v2631 = vpop.f32.mrb[0].mxu0
    %v2632 = vadd.f32 %v2543, %v2631
    %v2633 = vpop.f32.mrb[0].mxu0
    %2634 = vdwg.mxu0
    %2635 = vmatprep.subr.mxu0 0.0
    %v2636 = vand.u32 %v69, 4294901760
    %v2637 = vsub.f32 %v69, %v2636
    %v2638 = vand.u32 %v2637, 4294901760
    %2639 = vmatpush1.msra.mxu0 %v2638
    %2640 = vmatprep.subr.mxu0 0.0
    %v2641 = vand.u32 %v70, 4294901760
    %v2642 = vsub.f32 %v70, %v2641
    %v2643 = vand.u32 %v2642, 4294901760
    %2644 = vmatpush1.msra.mxu0 %v2643
    %2645 = vmatprep.subr.mxu0 0.0
    %v2646 = vand.u32 %v71, 4294901760
    %v2647 = vsub.f32 %v71, %v2646
    %v2648 = vand.u32 %v2647, 4294901760
    %2649 = vmatpush1.msra.mxu0 %v2648
    %2650 = vmatprep.subr.mxu0 0.0
    %v2651 = vand.u32 %v72, 4294901760
    %v2652 = vsub.f32 %v72, %v2651
    %v2653 = vand.u32 %v2652, 4294901760
    %2654 = vmatpush1.msra.mxu0 %v2653
    %2655 = vmatprep.subr.mxu0 0.0
    %v2656 = vand.u32 %v73, 4294901760
    %v2657 = vsub.f32 %v73, %v2656
    %v2658 = vand.u32 %v2657, 4294901760
    %2659 = vmatpush1.msra.mxu0 %v2658
    %2660 = vmatprep.subr.mxu0 0.0
    %v2661 = vand.u32 %v74, 4294901760
    %v2662 = vsub.f32 %v74, %v2661
    %v2663 = vand.u32 %v2662, 4294901760
    %2664 = vmatpush1.msra.mxu0 %v2663
    %2665 = vmatprep.subr.mxu0 0.0
    %v2666 = vand.u32 %v75, 4294901760
    %v2667 = vsub.f32 %v75, %v2666
    %v2668 = vand.u32 %v2667, 4294901760
    %2669 = vmatpush1.msra.mxu0 %v2668
    %2670 = vmatprep.subr.mxu0 0.0
    %v2671 = vand.u32 %v76, 4294901760
    %v2672 = vsub.f32 %v76, %v2671
    %v2673 = vand.u32 %v2672, 4294901760
    %2674 = vmatpush1.msra.mxu0 %v2673
    %2675 = vmatprep.subr.mxu0 0.0
    %v2676 = vand.u32 %v77, 4294901760
    %v2677 = vsub.f32 %v77, %v2676
    %v2678 = vand.u32 %v2677, 4294901760
    %2679 = vmatpush1.msra.mxu0 %v2678
    %2680 = vmatprep.subr.mxu0 0.0
    %v2681 = vand.u32 %v78, 4294901760
    %v2682 = vsub.f32 %v78, %v2681
    %v2683 = vand.u32 %v2682, 4294901760
    %2684 = vmatpush1.msra.mxu0 %v2683
    %2685 = vmatprep.subr.mxu0 0.0
    %v2686 = vand.u32 %v79, 4294901760
    %v2687 = vsub.f32 %v79, %v2686
    %v2688 = vand.u32 %v2687, 4294901760
    %2689 = vmatpush1.msra.mxu0 %v2688
    %2690 = vmatprep.subr.mxu0 0.0
    %v2691 = vand.u32 %v80, 4294901760
    %v2692 = vsub.f32 %v80, %v2691
    %v2693 = vand.u32 %v2692, 4294901760
    %2694 = vmatpush1.msra.mxu0 %v2693
    %2695 = vmatprep.subr.mxu0 0.0
    %v2696 = vand.u32 %v81, 4294901760
    %v2697 = vsub.f32 %v81, %v2696
    %v2698 = vand.u32 %v2697, 4294901760
    %2699 = vmatpush1.msra.mxu0 %v2698
    %2700 = vmatprep.subr.mxu0 0.0
    %v2701 = vand.u32 %v82, 4294901760
    %v2702 = vsub.f32 %v82, %v2701
    %v2703 = vand.u32 %v2702, 4294901760
    %2704 = vmatpush1.msra.mxu0 %v2703
    %2705 = vmatprep.subr.mxu0 0.0
    %v2706 = vand.u32 %v83, 4294901760
    %v2707 = vsub.f32 %v83, %v2706
    %v2708 = vand.u32 %v2707, 4294901760
    %2709 = vmatpush1.msra.mxu0 %v2708
    %2710 = vmatprep.subr.mxu0 0.0
    %v2711 = vand.u32 %v84, 4294901760
    %v2712 = vsub.f32 %v84, %v2711
    %v2713 = vand.u32 %v2712, 4294901760
    %2714 = vmatpush1.msra.mxu0 %v2713
    %2715 = vmatprep.subr.mxu0 0.0
    %2716 = vmatpush1.msra.mxu0 0.0
    %2717 = vmatprep.subr.mxu0 0.0
    %2718 = vmatpush1.msra.mxu0 0.0
    %2719 = vmatprep.subr.mxu0 0.0
    %2720 = vmatpush1.msra.mxu0 0.0
    %2721 = vmatprep.subr.mxu0 0.0
    %2722 = vmatpush1.msra.mxu0 0.0
    %2723 = vmatprep.subr.mxu0 0.0
    %2724 = vmatpush1.msra.mxu0 0.0
    %2725 = vmatprep.subr.mxu0 0.0
    %2726 = vmatpush1.msra.mxu0 0.0
    %2727 = vmatprep.subr.mxu0 0.0
    %2728 = vmatpush1.msra.mxu0 0.0
    %2729 = vmatprep.subr.mxu0 0.0
    %2730 = vmatpush1.msra.mxu0 0.0
    %2731 = vmatprep.subr.mxu0 0.0
    %2732 = vmatpush1.msra.mxu0 0.0
    %2733 = vmatprep.subr.mxu0 0.0
    %2734 = vmatpush1.msra.mxu0 0.0
    %2735 = vmatprep.subr.mxu0 0.0
    %2736 = vmatpush1.msra.mxu0 0.0
    %2737 = vmatprep.subr.mxu0 0.0
    %2738 = vmatpush1.msra.mxu0 0.0
    %2739 = vmatprep.subr.mxu0 0.0
    %2740 = vmatpush1.msra.mxu0 0.0
    %2741 = vmatprep.subr.mxu0 0.0
    %2742 = vmatpush1.msra.mxu0 0.0
    %2743 = vmatprep.subr.mxu0 0.0
    %2744 = vmatpush1.msra.mxu0 0.0
    %2745 = vmatprep.subr.mxu0 0.0
    %2746 = vmatpush1.msra.mxu0 0.0
    %2747 = vmatprep.mubr.f32.mxu0 0.0
    %v2748 = vand.u32 %v2198, 4294901760
    %2749 = vmatmul.mubr.f32.gmra.mrb[0].mxu0 %v2748
    %v2750 = vpop.f32.mrb[0].mxu0
    %v2751 = vadd.f32 %v2632, %v2750
    %v2752 = vpop.f32.mrb[0].mxu0
    %2753 = vdwg.mxu0
    %2754 = vmatprep.subr.mxu0 0.0
    %v2755 = vand.u32 %v69, 4294901760
    %2756 = vmatpush1.msra.mxu0 %v2755
    %2757 = vmatprep.subr.mxu0 0.0
    %v2758 = vand.u32 %v70, 4294901760
    %2759 = vmatpush1.msra.mxu0 %v2758
    %2760 = vmatprep.subr.mxu0 0.0
    %v2761 = vand.u32 %v71, 4294901760
    %2762 = vmatpush1.msra.mxu0 %v2761
    %2763 = vmatprep.subr.mxu0 0.0
    %v2764 = vand.u32 %v72, 4294901760
    %2765 = vmatpush1.msra.mxu0 %v2764
    %2766 = vmatprep.subr.mxu0 0.0
    %v2767 = vand.u32 %v73, 4294901760
    %2768 = vmatpush1.msra.mxu0 %v2767
    %2769 = vmatprep.subr.mxu0 0.0
    %v2770 = vand.u32 %v74, 4294901760
    %2771 = vmatpush1.msra.mxu0 %v2770
    %2772 = vmatprep.subr.mxu0 0.0
    %v2773 = vand.u32 %v75, 4294901760
    %2774 = vmatpush1.msra.mxu0 %v2773
    %2775 = vmatprep.subr.mxu0 0.0
    %v2776 = vand.u32 %v76, 4294901760
    %2777 = vmatpush1.msra.mxu0 %v2776
    %2778 = vmatprep.subr.mxu0 0.0
    %v2779 = vand.u32 %v77, 4294901760
    %2780 = vmatpush1.msra.mxu0 %v2779
    %2781 = vmatprep.subr.mxu0 0.0
    %v2782 = vand.u32 %v78, 4294901760
    %2783 = vmatpush1.msra.mxu0 %v2782
    %2784 = vmatprep.subr.mxu0 0.0
    %v2785 = vand.u32 %v79, 4294901760
    %2786 = vmatpush1.msra.mxu0 %v2785
    %2787 = vmatprep.subr.mxu0 0.0
    %v2788 = vand.u32 %v80, 4294901760
    %2789 = vmatpush1.msra.mxu0 %v2788
    %2790 = vmatprep.subr.mxu0 0.0
    %v2791 = vand.u32 %v81, 4294901760
    %2792 = vmatpush1.msra.mxu0 %v2791
    %2793 = vmatprep.subr.mxu0 0.0
    %v2794 = vand.u32 %v82, 4294901760
    %2795 = vmatpush1.msra.mxu0 %v2794
    %2796 = vmatprep.subr.mxu0 0.0
    %v2797 = vand.u32 %v83, 4294901760
    %2798 = vmatpush1.msra.mxu0 %v2797
    %2799 = vmatprep.subr.mxu0 0.0
    %v2800 = vand.u32 %v84, 4294901760
    %2801 = vmatpush1.msra.mxu0 %v2800
    %2802 = vmatprep.subr.mxu0 0.0
    %2803 = vmatpush1.msra.mxu0 0.0
    %2804 = vmatprep.subr.mxu0 0.0
    %2805 = vmatpush1.msra.mxu0 0.0
    %2806 = vmatprep.subr.mxu0 0.0
    %2807 = vmatpush1.msra.mxu0 0.0
    %2808 = vmatprep.subr.mxu0 0.0
    %2809 = vmatpush1.msra.mxu0 0.0
    %2810 = vmatprep.subr.mxu0 0.0
    %2811 = vmatpush1.msra.mxu0 0.0
    %2812 = vmatprep.subr.mxu0 0.0
    %2813 = vmatpush1.msra.mxu0 0.0
    %2814 = vmatprep.subr.mxu0 0.0
    %2815 = vmatpush1.msra.mxu0 0.0
    %2816 = vmatprep.subr.mxu0 0.0
    %2817 = vmatpush1.msra.mxu0 0.0
    %2818 = vmatprep.subr.mxu0 0.0
    %2819 = vmatpush1.msra.mxu0 0.0
    %2820 = vmatprep.subr.mxu0 0.0
    %2821 = vmatpush1.msra.mxu0 0.0
    %2822 = vmatprep.subr.mxu0 0.0
    %2823 = vmatpush1.msra.mxu0 0.0
    %2824 = vmatprep.subr.mxu0 0.0
    %2825 = vmatpush1.msra.mxu0 0.0
    %2826 = vmatprep.subr.mxu0 0.0
    %2827 = vmatpush1.msra.mxu0 0.0
    %2828 = vmatprep.subr.mxu0 0.0
    %2829 = vmatpush1.msra.mxu0 0.0
    %2830 = vmatprep.subr.mxu0 0.0
    %2831 = vmatpush1.msra.mxu0 0.0
    %2832 = vmatprep.subr.mxu0 0.0
    %2833 = vmatpush1.msra.mxu0 0.0
    %2834 = vmatprep.mubr.f32.mxu0 0.0
    %v2835 = vand.u32 %v2198, 4294901760
    %2836 = vmatmul.mubr.f32.gmra.mrb[0].mxu0 %v2835
    %v2837 = vpop.f32.mrb[0].mxu0
    %v2838 = vadd.f32 %v2751, %v2837
    %v2839 = vpop.f32.mrb[0].mxu0
    %2840 = vdwg.mxu0
    %v2841 = vadd.f32 %v878, %v2838
    %v2842 = vtanh.pop %v2841
    %2843 = vst [vmem:[#allocation8 + $0x10] sm:$0xff] %v2842
    %2844 = vmatprep.subr.mxu0 0.0
    %v2845 = vand.u32 %v69, 4294901760
    %2846 = vmatpush1.msra.mxu0 %v2845
    %2847 = vmatprep.subr.mxu0 0.0
    %v2848 = vand.u32 %v70, 4294901760
    %2849 = vmatpush1.msra.mxu0 %v2848
    %2850 = vmatprep.subr.mxu0 0.0
    %v2851 = vand.u32 %v71, 4294901760
    %2852 = vmatpush1.msra.mxu0 %v2851
    %2853 = vmatprep.subr.mxu0 0.0
    %v2854 = vand.u32 %v72, 4294901760
    %2855 = vmatpush1.msra.mxu0 %v2854
    %2856 = vmatprep.subr.mxu0 0.0
    %v2857 = vand.u32 %v73, 4294901760
    %2858 = vmatpush1.msra.mxu0 %v2857
    %2859 = vmatprep.subr.mxu0 0.0
    %v2860 = vand.u32 %v74, 4294901760
    %2861 = vmatpush1.msra.mxu0 %v2860
    %2862 = vmatprep.subr.mxu0 0.0
    %v2863 = vand.u32 %v75, 4294901760
    %2864 = vmatpush1.msra.mxu0 %v2863
    %2865 = vmatprep.subr.mxu0 0.0
    %v2866 = vand.u32 %v76, 4294901760
    %2867 = vmatpush1.msra.mxu0 %v2866
    %2868 = vmatprep.subr.mxu0 0.0
    %v2869 = vand.u32 %v77, 4294901760
    %2870 = vmatpush1.msra.mxu0 %v2869
    %2871 = vmatprep.subr.mxu0 0.0
    %v2872 = vand.u32 %v78, 4294901760
    %2873 = vmatpush1.msra.mxu0 %v2872
    %2874 = vmatprep.subr.mxu0 0.0
    %v2875 = vand.u32 %v79, 4294901760
    %2876 = vmatpush1.msra.mxu0 %v2875
    %2877 = vmatprep.subr.mxu0 0.0
    %v2878 = vand.u32 %v80, 4294901760
    %2879 = vmatpush1.msra.mxu0 %v2878
    %2880 = vmatprep.subr.mxu0 0.0
    %v2881 = vand.u32 %v81, 4294901760
    %2882 = vmatpush1.msra.mxu0 %v2881
    %2883 = vmatprep.subr.mxu0 0.0
    %v2884 = vand.u32 %v82, 4294901760
    %2885 = vmatpush1.msra.mxu0 %v2884
    %2886 = vmatprep.subr.mxu0 0.0
    %v2887 = vand.u32 %v83, 4294901760
    %2888 = vmatpush1.msra.mxu0 %v2887
    %2889 = vmatprep.subr.mxu0 0.0
    %v2890 = vand.u32 %v84, 4294901760
    %2891 = vmatpush1.msra.mxu0 %v2890
    %2892 = vmatprep.subr.mxu0 0.0
    %2893 = vmatpush1.msra.mxu0 0.0
    %2894 = vmatprep.subr.mxu0 0.0
    %2895 = vmatpush1.msra.mxu0 0.0
    %2896 = vmatprep.subr.mxu0 0.0
    %2897 = vmatpush1.msra.mxu0 0.0
    %2898 = vmatprep.subr.mxu0 0.0
    %2899 = vmatpush1.msra.mxu0 0.0
    %2900 = vmatprep.subr.mxu0 0.0
    %2901 = vmatpush1.msra.mxu0 0.0
    %2902 = vmatprep.subr.mxu0 0.0
    %2903 = vmatpush1.msra.mxu0 0.0
    %2904 = vmatprep.subr.mxu0 0.0
    %2905 = vmatpush1.msra.mxu0 0.0
    %2906 = vmatprep.subr.mxu0 0.0
    %2907 = vmatpush1.msra.mxu0 0.0
    %2908 = vmatprep.subr.mxu0 0.0
    %2909 = vmatpush1.msra.mxu0 0.0
    %2910 = vmatprep.subr.mxu0 0.0
    %2911 = vmatpush1.msra.mxu0 0.0
    %2912 = vmatprep.subr.mxu0 0.0
    %2913 = vmatpush1.msra.mxu0 0.0
    %2914 = vmatprep.subr.mxu0 0.0
    %2915 = vmatpush1.msra.mxu0 0.0
    %2916 = vmatprep.subr.mxu0 0.0
    %2917 = vmatpush1.msra.mxu0 0.0
    %2918 = vmatprep.subr.mxu0 0.0
    %2919 = vmatpush1.msra.mxu0 0.0
    %2920 = vmatprep.subr.mxu0 0.0
    %2921 = vmatpush1.msra.mxu0 0.0
    %2922 = vmatprep.subr.mxu0 0.0
    %2923 = vmatpush1.msra.mxu0 0.0
    %2924 = vmatprep.mubr.f32.mxu0 0.0
    %v2925 = vand.u32 %v2842, 4294901760
    %v2926 = vsub.f32 %v2842, %v2925
    %v2927 = vand.u32 %v2926, 4294901760
    %v2928 = vsub.f32 %v2926, %v2927
    %v2929 = vand.u32 %v2928, 4294901760
    %2930 = vmatmul.mubr.f32.gmra.mrb[0].mxu0 %v2929
    %v2931 = vpop.f32.mrb[0].mxu0
    %v2932 = vadd.f32 0.0, %v2931
    %v2933 = vpop.f32.mrb[0].mxu0
    %2934 = vdwg.mxu0
    %2935 = vmatprep.subr.mxu0 0.0
    %v2936 = vand.u32 %v69, 4294901760
    %v2937 = vsub.f32 %v69, %v2936
    %v2938 = vand.u32 %v2937, 4294901760
    %v2939 = vsub.f32 %v2937, %v2938
    %v2940 = vand.u32 %v2939, 4294901760
    %2941 = vmatpush1.msra.mxu0 %v2940
    %2942 = vmatprep.subr.mxu0 0.0
    %v2943 = vand.u32 %v70, 4294901760
    %v2944 = vsub.f32 %v70, %v2943
    %v2945 = vand.u32 %v2944, 4294901760
    %v2946 = vsub.f32 %v2944, %v2945
    %v2947 = vand.u32 %v2946, 4294901760
    %2948 = vmatpush1.msra.mxu0 %v2947
    %2949 = vmatprep.subr.mxu0 0.0
    %v2950 = vand.u32 %v71, 4294901760
    %v2951 = vsub.f32 %v71, %v2950
    %v2952 = vand.u32 %v2951, 4294901760
    %v2953 = vsub.f32 %v2951, %v2952
    %v2954 = vand.u32 %v2953, 4294901760
    %2955 = vmatpush1.msra.mxu0 %v2954
    %2956 = vmatprep.subr.mxu0 0.0
    %v2957 = vand.u32 %v72, 4294901760
    %v2958 = vsub.f32 %v72, %v2957
    %v2959 = vand.u32 %v2958, 4294901760
    %v2960 = vsub.f32 %v2958, %v2959
    %v2961 = vand.u32 %v2960, 4294901760
    %2962 = vmatpush1.msra.mxu0 %v2961
    %2963 = vmatprep.subr.mxu0 0.0
    %v2964 = vand.u32 %v73, 4294901760
    %v2965 = vsub.f32 %v73, %v2964
    %v2966 = vand.u32 %v2965, 4294901760
    %v2967 = vsub.f32 %v2965, %v2966
    %v2968 = vand.u32 %v2967, 4294901760
    %2969 = vmatpush1.msra.mxu0 %v2968
    %2970 = vmatprep.subr.mxu0 0.0
    %v2971 = vand.u32 %v74, 4294901760
    %v2972 = vsub.f32 %v74, %v2971
    %v2973 = vand.u32 %v2972, 4294901760
    %v2974 = vsub.f32 %v2972, %v2973
    %v2975 = vand.u32 %v2974, 4294901760
    %2976 = vmatpush1.msra.mxu0 %v2975
    %2977 = vmatprep.subr.mxu0 0.0
    %v2978 = vand.u32 %v75, 4294901760
    %v2979 = vsub.f32 %v75, %v2978
    %v2980 = vand.u32 %v2979, 4294901760
    %v2981 = vsub.f32 %v2979, %v2980
    %v2982 = vand.u32 %v2981, 4294901760
    %2983 = vmatpush1.msra.mxu0 %v2982
    %2984 = vmatprep.subr.mxu0 0.0
    %v2985 = vand.u32 %v76, 4294901760
    %v2986 = vsub.f32 %v76, %v2985
    %v2987 = vand.u32 %v2986, 4294901760
    %v2988 = vsub.f32 %v2986, %v2987
    %v2989 = vand.u32 %v2988, 4294901760
    %2990 = vmatpush1.msra.mxu0 %v2989
    %2991 = vmatprep.subr.mxu0 0.0
    %v2992 = vand.u32 %v77, 4294901760
    %v2993 = vsub.f32 %v77, %v2992
    %v2994 = vand.u32 %v2993, 4294901760
    %v2995 = vsub.f32 %v2993, %v2994
    %v2996 = vand.u32 %v2995, 4294901760
    %2997 = vmatpush1.msra.mxu0 %v2996
    %2998 = vmatprep.subr.mxu0 0.0
    %v2999 = vand.u32 %v78, 4294901760
    %v3000 = vsub.f32 %v78, %v2999
    %v3001 = vand.u32 %v3000, 4294901760
    %v3002 = vsub.f32 %v3000, %v3001
    %v3003 = vand.u32 %v3002, 4294901760
    %3004 = vmatpush1.msra.mxu0 %v3003
    %3005 = vmatprep.subr.mxu0 0.0
    %v3006 = vand.u32 %v79, 4294901760
    %v3007 = vsub.f32 %v79, %v3006
    %v3008 = vand.u32 %v3007, 4294901760
    %v3009 = vsub.f32 %v3007, %v3008
    %v3010 = vand.u32 %v3009, 4294901760
    %3011 = vmatpush1.msra.mxu0 %v3010
    %3012 = vmatprep.subr.mxu0 0.0
    %v3013 = vand.u32 %v80, 4294901760
    %v3014 = vsub.f32 %v80, %v3013
    %v3015 = vand.u32 %v3014, 4294901760
    %v3016 = vsub.f32 %v3014, %v3015
    %v3017 = vand.u32 %v3016, 4294901760
    %3018 = vmatpush1.msra.mxu0 %v3017
    %3019 = vmatprep.subr.mxu0 0.0
    %v3020 = vand.u32 %v81, 4294901760
    %v3021 = vsub.f32 %v81, %v3020
    %v3022 = vand.u32 %v3021, 4294901760
    %v3023 = vsub.f32 %v3021, %v3022
    %v3024 = vand.u32 %v3023, 4294901760
    %3025 = vmatpush1.msra.mxu0 %v3024
    %3026 = vmatprep.subr.mxu0 0.0
    %v3027 = vand.u32 %v82, 4294901760
    %v3028 = vsub.f32 %v82, %v3027
    %v3029 = vand.u32 %v3028, 4294901760
    %v3030 = vsub.f32 %v3028, %v3029
    %v3031 = vand.u32 %v3030, 4294901760
    %3032 = vmatpush1.msra.mxu0 %v3031
    %3033 = vmatprep.subr.mxu0 0.0
    %v3034 = vand.u32 %v83, 4294901760
    %v3035 = vsub.f32 %v83, %v3034
    %v3036 = vand.u32 %v3035, 4294901760
    %v3037 = vsub.f32 %v3035, %v3036
    %v3038 = vand.u32 %v3037, 4294901760
    %3039 = vmatpush1.msra.mxu0 %v3038
    %3040 = vmatprep.subr.mxu0 0.0
    %v3041 = vand.u32 %v84, 4294901760
    %v3042 = vsub.f32 %v84, %v3041
    %v3043 = vand.u32 %v3042, 4294901760
    %v3044 = vsub.f32 %v3042, %v3043
    %v3045 = vand.u32 %v3044, 4294901760
    %3046 = vmatpush1.msra.mxu0 %v3045
    %3047 = vmatprep.subr.mxu0 0.0
    %3048 = vmatpush1.msra.mxu0 0.0
    %3049 = vmatprep.subr.mxu0 0.0
    %3050 = vmatpush1.msra.mxu0 0.0
    %3051 = vmatprep.subr.mxu0 0.0
    %3052 = vmatpush1.msra.mxu0 0.0
    %3053 = vmatprep.subr.mxu0 0.0
    %3054 = vmatpush1.msra.mxu0 0.0
    %3055 = vmatprep.subr.mxu0 0.0
    %3056 = vmatpush1.msra.mxu0 0.0
    %3057 = vmatprep.subr.mxu0 0.0
    %3058 = vmatpush1.msra.mxu0 0.0
    %3059 = vmatprep.subr.mxu0 0.0
    %3060 = vmatpush1.msra.mxu0 0.0
    %3061 = vmatprep.subr.mxu0 0.0
    %3062 = vmatpush1.msra.mxu0 0.0
    %3063 = vmatprep.subr.mxu0 0.0
    %3064 = vmatpush1.msra.mxu0 0.0
    %3065 = vmatprep.subr.mxu0 0.0
    %3066 = vmatpush1.msra.mxu0 0.0
    %3067 = vmatprep.subr.mxu0 0.0
    %3068 = vmatpush1.msra.mxu0 0.0
    %3069 = vmatprep.subr.mxu0 0.0
    %3070 = vmatpush1.msra.mxu0 0.0
    %3071 = vmatprep.subr.mxu0 0.0
    %3072 = vmatpush1.msra.mxu0 0.0
    %3073 = vmatprep.subr.mxu0 0.0
    %3074 = vmatpush1.msra.mxu0 0.0
    %3075 = vmatprep.subr.mxu0 0.0
    %3076 = vmatpush1.msra.mxu0 0.0
    %3077 = vmatprep.subr.mxu0 0.0
    %3078 = vmatpush1.msra.mxu0 0.0
    %3079 = vmatprep.mubr.f32.mxu0 0.0
    %v3080 = vand.u32 %v2842, 4294901760
    %3081 = vmatmul.mubr.f32.gmra.mrb[0].mxu0 %v3080
    %v3082 = vpop.f32.mrb[0].mxu0
    %v3083 = vadd.f32 %v2932, %v3082
    %v3084 = vpop.f32.mrb[0].mxu0
    %3085 = vdwg.mxu0
    %3086 = vmatprep.subr.mxu0 0.0
    %v3087 = vand.u32 %v69, 4294901760
    %v3088 = vsub.f32 %v69, %v3087
    %3089 = vmatpush1.msra.mxu0 %v3088
    %3090 = vmatprep.subr.mxu0 0.0
    %v3091 = vand.u32 %v70, 4294901760
    %v3092 = vsub.f32 %v70, %v3091
    %3093 = vmatpush1.msra.mxu0 %v3092
    %3094 = vmatprep.subr.mxu0 0.0
    %v3095 = vand.u32 %v71, 4294901760
    %v3096 = vsub.f32 %v71, %v3095
    %3097 = vmatpush1.msra.mxu0 %v3096
    %3098 = vmatprep.subr.mxu0 0.0
    %v3099 = vand.u32 %v72, 4294901760
    %v3100 = vsub.f32 %v72, %v3099
    %3101 = vmatpush1.msra.mxu0 %v3100
    %3102 = vmatprep.subr.mxu0 0.0
    %v3103 = vand.u32 %v73, 4294901760
    %v3104 = vsub.f32 %v73, %v3103
    %3105 = vmatpush1.msra.mxu0 %v3104
    %3106 = vmatprep.subr.mxu0 0.0
    %v3107 = vand.u32 %v74, 4294901760
    %v3108 = vsub.f32 %v74, %v3107
    %3109 = vmatpush1.msra.mxu0 %v3108
    %3110 = vmatprep.subr.mxu0 0.0
    %v3111 = vand.u32 %v75, 4294901760
    %v3112 = vsub.f32 %v75, %v3111
    %3113 = vmatpush1.msra.mxu0 %v3112
    %3114 = vmatprep.subr.mxu0 0.0
    %v3115 = vand.u32 %v76, 4294901760
    %v3116 = vsub.f32 %v76, %v3115
    %3117 = vmatpush1.msra.mxu0 %v3116
    %3118 = vmatprep.subr.mxu0 0.0
    %v3119 = vand.u32 %v77, 4294901760
    %v3120 = vsub.f32 %v77, %v3119
    %3121 = vmatpush1.msra.mxu0 %v3120
    %3122 = vmatprep.subr.mxu0 0.0
    %v3123 = vand.u32 %v78, 4294901760
    %v3124 = vsub.f32 %v78, %v3123
    %3125 = vmatpush1.msra.mxu0 %v3124
    %3126 = vmatprep.subr.mxu0 0.0
    %v3127 = vand.u32 %v79, 4294901760
    %v3128 = vsub.f32 %v79, %v3127
    %3129 = vmatpush1.msra.mxu0 %v3128
    %3130 = vmatprep.subr.mxu0 0.0
    %v3131 = vand.u32 %v80, 4294901760
    %v3132 = vsub.f32 %v80, %v3131
    %3133 = vmatpush1.msra.mxu0 %v3132
    %3134 = vmatprep.subr.mxu0 0.0
    %v3135 = vand.u32 %v81, 4294901760
    %v3136 = vsub.f32 %v81, %v3135
    %3137 = vmatpush1.msra.mxu0 %v3136
    %3138 = vmatprep.subr.mxu0 0.0
    %v3139 = vand.u32 %v82, 4294901760
    %v3140 = vsub.f32 %v82, %v3139
    %3141 = vmatpush1.msra.mxu0 %v3140
    %3142 = vmatprep.subr.mxu0 0.0
    %v3143 = vand.u32 %v83, 4294901760
    %v3144 = vsub.f32 %v83, %v3143
    %3145 = vmatpush1.msra.mxu0 %v3144
    %3146 = vmatprep.subr.mxu0 0.0
    %v3147 = vand.u32 %v84, 4294901760
    %v3148 = vsub.f32 %v84, %v3147
    %3149 = vmatpush1.msra.mxu0 %v3148
    %3150 = vmatprep.subr.mxu0 0.0
    %3151 = vmatpush1.msra.mxu0 0.0
    %3152 = vmatprep.subr.mxu0 0.0
    %3153 = vmatpush1.msra.mxu0 0.0
    %3154 = vmatprep.subr.mxu0 0.0
    %3155 = vmatpush1.msra.mxu0 0.0
    %3156 = vmatprep.subr.mxu0 0.0
    %3157 = vmatpush1.msra.mxu0 0.0
    %3158 = vmatprep.subr.mxu0 0.0
    %3159 = vmatpush1.msra.mxu0 0.0
    %3160 = vmatprep.subr.mxu0 0.0
    %3161 = vmatpush1.msra.mxu0 0.0
    %3162 = vmatprep.subr.mxu0 0.0
    %3163 = vmatpush1.msra.mxu0 0.0
    %3164 = vmatprep.subr.mxu0 0.0
    %3165 = vmatpush1.msra.mxu0 0.0
    %3166 = vmatprep.subr.mxu0 0.0
    %3167 = vmatpush1.msra.mxu0 0.0
    %3168 = vmatprep.subr.mxu0 0.0
    %3169 = vmatpush1.msra.mxu0 0.0
    %3170 = vmatprep.subr.mxu0 0.0
    %3171 = vmatpush1.msra.mxu0 0.0
    %3172 = vmatprep.subr.mxu0 0.0
    %3173 = vmatpush1.msra.mxu0 0.0
    %3174 = vmatprep.subr.mxu0 0.0
    %3175 = vmatpush1.msra.mxu0 0.0
    %3176 = vmatprep.subr.mxu0 0.0
    %3177 = vmatpush1.msra.mxu0 0.0
    %3178 = vmatprep.subr.mxu0 0.0
    %3179 = vmatpush1.msra.mxu0 0.0
    %3180 = vmatprep.subr.mxu0 0.0
    %3181 = vmatpush1.msra.mxu0 0.0
    %3182 = vmatprep.mubr.f32.mxu0 0.0
    %v3183 = vand.u32 %v2842, 4294901760
    %v3184 = vsub.f32 %v2842, %v3183
    %3185 = vmatmul.mubr.f32.gmra.mrb[0].mxu0 %v3184
    %v3186 = vpop.f32.mrb[0].mxu0
    %v3187 = vadd.f32 %v3083, %v3186
    %v3188 = vpop.f32.mrb[0].mxu0
    %3189 = vdwg.mxu0
    %3190 = vmatprep.subr.mxu0 0.0
    %v3191 = vand.u32 %v69, 4294901760
    %3192 = vmatpush1.msra.mxu0 %v3191
    %3193 = vmatprep.subr.mxu0 0.0
    %v3194 = vand.u32 %v70, 4294901760
    %3195 = vmatpush1.msra.mxu0 %v3194
    %3196 = vmatprep.subr.mxu0 0.0
    %v3197 = vand.u32 %v71, 4294901760
    %3198 = vmatpush1.msra.mxu0 %v3197
    %3199 = vmatprep.subr.mxu0 0.0
    %v3200 = vand.u32 %v72, 4294901760
    %3201 = vmatpush1.msra.mxu0 %v3200
    %3202 = vmatprep.subr.mxu0 0.0
    %v3203 = vand.u32 %v73, 4294901760
    %3204 = vmatpush1.msra.mxu0 %v3203
    %3205 = vmatprep.subr.mxu0 0.0
    %v3206 = vand.u32 %v74, 4294901760
    %3207 = vmatpush1.msra.mxu0 %v3206
    %3208 = vmatprep.subr.mxu0 0.0
    %v3209 = vand.u32 %v75, 4294901760
    %3210 = vmatpush1.msra.mxu0 %v3209
    %3211 = vmatprep.subr.mxu0 0.0
    %v3212 = vand.u32 %v76, 4294901760
    %3213 = vmatpush1.msra.mxu0 %v3212
    %3214 = vmatprep.subr.mxu0 0.0
    %v3215 = vand.u32 %v77, 4294901760
    %3216 = vmatpush1.msra.mxu0 %v3215
    %3217 = vmatprep.subr.mxu0 0.0
    %v3218 = vand.u32 %v78, 4294901760
    %3219 = vmatpush1.msra.mxu0 %v3218
    %3220 = vmatprep.subr.mxu0 0.0
    %v3221 = vand.u32 %v79, 4294901760
    %3222 = vmatpush1.msra.mxu0 %v3221
    %3223 = vmatprep.subr.mxu0 0.0
    %v3224 = vand.u32 %v80, 4294901760
    %3225 = vmatpush1.msra.mxu0 %v3224
    %3226 = vmatprep.subr.mxu0 0.0
    %v3227 = vand.u32 %v81, 4294901760
    %3228 = vmatpush1.msra.mxu0 %v3227
    %3229 = vmatprep.subr.mxu0 0.0
    %v3230 = vand.u32 %v82, 4294901760
    %3231 = vmatpush1.msra.mxu0 %v3230
    %3232 = vmatprep.subr.mxu0 0.0
    %v3233 = vand.u32 %v83, 4294901760
    %3234 = vmatpush1.msra.mxu0 %v3233
    %3235 = vmatprep.subr.mxu0 0.0
    %v3236 = vand.u32 %v84, 4294901760
    %3237 = vmatpush1.msra.mxu0 %v3236
    %3238 = vmatprep.subr.mxu0 0.0
    %3239 = vmatpush1.msra.mxu0 0.0
    %3240 = vmatprep.subr.mxu0 0.0
    %3241 = vmatpush1.msra.mxu0 0.0
    %3242 = vmatprep.subr.mxu0 0.0
    %3243 = vmatpush1.msra.mxu0 0.0
    %3244 = vmatprep.subr.mxu0 0.0
    %3245 = vmatpush1.msra.mxu0 0.0
    %3246 = vmatprep.subr.mxu0 0.0
    %3247 = vmatpush1.msra.mxu0 0.0
    %3248 = vmatprep.subr.mxu0 0.0
    %3249 = vmatpush1.msra.mxu0 0.0
    %3250 = vmatprep.subr.mxu0 0.0
    %3251 = vmatpush1.msra.mxu0 0.0
    %3252 = vmatprep.subr.mxu0 0.0
    %3253 = vmatpush1.msra.mxu0 0.0
    %3254 = vmatprep.subr.mxu0 0.0
    %3255 = vmatpush1.msra.mxu0 0.0
    %3256 = vmatprep.subr.mxu0 0.0
    %3257 = vmatpush1.msra.mxu0 0.0
    %3258 = vmatprep.subr.mxu0 0.0
    %3259 = vmatpush1.msra.mxu0 0.0
    %3260 = vmatprep.subr.mxu0 0.0
    %3261 = vmatpush1.msra.mxu0 0.0
    %3262 = vmatprep.subr.mxu0 0.0
    %3263 = vmatpush1.msra.mxu0 0.0
    %3264 = vmatprep.subr.mxu0 0.0
    %3265 = vmatpush1.msra.mxu0 0.0
    %3266 = vmatprep.subr.mxu0 0.0
    %3267 = vmatpush1.msra.mxu0 0.0
    %3268 = vmatprep.subr.mxu0 0.0
    %3269 = vmatpush1.msra.mxu0 0.0
    %3270 = vmatprep.mubr.f32.mxu0 0.0
    %v3271 = vand.u32 %v2842, 4294901760
    %v3272 = vsub.f32 %v2842, %v3271
    %v3273 = vand.u32 %v3272, 4294901760
    %3274 = vmatmul.mubr.f32.gmra.mrb[0].mxu0 %v3273
    %v3275 = vpop.f32.mrb[0].mxu0
    %v3276 = vadd.f32 %v3187, %v3275
    %v3277 = vpop.f32.mrb[0].mxu0
    %3278 = vdwg.mxu0
    %3279 = vmatprep.subr.mxu0 0.0
    %v3280 = vand.u32 %v69, 4294901760
    %v3281 = vsub.f32 %v69, %v3280
    %v3282 = vand.u32 %v3281, 4294901760
    %3283 = vmatpush1.msra.mxu0 %v3282
    %3284 = vmatprep.subr.mxu0 0.0
    %v3285 = vand.u32 %v70, 4294901760
    %v3286 = vsub.f32 %v70, %v3285
    %v3287 = vand.u32 %v3286, 4294901760
    %3288 = vmatpush1.msra.mxu0 %v3287
    %3289 = vmatprep.subr.mxu0 0.0
    %v3290 = vand.u32 %v71, 4294901760
    %v3291 = vsub.f32 %v71, %v3290
    %v3292 = vand.u32 %v3291, 4294901760
    %3293 = vmatpush1.msra.mxu0 %v3292
    %3294 = vmatprep.subr.mxu0 0.0
    %v3295 = vand.u32 %v72, 4294901760
    %v3296 = vsub.f32 %v72, %v3295
    %v3297 = vand.u32 %v3296, 4294901760
    %3298 = vmatpush1.msra.mxu0 %v3297
    %3299 = vmatprep.subr.mxu0 0.0
    %v3300 = vand.u32 %v73, 4294901760
    %v3301 = vsub.f32 %v73, %v3300
    %v3302 = vand.u32 %v3301, 4294901760
    %3303 = vmatpush1.msra.mxu0 %v3302
    %3304 = vmatprep.subr.mxu0 0.0
    %v3305 = vand.u32 %v74, 4294901760
    %v3306 = vsub.f32 %v74, %v3305
    %v3307 = vand.u32 %v3306, 4294901760
    %3308 = vmatpush1.msra.mxu0 %v3307
    %3309 = vmatprep.subr.mxu0 0.0
    %v3310 = vand.u32 %v75, 4294901760
    %v3311 = vsub.f32 %v75, %v3310
    %v3312 = vand.u32 %v3311, 4294901760
    %3313 = vmatpush1.msra.mxu0 %v3312
    %3314 = vmatprep.subr.mxu0 0.0
    %v3315 = vand.u32 %v76, 4294901760
    %v3316 = vsub.f32 %v76, %v3315
    %v3317 = vand.u32 %v3316, 4294901760
    %3318 = vmatpush1.msra.mxu0 %v3317
    %3319 = vmatprep.subr.mxu0 0.0
    %v3320 = vand.u32 %v77, 4294901760
    %v3321 = vsub.f32 %v77, %v3320
    %v3322 = vand.u32 %v3321, 4294901760
    %3323 = vmatpush1.msra.mxu0 %v3322
    %3324 = vmatprep.subr.mxu0 0.0
    %v3325 = vand.u32 %v78, 4294901760
    %v3326 = vsub.f32 %v78, %v3325
    %v3327 = vand.u32 %v3326, 4294901760
    %3328 = vmatpush1.msra.mxu0 %v3327
    %3329 = vmatprep.subr.mxu0 0.0
    %v3330 = vand.u32 %v79, 4294901760
    %v3331 = vsub.f32 %v79, %v3330
    %v3332 = vand.u32 %v3331, 4294901760
    %3333 = vmatpush1.msra.mxu0 %v3332
    %3334 = vmatprep.subr.mxu0 0.0
    %v3335 = vand.u32 %v80, 4294901760
    %v3336 = vsub.f32 %v80, %v3335
    %v3337 = vand.u32 %v3336, 4294901760
    %3338 = vmatpush1.msra.mxu0 %v3337
    %3339 = vmatprep.subr.mxu0 0.0
    %v3340 = vand.u32 %v81, 4294901760
    %v3341 = vsub.f32 %v81, %v3340
    %v3342 = vand.u32 %v3341, 4294901760
    %3343 = vmatpush1.msra.mxu0 %v3342
    %3344 = vmatprep.subr.mxu0 0.0
    %v3345 = vand.u32 %v82, 4294901760
    %v3346 = vsub.f32 %v82, %v3345
    %v3347 = vand.u32 %v3346, 4294901760
    %3348 = vmatpush1.msra.mxu0 %v3347
    %3349 = vmatprep.subr.mxu0 0.0
    %v3350 = vand.u32 %v83, 4294901760
    %v3351 = vsub.f32 %v83, %v3350
    %v3352 = vand.u32 %v3351, 4294901760
    %3353 = vmatpush1.msra.mxu0 %v3352
    %3354 = vmatprep.subr.mxu0 0.0
    %v3355 = vand.u32 %v84, 4294901760
    %v3356 = vsub.f32 %v84, %v3355
    %v3357 = vand.u32 %v3356, 4294901760
    %3358 = vmatpush1.msra.mxu0 %v3357
    %3359 = vmatprep.subr.mxu0 0.0
    %3360 = vmatpush1.msra.mxu0 0.0
    %3361 = vmatprep.subr.mxu0 0.0
    %3362 = vmatpush1.msra.mxu0 0.0
    %3363 = vmatprep.subr.mxu0 0.0
    %3364 = vmatpush1.msra.mxu0 0.0
    %3365 = vmatprep.subr.mxu0 0.0
    %3366 = vmatpush1.msra.mxu0 0.0
    %3367 = vmatprep.subr.mxu0 0.0
    %3368 = vmatpush1.msra.mxu0 0.0
    %3369 = vmatprep.subr.mxu0 0.0
    %3370 = vmatpush1.msra.mxu0 0.0
    %3371 = vmatprep.subr.mxu0 0.0
    %3372 = vmatpush1.msra.mxu0 0.0
    %3373 = vmatprep.subr.mxu0 0.0
    %3374 = vmatpush1.msra.mxu0 0.0
    %3375 = vmatprep.subr.mxu0 0.0
    %3376 = vmatpush1.msra.mxu0 0.0
    %3377 = vmatprep.subr.mxu0 0.0
    %3378 = vmatpush1.msra.mxu0 0.0
    %3379 = vmatprep.subr.mxu0 0.0
    %3380 = vmatpush1.msra.mxu0 0.0
    %3381 = vmatprep.subr.mxu0 0.0
    %3382 = vmatpush1.msra.mxu0 0.0
    %3383 = vmatprep.subr.mxu0 0.0
    %3384 = vmatpush1.msra.mxu0 0.0
    %3385 = vmatprep.subr.mxu0 0.0
    %3386 = vmatpush1.msra.mxu0 0.0
    %3387 = vmatprep.subr.mxu0 0.0
    %3388 = vmatpush1.msra.mxu0 0.0
    %3389 = vmatprep.subr.mxu0 0.0
    %3390 = vmatpush1.msra.mxu0 0.0
    %3391 = vmatprep.mubr.f32.mxu0 0.0
    %v3392 = vand.u32 %v2842, 4294901760
    %3393 = vmatmul.mubr.f32.gmra.mrb[0].mxu0 %v3392
    %v3394 = vpop.f32.mrb[0].mxu0
    %v3395 = vadd.f32 %v3276, %v3394
    %v3396 = vpop.f32.mrb[0].mxu0
    %3397 = vdwg.mxu0
    %3398 = vmatprep.subr.mxu0 0.0
    %v3399 = vand.u32 %v69, 4294901760
    %3400 = vmatpush1.msra.mxu0 %v3399
    %3401 = vmatprep.subr.mxu0 0.0
    %v3402 = vand.u32 %v70, 4294901760
    %3403 = vmatpush1.msra.mxu0 %v3402
    %3404 = vmatprep.subr.mxu0 0.0
    %v3405 = vand.u32 %v71, 4294901760
    %3406 = vmatpush1.msra.mxu0 %v3405
    %3407 = vmatprep.subr.mxu0 0.0
    %v3408 = vand.u32 %v72, 4294901760
    %3409 = vmatpush1.msra.mxu0 %v3408
    %3410 = vmatprep.subr.mxu0 0.0
    %v3411 = vand.u32 %v73, 4294901760
    %3412 = vmatpush1.msra.mxu0 %v3411
    %3413 = vmatprep.subr.mxu0 0.0
    %v3414 = vand.u32 %v74, 4294901760
    %3415 = vmatpush1.msra.mxu0 %v3414
    %3416 = vmatprep.subr.mxu0 0.0
    %v3417 = vand.u32 %v75, 4294901760
    %3418 = vmatpush1.msra.mxu0 %v3417
    %3419 = vmatprep.subr.mxu0 0.0
    %v3420 = vand.u32 %v76, 4294901760
    %3421 = vmatpush1.msra.mxu0 %v3420
    %3422 = vmatprep.subr.mxu0 0.0
    %v3423 = vand.u32 %v77, 4294901760
    %3424 = vmatpush1.msra.mxu0 %v3423
    %3425 = vmatprep.subr.mxu0 0.0
    %v3426 = vand.u32 %v78, 4294901760
    %3427 = vmatpush1.msra.mxu0 %v3426
    %3428 = vmatprep.subr.mxu0 0.0
    %v3429 = vand.u32 %v79, 4294901760
    %3430 = vmatpush1.msra.mxu0 %v3429
    %3431 = vmatprep.subr.mxu0 0.0
    %v3432 = vand.u32 %v80, 4294901760
    %3433 = vmatpush1.msra.mxu0 %v3432
    %3434 = vmatprep.subr.mxu0 0.0
    %v3435 = vand.u32 %v81, 4294901760
    %3436 = vmatpush1.msra.mxu0 %v3435
    %3437 = vmatprep.subr.mxu0 0.0
    %v3438 = vand.u32 %v82, 4294901760
    %3439 = vmatpush1.msra.mxu0 %v3438
    %3440 = vmatprep.subr.mxu0 0.0
    %v3441 = vand.u32 %v83, 4294901760
    %3442 = vmatpush1.msra.mxu0 %v3441
    %3443 = vmatprep.subr.mxu0 0.0
    %v3444 = vand.u32 %v84, 4294901760
    %3445 = vmatpush1.msra.mxu0 %v3444
    %3446 = vmatprep.subr.mxu0 0.0
    %3447 = vmatpush1.msra.mxu0 0.0
    %3448 = vmatprep.subr.mxu0 0.0
    %3449 = vmatpush1.msra.mxu0 0.0
    %3450 = vmatprep.subr.mxu0 0.0
    %3451 = vmatpush1.msra.mxu0 0.0
    %3452 = vmatprep.subr.mxu0 0.0
    %3453 = vmatpush1.msra.mxu0 0.0
    %3454 = vmatprep.subr.mxu0 0.0
    %3455 = vmatpush1.msra.mxu0 0.0
    %3456 = vmatprep.subr.mxu0 0.0
    %3457 = vmatpush1.msra.mxu0 0.0
    %3458 = vmatprep.subr.mxu0 0.0
    %3459 = vmatpush1.msra.mxu0 0.0
    %3460 = vmatprep.subr.mxu0 0.0
    %3461 = vmatpush1.msra.mxu0 0.0
    %3462 = vmatprep.subr.mxu0 0.0
    %3463 = vmatpush1.msra.mxu0 0.0
    %3464 = vmatprep.subr.mxu0 0.0
    %3465 = vmatpush1.msra.mxu0 0.0
    %3466 = vmatprep.subr.mxu0 0.0
    %3467 = vmatpush1.msra.mxu0 0.0
    %3468 = vmatprep.subr.mxu0 0.0
    %3469 = vmatpush1.msra.mxu0 0.0
    %3470 = vmatprep.subr.mxu0 0.0
    %3471 = vmatpush1.msra.mxu0 0.0
    %3472 = vmatprep.subr.mxu0 0.0
    %3473 = vmatpush1.msra.mxu0 0.0
    %3474 = vmatprep.subr.mxu0 0.0
    %3475 = vmatpush1.msra.mxu0 0.0
    %3476 = vmatprep.subr.mxu0 0.0
    %3477 = vmatpush1.msra.mxu0 0.0
    %3478 = vmatprep.mubr.f32.mxu0 0.0
    %v3479 = vand.u32 %v2842, 4294901760
    %3480 = vmatmul.mubr.f32.gmra.mrb[0].mxu0 %v3479
    %v3481 = vpop.f32.mrb[0].mxu0
    %v3482 = vadd.f32 %v3395, %v3481
    %v3483 = vpop.f32.mrb[0].mxu0
    %3484 = vdwg.mxu0
    %v3485 = vadd.f32 %v884, %v3482
    %v3486 = vtanh.pop %v3485
    %3487 = vst [vmem:[#allocation8 + $0x18] sm:$0xff] %v3486
    %3488 = vmatprep.subr.mxu0 0.0
    %v3489 = vand.u32 %v69, 4294901760
    %3490 = vmatpush1.msra.mxu0 %v3489
    %3491 = vmatprep.subr.mxu0 0.0
    %v3492 = vand.u32 %v70, 4294901760
    %3493 = vmatpush1.msra.mxu0 %v3492
    %3494 = vmatprep.subr.mxu0 0.0
    %v3495 = vand.u32 %v71, 4294901760
    %3496 = vmatpush1.msra.mxu0 %v3495
    %3497 = vmatprep.subr.mxu0 0.0
    %v3498 = vand.u32 %v72, 4294901760
    %3499 = vmatpush1.msra.mxu0 %v3498
    %3500 = vmatprep.subr.mxu0 0.0
    %v3501 = vand.u32 %v73, 4294901760
    %3502 = vmatpush1.msra.mxu0 %v3501
    %3503 = vmatprep.subr.mxu0 0.0
    %v3504 = vand.u32 %v74, 4294901760
    %3505 = vmatpush1.msra.mxu0 %v3504
    %3506 = vmatprep.subr.mxu0 0.0
    %v3507 = vand.u32 %v75, 4294901760
    %3508 = vmatpush1.msra.mxu0 %v3507
    %3509 = vmatprep.subr.mxu0 0.0
    %v3510 = vand.u32 %v76, 4294901760
    %3511 = vmatpush1.msra.mxu0 %v3510
    %3512 = vmatprep.subr.mxu0 0.0
    %v3513 = vand.u32 %v77, 4294901760
    %3514 = vmatpush1.msra.mxu0 %v3513
    %3515 = vmatprep.subr.mxu0 0.0
    %v3516 = vand.u32 %v78, 4294901760
    %3517 = vmatpush1.msra.mxu0 %v3516
    %3518 = vmatprep.subr.mxu0 0.0
    %v3519 = vand.u32 %v79, 4294901760
    %3520 = vmatpush1.msra.mxu0 %v3519
    %3521 = vmatprep.subr.mxu0 0.0
    %v3522 = vand.u32 %v80, 4294901760
    %3523 = vmatpush1.msra.mxu0 %v3522
    %3524 = vmatprep.subr.mxu0 0.0
    %v3525 = vand.u32 %v81, 4294901760
    %3526 = vmatpush1.msra.mxu0 %v3525
    %3527 = vmatprep.subr.mxu0 0.0
    %v3528 = vand.u32 %v82, 4294901760
    %3529 = vmatpush1.msra.mxu0 %v3528
    %3530 = vmatprep.subr.mxu0 0.0
    %v3531 = vand.u32 %v83, 4294901760
    %3532 = vmatpush1.msra.mxu0 %v3531
    %3533 = vmatprep.subr.mxu0 0.0
    %v3534 = vand.u32 %v84, 4294901760
    %3535 = vmatpush1.msra.mxu0 %v3534
    %3536 = vmatprep.subr.mxu0 0.0
    %3537 = vmatpush1.msra.mxu0 0.0
    %3538 = vmatprep.subr.mxu0 0.0
    %3539 = vmatpush1.msra.mxu0 0.0
    %3540 = vmatprep.subr.mxu0 0.0
    %3541 = vmatpush1.msra.mxu0 0.0
    %3542 = vmatprep.subr.mxu0 0.0
    %3543 = vmatpush1.msra.mxu0 0.0
    %3544 = vmatprep.subr.mxu0 0.0
    %3545 = vmatpush1.msra.mxu0 0.0
    %3546 = vmatprep.subr.mxu0 0.0
    %3547 = vmatpush1.msra.mxu0 0.0
    %3548 = vmatprep.subr.mxu0 0.0
    %3549 = vmatpush1.msra.mxu0 0.0
    %3550 = vmatprep.subr.mxu0 0.0
    %3551 = vmatpush1.msra.mxu0 0.0
    %3552 = vmatprep.subr.mxu0 0.0
    %3553 = vmatpush1.msra.mxu0 0.0
    %3554 = vmatprep.subr.mxu0 0.0
    %3555 = vmatpush1.msra.mxu0 0.0
    %3556 = vmatprep.subr.mxu0 0.0
    %3557 = vmatpush1.msra.mxu0 0.0
    %3558 = vmatprep.subr.mxu0 0.0
    %3559 = vmatpush1.msra.mxu0 0.0
    %3560 = vmatprep.subr.mxu0 0.0
    %3561 = vmatpush1.msra.mxu0 0.0
    %3562 = vmatprep.subr.mxu0 0.0
    %3563 = vmatpush1.msra.mxu0 0.0
    %3564 = vmatprep.subr.mxu0 0.0
    %3565 = vmatpush1.msra.mxu0 0.0
    %3566 = vmatprep.subr.mxu0 0.0
    %3567 = vmatpush1.msra.mxu0 0.0
    %3568 = vmatprep.mubr.f32.mxu0 0.0
    %v3569 = vand.u32 %v3486, 4294901760
    %v3570 = vsub.f32 %v3486, %v3569
    %v3571 = vand.u32 %v3570, 4294901760
    %v3572 = vsub.f32 %v3570, %v3571
    %v3573 = vand.u32 %v3572, 4294901760
    %3574 = vmatmul.mubr.f32.gmra.mrb[0].mxu0 %v3573
    %v3575 = vpop.f32.mrb[0].mxu0
    %v3576 = vadd.f32 0.0, %v3575
    %v3577 = vpop.f32.mrb[0].mxu0
    %3578 = vdwg.mxu0
    %3579 = vmatprep.subr.mxu0 0.0
    %v3580 = vand.u32 %v69, 4294901760
    %v3581 = vsub.f32 %v69, %v3580
    %v3582 = vand.u32 %v3581, 4294901760
    %v3583 = vsub.f32 %v3581, %v3582
    %v3584 = vand.u32 %v3583, 4294901760
    %3585 = vmatpush1.msra.mxu0 %v3584
    %3586 = vmatprep.subr.mxu0 0.0
    %v3587 = vand.u32 %v70, 4294901760
    %v3588 = vsub.f32 %v70, %v3587
    %v3589 = vand.u32 %v3588, 4294901760
    %v3590 = vsub.f32 %v3588, %v3589
    %v3591 = vand.u32 %v3590, 4294901760
    %3592 = vmatpush1.msra.mxu0 %v3591
    %3593 = vmatprep.subr.mxu0 0.0
    %v3594 = vand.u32 %v71, 4294901760
    %v3595 = vsub.f32 %v71, %v3594
    %v3596 = vand.u32 %v3595, 4294901760
    %v3597 = vsub.f32 %v3595, %v3596
    %v3598 = vand.u32 %v3597, 4294901760
    %3599 = vmatpush1.msra.mxu0 %v3598
    %3600 = vmatprep.subr.mxu0 0.0
    %v3601 = vand.u32 %v72, 4294901760
    %v3602 = vsub.f32 %v72, %v3601
    %v3603 = vand.u32 %v3602, 4294901760
    %v3604 = vsub.f32 %v3602, %v3603
    %v3605 = vand.u32 %v3604, 4294901760
    %3606 = vmatpush1.msra.mxu0 %v3605
    %3607 = vmatprep.subr.mxu0 0.0
    %v3608 = vand.u32 %v73, 4294901760
    %v3609 = vsub.f32 %v73, %v3608
    %v3610 = vand.u32 %v3609, 4294901760
    %v3611 = vsub.f32 %v3609, %v3610
    %v3612 = vand.u32 %v3611, 4294901760
    %3613 = vmatpush1.msra.mxu0 %v3612
    %3614 = vmatprep.subr.mxu0 0.0
    %v3615 = vand.u32 %v74, 4294901760
    %v3616 = vsub.f32 %v74, %v3615
    %v3617 = vand.u32 %v3616, 4294901760
    %v3618 = vsub.f32 %v3616, %v3617
    %v3619 = vand.u32 %v3618, 4294901760
    %3620 = vmatpush1.msra.mxu0 %v3619
    %3621 = vmatprep.subr.mxu0 0.0
    %v3622 = vand.u32 %v75, 4294901760
    %v3623 = vsub.f32 %v75, %v3622
    %v3624 = vand.u32 %v3623, 4294901760
    %v3625 = vsub.f32 %v3623, %v3624
    %v3626 = vand.u32 %v3625, 4294901760
    %3627 = vmatpush1.msra.mxu0 %v3626
    %3628 = vmatprep.subr.mxu0 0.0
    %v3629 = vand.u32 %v76, 4294901760
    %v3630 = vsub.f32 %v76, %v3629
    %v3631 = vand.u32 %v3630, 4294901760
    %v3632 = vsub.f32 %v3630, %v3631
    %v3633 = vand.u32 %v3632, 4294901760
    %3634 = vmatpush1.msra.mxu0 %v3633
    %3635 = vmatprep.subr.mxu0 0.0
    %v3636 = vand.u32 %v77, 4294901760
    %v3637 = vsub.f32 %v77, %v3636
    %v3638 = vand.u32 %v3637, 4294901760
    %v3639 = vsub.f32 %v3637, %v3638
    %v3640 = vand.u32 %v3639, 4294901760
    %3641 = vmatpush1.msra.mxu0 %v3640
    %3642 = vmatprep.subr.mxu0 0.0
    %v3643 = vand.u32 %v78, 4294901760
    %v3644 = vsub.f32 %v78, %v3643
    %v3645 = vand.u32 %v3644, 4294901760
    %v3646 = vsub.f32 %v3644, %v3645
    %v3647 = vand.u32 %v3646, 4294901760
    %3648 = vmatpush1.msra.mxu0 %v3647
    %3649 = vmatprep.subr.mxu0 0.0
    %v3650 = vand.u32 %v79, 4294901760
    %v3651 = vsub.f32 %v79, %v3650
    %v3652 = vand.u32 %v3651, 4294901760
    %v3653 = vsub.f32 %v3651, %v3652
    %v3654 = vand.u32 %v3653, 4294901760
    %3655 = vmatpush1.msra.mxu0 %v3654
    %3656 = vmatprep.subr.mxu0 0.0
    %v3657 = vand.u32 %v80, 4294901760
    %v3658 = vsub.f32 %v80, %v3657
    %v3659 = vand.u32 %v3658, 4294901760
    %v3660 = vsub.f32 %v3658, %v3659
    %v3661 = vand.u32 %v3660, 4294901760
    %3662 = vmatpush1.msra.mxu0 %v3661
    %3663 = vmatprep.subr.mxu0 0.0
    %v3664 = vand.u32 %v81, 4294901760
    %v3665 = vsub.f32 %v81, %v3664
    %v3666 = vand.u32 %v3665, 4294901760
    %v3667 = vsub.f32 %v3665, %v3666
    %v3668 = vand.u32 %v3667, 4294901760
    %3669 = vmatpush1.msra.mxu0 %v3668
    %3670 = vmatprep.subr.mxu0 0.0
    %v3671 = vand.u32 %v82, 4294901760
    %v3672 = vsub.f32 %v82, %v3671
    %v3673 = vand.u32 %v3672, 4294901760
    %v3674 = vsub.f32 %v3672, %v3673
    %v3675 = vand.u32 %v3674, 4294901760
    %3676 = vmatpush1.msra.mxu0 %v3675
    %3677 = vmatprep.subr.mxu0 0.0
    %v3678 = vand.u32 %v83, 4294901760
    %v3679 = vsub.f32 %v83, %v3678
    %v3680 = vand.u32 %v3679, 4294901760
    %v3681 = vsub.f32 %v3679, %v3680
    %v3682 = vand.u32 %v3681, 4294901760
    %3683 = vmatpush1.msra.mxu0 %v3682
    %3684 = vmatprep.subr.mxu0 0.0
    %v3685 = vand.u32 %v84, 4294901760
    %v3686 = vsub.f32 %v84, %v3685
    %v3687 = vand.u32 %v3686, 4294901760
    %v3688 = vsub.f32 %v3686, %v3687
    %v3689 = vand.u32 %v3688, 4294901760
    %3690 = vmatpush1.msra.mxu0 %v3689
    %3691 = vmatprep.subr.mxu0 0.0
    %3692 = vmatpush1.msra.mxu0 0.0
    %3693 = vmatprep.subr.mxu0 0.0
    %3694 = vmatpush1.msra.mxu0 0.0
    %3695 = vmatprep.subr.mxu0 0.0
    %3696 = vmatpush1.msra.mxu0 0.0
    %3697 = vmatprep.subr.mxu0 0.0
    %3698 = vmatpush1.msra.mxu0 0.0
    %3699 = vmatprep.subr.mxu0 0.0
    %3700 = vmatpush1.msra.mxu0 0.0
    %3701 = vmatprep.subr.mxu0 0.0
    %3702 = vmatpush1.msra.mxu0 0.0
    %3703 = vmatprep.subr.mxu0 0.0
    %3704 = vmatpush1.msra.mxu0 0.0
    %3705 = vmatprep.subr.mxu0 0.0
    %3706 = vmatpush1.msra.mxu0 0.0
    %3707 = vmatprep.subr.mxu0 0.0
    %3708 = vmatpush1.msra.mxu0 0.0
    %3709 = vmatprep.subr.mxu0 0.0
    %3710 = vmatpush1.msra.mxu0 0.0
    %3711 = vmatprep.subr.mxu0 0.0
    %3712 = vmatpush1.msra.mxu0 0.0
    %3713 = vmatprep.subr.mxu0 0.0
    %3714 = vmatpush1.msra.mxu0 0.0
    %3715 = vmatprep.subr.mxu0 0.0
    %3716 = vmatpush1.msra.mxu0 0.0
    %3717 = vmatprep.subr.mxu0 0.0
    %3718 = vmatpush1.msra.mxu0 0.0
    %3719 = vmatprep.subr.mxu0 0.0
    %3720 = vmatpush1.msra.mxu0 0.0
    %3721 = vmatprep.subr.mxu0 0.0
    %3722 = vmatpush1.msra.mxu0 0.0
    %3723 = vmatprep.mubr.f32.mxu0 0.0
    %v3724 = vand.u32 %v3486, 4294901760
    %3725 = vmatmul.mubr.f32.gmra.mrb[0].mxu0 %v3724
    %v3726 = vpop.f32.mrb[0].mxu0
    %v3727 = vadd.f32 %v3576, %v3726
    %v3728 = vpop.f32.mrb[0].mxu0
    %3729 = vdwg.mxu0
    %3730 = vmatprep.subr.mxu0 0.0
    %v3731 = vand.u32 %v69, 4294901760
    %v3732 = vsub.f32 %v69, %v3731
    %3733 = vmatpush1.msra.mxu0 %v3732
    %3734 = vmatprep.subr.mxu0 0.0
    %v3735 = vand.u32 %v70, 4294901760
    %v3736 = vsub.f32 %v70, %v3735
    %3737 = vmatpush1.msra.mxu0 %v3736
    %3738 = vmatprep.subr.mxu0 0.0
    %v3739 = vand.u32 %v71, 4294901760
    %v3740 = vsub.f32 %v71, %v3739
    %3741 = vmatpush1.msra.mxu0 %v3740
    %3742 = vmatprep.subr.mxu0 0.0
    %v3743 = vand.u32 %v72, 4294901760
    %v3744 = vsub.f32 %v72, %v3743
    %3745 = vmatpush1.msra.mxu0 %v3744
    %3746 = vmatprep.subr.mxu0 0.0
    %v3747 = vand.u32 %v73, 4294901760
    %v3748 = vsub.f32 %v73, %v3747
    %3749 = vmatpush1.msra.mxu0 %v3748
    %3750 = vmatprep.subr.mxu0 0.0
    %v3751 = vand.u32 %v74, 4294901760
    %v3752 = vsub.f32 %v74, %v3751
    %3753 = vmatpush1.msra.mxu0 %v3752
    %3754 = vmatprep.subr.mxu0 0.0
    %v3755 = vand.u32 %v75, 4294901760
    %v3756 = vsub.f32 %v75, %v3755
    %3757 = vmatpush1.msra.mxu0 %v3756
    %3758 = vmatprep.subr.mxu0 0.0
    %v3759 = vand.u32 %v76, 4294901760
    %v3760 = vsub.f32 %v76, %v3759
    %3761 = vmatpush1.msra.mxu0 %v3760
    %3762 = vmatprep.subr.mxu0 0.0
    %v3763 = vand.u32 %v77, 4294901760
    %v3764 = vsub.f32 %v77, %v3763
    %3765 = vmatpush1.msra.mxu0 %v3764
    %3766 = vmatprep.subr.mxu0 0.0
    %v3767 = vand.u32 %v78, 4294901760
    %v3768 = vsub.f32 %v78, %v3767
    %3769 = vmatpush1.msra.mxu0 %v3768
    %3770 = vmatprep.subr.mxu0 0.0
    %v3771 = vand.u32 %v79, 4294901760
    %v3772 = vsub.f32 %v79, %v3771
    %3773 = vmatpush1.msra.mxu0 %v3772
    %3774 = vmatprep.subr.mxu0 0.0
    %v3775 = vand.u32 %v80, 4294901760
    %v3776 = vsub.f32 %v80, %v3775
    %3777 = vmatpush1.msra.mxu0 %v3776
    %3778 = vmatprep.subr.mxu0 0.0
    %v3779 = vand.u32 %v81, 4294901760
    %v3780 = vsub.f32 %v81, %v3779
    %3781 = vmatpush1.msra.mxu0 %v3780
    %3782 = vmatprep.subr.mxu0 0.0
    %v3783 = vand.u32 %v82, 4294901760
    %v3784 = vsub.f32 %v82, %v3783
    %3785 = vmatpush1.msra.mxu0 %v3784
    %3786 = vmatprep.subr.mxu0 0.0
    %v3787 = vand.u32 %v83, 4294901760
    %v3788 = vsub.f32 %v83, %v3787
    %3789 = vmatpush1.msra.mxu0 %v3788
    %3790 = vmatprep.subr.mxu0 0.0
    %v3791 = vand.u32 %v84, 4294901760
    %v3792 = vsub.f32 %v84, %v3791
    %3793 = vmatpush1.msra.mxu0 %v3792
    %3794 = vmatprep.subr.mxu0 0.0
    %3795 = vmatpush1.msra.mxu0 0.0
    %3796 = vmatprep.subr.mxu0 0.0
    %3797 = vmatpush1.msra.mxu0 0.0
    %3798 = vmatprep.subr.mxu0 0.0
    %3799 = vmatpush1.msra.mxu0 0.0
    %3800 = vmatprep.subr.mxu0 0.0
    %3801 = vmatpush1.msra.mxu0 0.0
    %3802 = vmatprep.subr.mxu0 0.0
    %3803 = vmatpush1.msra.mxu0 0.0
    %3804 = vmatprep.subr.mxu0 0.0
    %3805 = vmatpush1.msra.mxu0 0.0
    %3806 = vmatprep.subr.mxu0 0.0
    %3807 = vmatpush1.msra.mxu0 0.0
    %3808 = vmatprep.subr.mxu0 0.0
    %3809 = vmatpush1.msra.mxu0 0.0
    %3810 = vmatprep.subr.mxu0 0.0
    %3811 = vmatpush1.msra.mxu0 0.0
    %3812 = vmatprep.subr.mxu0 0.0
    %3813 = vmatpush1.msra.mxu0 0.0
    %3814 = vmatprep.subr.mxu0 0.0
    %3815 = vmatpush1.msra.mxu0 0.0
    %3816 = vmatprep.subr.mxu0 0.0
    %3817 = vmatpush1.msra.mxu0 0.0
    %3818 = vmatprep.subr.mxu0 0.0
    %3819 = vmatpush1.msra.mxu0 0.0
    %3820 = vmatprep.subr.mxu0 0.0
    %3821 = vmatpush1.msra.mxu0 0.0
    %3822 = vmatprep.subr.mxu0 0.0
    %3823 = vmatpush1.msra.mxu0 0.0
    %3824 = vmatprep.subr.mxu0 0.0
    %3825 = vmatpush1.msra.mxu0 0.0
    %3826 = vmatprep.mubr.f32.mxu0 0.0
    %v3827 = vand.u32 %v3486, 4294901760
    %v3828 = vsub.f32 %v3486, %v3827
    %3829 = vmatmul.mubr.f32.gmra.mrb[0].mxu0 %v3828
    %v3830 = vpop.f32.mrb[0].mxu0
    %v3831 = vadd.f32 %v3727, %v3830
    %v3832 = vpop.f32.mrb[0].mxu0
    %3833 = vdwg.mxu0
    %3834 = vmatprep.subr.mxu0 0.0
    %v3835 = vand.u32 %v69, 4294901760
    %3836 = vmatpush1.msra.mxu0 %v3835
    %3837 = vmatprep.subr.mxu0 0.0
    %v3838 = vand.u32 %v70, 4294901760
    %3839 = vmatpush1.msra.mxu0 %v3838
    %3840 = vmatprep.subr.mxu0 0.0
    %v3841 = vand.u32 %v71, 4294901760
    %3842 = vmatpush1.msra.mxu0 %v3841
    %3843 = vmatprep.subr.mxu0 0.0
    %v3844 = vand.u32 %v72, 4294901760
    %3845 = vmatpush1.msra.mxu0 %v3844
    %3846 = vmatprep.subr.mxu0 0.0
    %v3847 = vand.u32 %v73, 4294901760
    %3848 = vmatpush1.msra.mxu0 %v3847
    %3849 = vmatprep.subr.mxu0 0.0
    %v3850 = vand.u32 %v74, 4294901760
    %3851 = vmatpush1.msra.mxu0 %v3850
    %3852 = vmatprep.subr.mxu0 0.0
    %v3853 = vand.u32 %v75, 4294901760
    %3854 = vmatpush1.msra.mxu0 %v3853
    %3855 = vmatprep.subr.mxu0 0.0
    %v3856 = vand.u32 %v76, 4294901760
    %3857 = vmatpush1.msra.mxu0 %v3856
    %3858 = vmatprep.subr.mxu0 0.0
    %v3859 = vand.u32 %v77, 4294901760
    %3860 = vmatpush1.msra.mxu0 %v3859
    %3861 = vmatprep.subr.mxu0 0.0
    %v3862 = vand.u32 %v78, 4294901760
    %3863 = vmatpush1.msra.mxu0 %v3862
    %3864 = vmatprep.subr.mxu0 0.0
    %v3865 = vand.u32 %v79, 4294901760
    %3866 = vmatpush1.msra.mxu0 %v3865
    %3867 = vmatprep.subr.mxu0 0.0
    %v3868 = vand.u32 %v80, 4294901760
    %3869 = vmatpush1.msra.mxu0 %v3868
    %3870 = vmatprep.subr.mxu0 0.0
    %v3871 = vand.u32 %v81, 4294901760
    %3872 = vmatpush1.msra.mxu0 %v3871
    %3873 = vmatprep.subr.mxu0 0.0
    %v3874 = vand.u32 %v82, 4294901760
    %3875 = vmatpush1.msra.mxu0 %v3874
    %3876 = vmatprep.subr.mxu0 0.0
    %v3877 = vand.u32 %v83, 4294901760
    %3878 = vmatpush1.msra.mxu0 %v3877
    %3879 = vmatprep.subr.mxu0 0.0
    %v3880 = vand.u32 %v84, 4294901760
    %3881 = vmatpush1.msra.mxu0 %v3880
    %3882 = vmatprep.subr.mxu0 0.0
    %3883 = vmatpush1.msra.mxu0 0.0
    %3884 = vmatprep.subr.mxu0 0.0
    %3885 = vmatpush1.msra.mxu0 0.0
    %3886 = vmatprep.subr.mxu0 0.0
    %3887 = vmatpush1.msra.mxu0 0.0
    %3888 = vmatprep.subr.mxu0 0.0
    %3889 = vmatpush1.msra.mxu0 0.0
    %3890 = vmatprep.subr.mxu0 0.0
    %3891 = vmatpush1.msra.mxu0 0.0
    %3892 = vmatprep.subr.mxu0 0.0
    %3893 = vmatpush1.msra.mxu0 0.0
    %3894 = vmatprep.subr.mxu0 0.0
    %3895 = vmatpush1.msra.mxu0 0.0
    %3896 = vmatprep.subr.mxu0 0.0
    %3897 = vmatpush1.msra.mxu0 0.0
    %3898 = vmatprep.subr.mxu0 0.0
    %3899 = vmatpush1.msra.mxu0 0.0
    %3900 = vmatprep.subr.mxu0 0.0
    %3901 = vmatpush1.msra.mxu0 0.0
    %3902 = vmatprep.subr.mxu0 0.0
    %3903 = vmatpush1.msra.mxu0 0.0
    %3904 = vmatprep.subr.mxu0 0.0
    %3905 = vmatpush1.msra.mxu0 0.0
    %3906 = vmatprep.subr.mxu0 0.0
    %3907 = vmatpush1.msra.mxu0 0.0
    %3908 = vmatprep.subr.mxu0 0.0
    %3909 = vmatpush1.msra.mxu0 0.0
    %3910 = vmatprep.subr.mxu0 0.0
    %3911 = vmatpush1.msra.mxu0 0.0
    %3912 = vmatprep.subr.mxu0 0.0
    %3913 = vmatpush1.msra.mxu0 0.0
    %3914 = vmatprep.mubr.f32.mxu0 0.0
    %v3915 = vand.u32 %v3486, 4294901760
    %v3916 = vsub.f32 %v3486, %v3915
    %v3917 = vand.u32 %v3916, 4294901760
    %3918 = vmatmul.mubr.f32.gmra.mrb[0].mxu0 %v3917
    %v3919 = vpop.f32.mrb[0].mxu0
    %v3920 = vadd.f32 %v3831, %v3919
    %v3921 = vpop.f32.mrb[0].mxu0
    %3922 = vdwg.mxu0
    %3923 = vmatprep.subr.mxu0 0.0
    %v3924 = vand.u32 %v69, 4294901760
    %v3925 = vsub.f32 %v69, %v3924
    %v3926 = vand.u32 %v3925, 4294901760
    %3927 = vmatpush1.msra.mxu0 %v3926
    %3928 = vmatprep.subr.mxu0 0.0
    %v3929 = vand.u32 %v70, 4294901760
    %v3930 = vsub.f32 %v70, %v3929
    %v3931 = vand.u32 %v3930, 4294901760
    %3932 = vmatpush1.msra.mxu0 %v3931
    %3933 = vmatprep.subr.mxu0 0.0
    %v3934 = vand.u32 %v71, 4294901760
    %v3935 = vsub.f32 %v71, %v3934
    %v3936 = vand.u32 %v3935, 4294901760
    %3937 = vmatpush1.msra.mxu0 %v3936
    %3938 = vmatprep.subr.mxu0 0.0
    %v3939 = vand.u32 %v72, 4294901760
    %v3940 = vsub.f32 %v72, %v3939
    %v3941 = vand.u32 %v3940, 4294901760
    %3942 = vmatpush1.msra.mxu0 %v3941
    %3943 = vmatprep.subr.mxu0 0.0
    %v3944 = vand.u32 %v73, 4294901760
    %v3945 = vsub.f32 %v73, %v3944
    %v3946 = vand.u32 %v3945, 4294901760
    %3947 = vmatpush1.msra.mxu0 %v3946
    %3948 = vmatprep.subr.mxu0 0.0
    %v3949 = vand.u32 %v74, 4294901760
    %v3950 = vsub.f32 %v74, %v3949
    %v3951 = vand.u32 %v3950, 4294901760
    %3952 = vmatpush1.msra.mxu0 %v3951
    %3953 = vmatprep.subr.mxu0 0.0
    %v3954 = vand.u32 %v75, 4294901760
    %v3955 = vsub.f32 %v75, %v3954
    %v3956 = vand.u32 %v3955, 4294901760
    %3957 = vmatpush1.msra.mxu0 %v3956
    %3958 = vmatprep.subr.mxu0 0.0
    %v3959 = vand.u32 %v76, 4294901760
    %v3960 = vsub.f32 %v76, %v3959
    %v3961 = vand.u32 %v3960, 4294901760
    %3962 = vmatpush1.msra.mxu0 %v3961
    %3963 = vmatprep.subr.mxu0 0.0
    %v3964 = vand.u32 %v77, 4294901760
    %v3965 = vsub.f32 %v77, %v3964
    %v3966 = vand.u32 %v3965, 4294901760
    %3967 = vmatpush1.msra.mxu0 %v3966
    %3968 = vmatprep.subr.mxu0 0.0
    %v3969 = vand.u32 %v78, 4294901760
    %v3970 = vsub.f32 %v78, %v3969
    %v3971 = vand.u32 %v3970, 4294901760
    %3972 = vmatpush1.msra.mxu0 %v3971
    %3973 = vmatprep.subr.mxu0 0.0
    %v3974 = vand.u32 %v79, 4294901760
    %v3975 = vsub.f32 %v79, %v3974
    %v3976 = vand.u32 %v3975, 4294901760
    %3977 = vmatpush1.msra.mxu0 %v3976
    %3978 = vmatprep.subr.mxu0 0.0
    %v3979 = vand.u32 %v80, 4294901760
    %v3980 = vsub.f32 %v80, %v3979
    %v3981 = vand.u32 %v3980, 4294901760
    %3982 = vmatpush1.msra.mxu0 %v3981
    %3983 = vmatprep.subr.mxu0 0.0
    %v3984 = vand.u32 %v81, 4294901760
    %v3985 = vsub.f32 %v81, %v3984
    %v3986 = vand.u32 %v3985, 4294901760
    %3987 = vmatpush1.msra.mxu0 %v3986
    %3988 = vmatprep.subr.mxu0 0.0
    %v3989 = vand.u32 %v82, 4294901760
    %v3990 = vsub.f32 %v82, %v3989
    %v3991 = vand.u32 %v3990, 4294901760
    %3992 = vmatpush1.msra.mxu0 %v3991
    %3993 = vmatprep.subr.mxu0 0.0
    %v3994 = vand.u32 %v83, 4294901760
    %v3995 = vsub.f32 %v83, %v3994
    %v3996 = vand.u32 %v3995, 4294901760
    %3997 = vmatpush1.msra.mxu0 %v3996
    %3998 = vmatprep.subr.mxu0 0.0
    %v3999 = vand.u32 %v84, 4294901760
    %v4000 = vsub.f32 %v84, %v3999
    %v4001 = vand.u32 %v4000, 4294901760
    %4002 = vmatpush1.msra.mxu0 %v4001
    %4003 = vmatprep.subr.mxu0 0.0
    %4004 = vmatpush1.msra.mxu0 0.0
    %4005 = vmatprep.subr.mxu0 0.0
    %4006 = vmatpush1.msra.mxu0 0.0
    %4007 = vmatprep.subr.mxu0 0.0
    %4008 = vmatpush1.msra.mxu0 0.0
    %4009 = vmatprep.subr.mxu0 0.0
    %4010 = vmatpush1.msra.mxu0 0.0
    %4011 = vmatprep.subr.mxu0 0.0
    %4012 = vmatpush1.msra.mxu0 0.0
    %4013 = vmatprep.subr.mxu0 0.0
    %4014 = vmatpush1.msra.mxu0 0.0
    %4015 = vmatprep.subr.mxu0 0.0
    %4016 = vmatpush1.msra.mxu0 0.0
    %4017 = vmatprep.subr.mxu0 0.0
    %4018 = vmatpush1.msra.mxu0 0.0
    %4019 = vmatprep.subr.mxu0 0.0
    %4020 = vmatpush1.msra.mxu0 0.0
    %4021 = vmatprep.subr.mxu0 0.0
    %4022 = vmatpush1.msra.mxu0 0.0
    %4023 = vmatprep.subr.mxu0 0.0
    %4024 = vmatpush1.msra.mxu0 0.0
    %4025 = vmatprep.subr.mxu0 0.0
    %4026 = vmatpush1.msra.mxu0 0.0
    %4027 = vmatprep.subr.mxu0 0.0
    %4028 = vmatpush1.msra.mxu0 0.0
    %4029 = vmatprep.subr.mxu0 0.0
    %4030 = vmatpush1.msra.mxu0 0.0
    %4031 = vmatprep.subr.mxu0 0.0
    %4032 = vmatpush1.msra.mxu0 0.0
    %4033 = vmatprep.subr.mxu0 0.0
    %4034 = vmatpush1.msra.mxu0 0.0
    %4035 = vmatprep.mubr.f32.mxu0 0.0
    %v4036 = vand.u32 %v3486, 4294901760
    %4037 = vmatmul.mubr.f32.gmra.mrb[0].mxu0 %v4036
    %v4038 = vpop.f32.mrb[0].mxu0
    %v4039 = vadd.f32 %v3920, %v4038
    %v4040 = vpop.f32.mrb[0].mxu0
    %4041 = vdwg.mxu0
    %4042 = vmatprep.subr.mxu0 0.0
    %v4043 = vand.u32 %v69, 4294901760
    %4044 = vmatpush1.msra.mxu0 %v4043
    %4045 = vmatprep.subr.mxu0 0.0
    %v4046 = vand.u32 %v70, 4294901760
    %4047 = vmatpush1.msra.mxu0 %v4046
    %4048 = vmatprep.subr.mxu0 0.0
    %v4049 = vand.u32 %v71, 4294901760
    %4050 = vmatpush1.msra.mxu0 %v4049
    %4051 = vmatprep.subr.mxu0 0.0
    %v4052 = vand.u32 %v72, 4294901760
    %4053 = vmatpush1.msra.mxu0 %v4052
    %4054 = vmatprep.subr.mxu0 0.0
    %v4055 = vand.u32 %v73, 4294901760
    %4056 = vmatpush1.msra.mxu0 %v4055
    %4057 = vmatprep.subr.mxu0 0.0
    %v4058 = vand.u32 %v74, 4294901760
    %4059 = vmatpush1.msra.mxu0 %v4058
    %4060 = vmatprep.subr.mxu0 0.0
    %v4061 = vand.u32 %v75, 4294901760
    %4062 = vmatpush1.msra.mxu0 %v4061
    %4063 = vmatprep.subr.mxu0 0.0
    %v4064 = vand.u32 %v76, 4294901760
    %4065 = vmatpush1.msra.mxu0 %v4064
    %4066 = vmatprep.subr.mxu0 0.0
    %v4067 = vand.u32 %v77, 4294901760
    %4068 = vmatpush1.msra.mxu0 %v4067
    %4069 = vmatprep.subr.mxu0 0.0
    %v4070 = vand.u32 %v78, 4294901760
    %4071 = vmatpush1.msra.mxu0 %v4070
    %4072 = vmatprep.subr.mxu0 0.0
    %v4073 = vand.u32 %v79, 4294901760
    %4074 = vmatpush1.msra.mxu0 %v4073
    %4075 = vmatprep.subr.mxu0 0.0
    %v4076 = vand.u32 %v80, 4294901760
    %4077 = vmatpush1.msra.mxu0 %v4076
    %4078 = vmatprep.subr.mxu0 0.0
    %v4079 = vand.u32 %v81, 4294901760
    %4080 = vmatpush1.msra.mxu0 %v4079
    %4081 = vmatprep.subr.mxu0 0.0
    %v4082 = vand.u32 %v82, 4294901760
    %4083 = vmatpush1.msra.mxu0 %v4082
    %4084 = vmatprep.subr.mxu0 0.0
    %v4085 = vand.u32 %v83, 4294901760
    %4086 = vmatpush1.msra.mxu0 %v4085
    %4087 = vmatprep.subr.mxu0 0.0
    %v4088 = vand.u32 %v84, 4294901760
    %4089 = vmatpush1.msra.mxu0 %v4088
    %4090 = vmatprep.subr.mxu0 0.0
    %4091 = vmatpush1.msra.mxu0 0.0
    %4092 = vmatprep.subr.mxu0 0.0
    %4093 = vmatpush1.msra.mxu0 0.0
    %4094 = vmatprep.subr.mxu0 0.0
    %4095 = vmatpush1.msra.mxu0 0.0
    %4096 = vmatprep.subr.mxu0 0.0
    %4097 = vmatpush1.msra.mxu0 0.0
    %4098 = vmatprep.subr.mxu0 0.0
    %4099 = vmatpush1.msra.mxu0 0.0
    %4100 = vmatprep.subr.mxu0 0.0
    %4101 = vmatpush1.msra.mxu0 0.0
    %4102 = vmatprep.subr.mxu0 0.0
    %4103 = vmatpush1.msra.mxu0 0.0
    %4104 = vmatprep.subr.mxu0 0.0
    %4105 = vmatpush1.msra.mxu0 0.0
    %4106 = vmatprep.subr.mxu0 0.0
    %4107 = vmatpush1.msra.mxu0 0.0
    %4108 = vmatprep.subr.mxu0 0.0
    %4109 = vmatpush1.msra.mxu0 0.0
    %4110 = vmatprep.subr.mxu0 0.0
    %4111 = vmatpush1.msra.mxu0 0.0
    %4112 = vmatprep.subr.mxu0 0.0
    %4113 = vmatpush1.msra.mxu0 0.0
    %4114 = vmatprep.subr.mxu0 0.0
    %4115 = vmatpush1.msra.mxu0 0.0
    %4116 = vmatprep.subr.mxu0 0.0
    %4117 = vmatpush1.msra.mxu0 0.0
    %4118 = vmatprep.subr.mxu0 0.0
    %4119 = vmatpush1.msra.mxu0 0.0
    %4120 = vmatprep.subr.mxu0 0.0
    %4121 = vmatpush1.msra.mxu0 0.0
    %4122 = vmatprep.mubr.f32.mxu0 0.0
    %v4123 = vand.u32 %v3486, 4294901760
    %4124 = vmatmul.mubr.f32.gmra.mrb[0].mxu0 %v4123
    %v4125 = vpop.f32.mrb[0].mxu0
    %v4126 = vadd.f32 %v4039, %v4125
    %v4127 = vpop.f32.mrb[0].mxu0
    %4128 = vdwg.mxu0
    %v4129 = vadd.f32 %v890, %v4126
    %v4130 = vtanh.pop %v4129
    %4131 = vst [vmem:[#allocation8 + $0x20] sm:$0xff] %v4130
    %4132 = vmatprep.subr.mxu0 0.0
    %v4133 = vand.u32 %v69, 4294901760
    %4134 = vmatpush1.msra.mxu0 %v4133
    %4135 = vmatprep.subr.mxu0 0.0
    %v4136 = vand.u32 %v70, 4294901760
    %4137 = vmatpush1.msra.mxu0 %v4136
    %4138 = vmatprep.subr.mxu0 0.0
    %v4139 = vand.u32 %v71, 4294901760
    %4140 = vmatpush1.msra.mxu0 %v4139
    %4141 = vmatprep.subr.mxu0 0.0
    %v4142 = vand.u32 %v72, 4294901760
    %4143 = vmatpush1.msra.mxu0 %v4142
    %4144 = vmatprep.subr.mxu0 0.0
    %v4145 = vand.u32 %v73, 4294901760
    %4146 = vmatpush1.msra.mxu0 %v4145
    %4147 = vmatprep.subr.mxu0 0.0
    %v4148 = vand.u32 %v74, 4294901760
    %4149 = vmatpush1.msra.mxu0 %v4148
    %4150 = vmatprep.subr.mxu0 0.0
    %v4151 = vand.u32 %v75, 4294901760
    %4152 = vmatpush1.msra.mxu0 %v4151
    %4153 = vmatprep.subr.mxu0 0.0
    %v4154 = vand.u32 %v76, 4294901760
    %4155 = vmatpush1.msra.mxu0 %v4154
    %4156 = vmatprep.subr.mxu0 0.0
    %v4157 = vand.u32 %v77, 4294901760
    %4158 = vmatpush1.msra.mxu0 %v4157
    %4159 = vmatprep.subr.mxu0 0.0
    %v4160 = vand.u32 %v78, 4294901760
    %4161 = vmatpush1.msra.mxu0 %v4160
    %4162 = vmatprep.subr.mxu0 0.0
    %v4163 = vand.u32 %v79, 4294901760
    %4164 = vmatpush1.msra.mxu0 %v4163
    %4165 = vmatprep.subr.mxu0 0.0
    %v4166 = vand.u32 %v80, 4294901760
    %4167 = vmatpush1.msra.mxu0 %v4166
    %4168 = vmatprep.subr.mxu0 0.0
    %v4169 = vand.u32 %v81, 4294901760
    %4170 = vmatpush1.msra.mxu0 %v4169
    %4171 = vmatprep.subr.mxu0 0.0
    %v4172 = vand.u32 %v82, 4294901760
    %4173 = vmatpush1.msra.mxu0 %v4172
    %4174 = vmatprep.subr.mxu0 0.0
    %v4175 = vand.u32 %v83, 4294901760
    %4176 = vmatpush1.msra.mxu0 %v4175
    %4177 = vmatprep.subr.mxu0 0.0
    %v4178 = vand.u32 %v84, 4294901760
    %4179 = vmatpush1.msra.mxu0 %v4178
    %4180 = vmatprep.subr.mxu0 0.0
    %4181 = vmatpush1.msra.mxu0 0.0
    %4182 = vmatprep.subr.mxu0 0.0
    %4183 = vmatpush1.msra.mxu0 0.0
    %4184 = vmatprep.subr.mxu0 0.0
    %4185 = vmatpush1.msra.mxu0 0.0
    %4186 = vmatprep.subr.mxu0 0.0
    %4187 = vmatpush1.msra.mxu0 0.0
    %4188 = vmatprep.subr.mxu0 0.0
    %4189 = vmatpush1.msra.mxu0 0.0
    %4190 = vmatprep.subr.mxu0 0.0
    %4191 = vmatpush1.msra.mxu0 0.0
    %4192 = vmatprep.subr.mxu0 0.0
    %4193 = vmatpush1.msra.mxu0 0.0
    %4194 = vmatprep.subr.mxu0 0.0
    %4195 = vmatpush1.msra.mxu0 0.0
    %4196 = vmatprep.subr.mxu0 0.0
    %4197 = vmatpush1.msra.mxu0 0.0
    %4198 = vmatprep.subr.mxu0 0.0
    %4199 = vmatpush1.msra.mxu0 0.0
    %4200 = vmatprep.subr.mxu0 0.0
    %4201 = vmatpush1.msra.mxu0 0.0
    %4202 = vmatprep.subr.mxu0 0.0
    %4203 = vmatpush1.msra.mxu0 0.0
    %4204 = vmatprep.subr.mxu0 0.0
    %4205 = vmatpush1.msra.mxu0 0.0
    %4206 = vmatprep.subr.mxu0 0.0
    %4207 = vmatpush1.msra.mxu0 0.0
    %4208 = vmatprep.subr.mxu0 0.0
    %4209 = vmatpush1.msra.mxu0 0.0
    %4210 = vmatprep.subr.mxu0 0.0
    %4211 = vmatpush1.msra.mxu0 0.0
    %4212 = vmatprep.mubr.f32.mxu0 0.0
    %v4213 = vand.u32 %v4130, 4294901760
    %v4214 = vsub.f32 %v4130, %v4213
    %v4215 = vand.u32 %v4214, 4294901760
    %v4216 = vsub.f32 %v4214, %v4215
    %v4217 = vand.u32 %v4216, 4294901760
    %4218 = vmatmul.mubr.f32.gmra.mrb[0].mxu0 %v4217
    %v4219 = vpop.f32.mrb[0].mxu0
    %v4220 = vadd.f32 0.0, %v4219
    %v4221 = vpop.f32.mrb[0].mxu0
    %4222 = vdwg.mxu0
    %4223 = vmatprep.subr.mxu0 0.0
    %v4224 = vand.u32 %v69, 4294901760
    %v4225 = vsub.f32 %v69, %v4224
    %v4226 = vand.u32 %v4225, 4294901760
    %v4227 = vsub.f32 %v4225, %v4226
    %v4228 = vand.u32 %v4227, 4294901760
    %4229 = vmatpush1.msra.mxu0 %v4228
    %4230 = vmatprep.subr.mxu0 0.0
    %v4231 = vand.u32 %v70, 4294901760
    %v4232 = vsub.f32 %v70, %v4231
    %v4233 = vand.u32 %v4232, 4294901760
    %v4234 = vsub.f32 %v4232, %v4233
    %v4235 = vand.u32 %v4234, 4294901760
    %4236 = vmatpush1.msra.mxu0 %v4235
    %4237 = vmatprep.subr.mxu0 0.0
    %v4238 = vand.u32 %v71, 4294901760
    %v4239 = vsub.f32 %v71, %v4238
    %v4240 = vand.u32 %v4239, 4294901760
    %v4241 = vsub.f32 %v4239, %v4240
    %v4242 = vand.u32 %v4241, 4294901760
    %4243 = vmatpush1.msra.mxu0 %v4242
    %4244 = vmatprep.subr.mxu0 0.0
    %v4245 = vand.u32 %v72, 4294901760
    %v4246 = vsub.f32 %v72, %v4245
    %v4247 = vand.u32 %v4246, 4294901760
    %v4248 = vsub.f32 %v4246, %v4247
    %v4249 = vand.u32 %v4248, 4294901760
    %4250 = vmatpush1.msra.mxu0 %v4249
    %4251 = vmatprep.subr.mxu0 0.0
    %v4252 = vand.u32 %v73, 4294901760
    %v4253 = vsub.f32 %v73, %v4252
    %v4254 = vand.u32 %v4253, 4294901760
    %v4255 = vsub.f32 %v4253, %v4254
    %v4256 = vand.u32 %v4255, 4294901760
    %4257 = vmatpush1.msra.mxu0 %v4256
    %4258 = vmatprep.subr.mxu0 0.0
    %v4259 = vand.u32 %v74, 4294901760
    %v4260 = vsub.f32 %v74, %v4259
    %v4261 = vand.u32 %v4260, 4294901760
    %v4262 = vsub.f32 %v4260, %v4261
    %v4263 = vand.u32 %v4262, 4294901760
    %4264 = vmatpush1.msra.mxu0 %v4263
    %4265 = vmatprep.subr.mxu0 0.0
    %v4266 = vand.u32 %v75, 4294901760
    %v4267 = vsub.f32 %v75, %v4266
    %v4268 = vand.u32 %v4267, 4294901760
    %v4269 = vsub.f32 %v4267, %v4268
    %v4270 = vand.u32 %v4269, 4294901760
    %4271 = vmatpush1.msra.mxu0 %v4270
    %4272 = vmatprep.subr.mxu0 0.0
    %v4273 = vand.u32 %v76, 4294901760
    %v4274 = vsub.f32 %v76, %v4273
    %v4275 = vand.u32 %v4274, 4294901760
    %v4276 = vsub.f32 %v4274, %v4275
    %v4277 = vand.u32 %v4276, 4294901760
    %4278 = vmatpush1.msra.mxu0 %v4277
    %4279 = vmatprep.subr.mxu0 0.0
    %v4280 = vand.u32 %v77, 4294901760
    %v4281 = vsub.f32 %v77, %v4280
    %v4282 = vand.u32 %v4281, 4294901760
    %v4283 = vsub.f32 %v4281, %v4282
    %v4284 = vand.u32 %v4283, 4294901760
    %4285 = vmatpush1.msra.mxu0 %v4284
    %4286 = vmatprep.subr.mxu0 0.0
    %v4287 = vand.u32 %v78, 4294901760
    %v4288 = vsub.f32 %v78, %v4287
    %v4289 = vand.u32 %v4288, 4294901760
    %v4290 = vsub.f32 %v4288, %v4289
    %v4291 = vand.u32 %v4290, 4294901760
    %4292 = vmatpush1.msra.mxu0 %v4291
    %4293 = vmatprep.subr.mxu0 0.0
    %v4294 = vand.u32 %v79, 4294901760
    %v4295 = vsub.f32 %v79, %v4294
    %v4296 = vand.u32 %v4295, 4294901760
    %v4297 = vsub.f32 %v4295, %v4296
    %v4298 = vand.u32 %v4297, 4294901760
    %4299 = vmatpush1.msra.mxu0 %v4298
    %4300 = vmatprep.subr.mxu0 0.0
    %v4301 = vand.u32 %v80, 4294901760
    %v4302 = vsub.f32 %v80, %v4301
    %v4303 = vand.u32 %v4302, 4294901760
    %v4304 = vsub.f32 %v4302, %v4303
    %v4305 = vand.u32 %v4304, 4294901760
    %4306 = vmatpush1.msra.mxu0 %v4305
    %4307 = vmatprep.subr.mxu0 0.0
    %v4308 = vand.u32 %v81, 4294901760
    %v4309 = vsub.f32 %v81, %v4308
    %v4310 = vand.u32 %v4309, 4294901760
    %v4311 = vsub.f32 %v4309, %v4310
    %v4312 = vand.u32 %v4311, 4294901760
    %4313 = vmatpush1.msra.mxu0 %v4312
    %4314 = vmatprep.subr.mxu0 0.0
    %v4315 = vand.u32 %v82, 4294901760
    %v4316 = vsub.f32 %v82, %v4315
    %v4317 = vand.u32 %v4316, 4294901760
    %v4318 = vsub.f32 %v4316, %v4317
    %v4319 = vand.u32 %v4318, 4294901760
    %4320 = vmatpush1.msra.mxu0 %v4319
    %4321 = vmatprep.subr.mxu0 0.0
    %v4322 = vand.u32 %v83, 4294901760
    %v4323 = vsub.f32 %v83, %v4322
    %v4324 = vand.u32 %v4323, 4294901760
    %v4325 = vsub.f32 %v4323, %v4324
    %v4326 = vand.u32 %v4325, 4294901760
    %4327 = vmatpush1.msra.mxu0 %v4326
    %4328 = vmatprep.subr.mxu0 0.0
    %v4329 = vand.u32 %v84, 4294901760
    %v4330 = vsub.f32 %v84, %v4329
    %v4331 = vand.u32 %v4330, 4294901760
    %v4332 = vsub.f32 %v4330, %v4331
    %v4333 = vand.u32 %v4332, 4294901760
    %4334 = vmatpush1.msra.mxu0 %v4333
    %4335 = vmatprep.subr.mxu0 0.0
    %4336 = vmatpush1.msra.mxu0 0.0
    %4337 = vmatprep.subr.mxu0 0.0
    %4338 = vmatpush1.msra.mxu0 0.0
    %4339 = vmatprep.subr.mxu0 0.0
    %4340 = vmatpush1.msra.mxu0 0.0
    %4341 = vmatprep.subr.mxu0 0.0
    %4342 = vmatpush1.msra.mxu0 0.0
    %4343 = vmatprep.subr.mxu0 0.0
    %4344 = vmatpush1.msra.mxu0 0.0
    %4345 = vmatprep.subr.mxu0 0.0
    %4346 = vmatpush1.msra.mxu0 0.0
    %4347 = vmatprep.subr.mxu0 0.0
    %4348 = vmatpush1.msra.mxu0 0.0
    %4349 = vmatprep.subr.mxu0 0.0
    %4350 = vmatpush1.msra.mxu0 0.0
    %4351 = vmatprep.subr.mxu0 0.0
    %4352 = vmatpush1.msra.mxu0 0.0
    %4353 = vmatprep.subr.mxu0 0.0
    %4354 = vmatpush1.msra.mxu0 0.0
    %4355 = vmatprep.subr.mxu0 0.0
    %4356 = vmatpush1.msra.mxu0 0.0
    %4357 = vmatprep.subr.mxu0 0.0
    %4358 = vmatpush1.msra.mxu0 0.0
    %4359 = vmatprep.subr.mxu0 0.0
    %4360 = vmatpush1.msra.mxu0 0.0
    %4361 = vmatprep.subr.mxu0 0.0
    %4362 = vmatpush1.msra.mxu0 0.0
    %4363 = vmatprep.subr.mxu0 0.0
    %4364 = vmatpush1.msra.mxu0 0.0
    %4365 = vmatprep.subr.mxu0 0.0
    %4366 = vmatpush1.msra.mxu0 0.0
    %4367 = vmatprep.mubr.f32.mxu0 0.0
    %v4368 = vand.u32 %v4130, 4294901760
    %4369 = vmatmul.mubr.f32.gmra.mrb[0].mxu0 %v4368
    %v4370 = vpop.f32.mrb[0].mxu0
    %v4371 = vadd.f32 %v4220, %v4370
    %v4372 = vpop.f32.mrb[0].mxu0
    %4373 = vdwg.mxu0
    %4374 = vmatprep.subr.mxu0 0.0
    %v4375 = vand.u32 %v69, 4294901760
    %v4376 = vsub.f32 %v69, %v4375
    %4377 = vmatpush1.msra.mxu0 %v4376
    %4378 = vmatprep.subr.mxu0 0.0
    %v4379 = vand.u32 %v70, 4294901760
    %v4380 = vsub.f32 %v70, %v4379
    %4381 = vmatpush1.msra.mxu0 %v4380
    %4382 = vmatprep.subr.mxu0 0.0
    %v4383 = vand.u32 %v71, 4294901760
    %v4384 = vsub.f32 %v71, %v4383
    %4385 = vmatpush1.msra.mxu0 %v4384
    %4386 = vmatprep.subr.mxu0 0.0
    %v4387 = vand.u32 %v72, 4294901760
    %v4388 = vsub.f32 %v72, %v4387
    %4389 = vmatpush1.msra.mxu0 %v4388
    %4390 = vmatprep.subr.mxu0 0.0
    %v4391 = vand.u32 %v73, 4294901760
    %v4392 = vsub.f32 %v73, %v4391
    %4393 = vmatpush1.msra.mxu0 %v4392
    %4394 = vmatprep.subr.mxu0 0.0
    %v4395 = vand.u32 %v74, 4294901760
    %v4396 = vsub.f32 %v74, %v4395
    %4397 = vmatpush1.msra.mxu0 %v4396
    %4398 = vmatprep.subr.mxu0 0.0
    %v4399 = vand.u32 %v75, 4294901760
    %v4400 = vsub.f32 %v75, %v4399
    %4401 = vmatpush1.msra.mxu0 %v4400
    %4402 = vmatprep.subr.mxu0 0.0
    %v4403 = vand.u32 %v76, 4294901760
    %v4404 = vsub.f32 %v76, %v4403
    %4405 = vmatpush1.msra.mxu0 %v4404
    %4406 = vmatprep.subr.mxu0 0.0
    %v4407 = vand.u32 %v77, 4294901760
    %v4408 = vsub.f32 %v77, %v4407
    %4409 = vmatpush1.msra.mxu0 %v4408
    %4410 = vmatprep.subr.mxu0 0.0
    %v4411 = vand.u32 %v78, 4294901760
    %v4412 = vsub.f32 %v78, %v4411
    %4413 = vmatpush1.msra.mxu0 %v4412
    %4414 = vmatprep.subr.mxu0 0.0
    %v4415 = vand.u32 %v79, 4294901760
    %v4416 = vsub.f32 %v79, %v4415
    %4417 = vmatpush1.msra.mxu0 %v4416
    %4418 = vmatprep.subr.mxu0 0.0
    %v4419 = vand.u32 %v80, 4294901760
    %v4420 = vsub.f32 %v80, %v4419
    %4421 = vmatpush1.msra.mxu0 %v4420
    %4422 = vmatprep.subr.mxu0 0.0
    %v4423 = vand.u32 %v81, 4294901760
    %v4424 = vsub.f32 %v81, %v4423
    %4425 = vmatpush1.msra.mxu0 %v4424
    %4426 = vmatprep.subr.mxu0 0.0
    %v4427 = vand.u32 %v82, 4294901760
    %v4428 = vsub.f32 %v82, %v4427
    %4429 = vmatpush1.msra.mxu0 %v4428
    %4430 = vmatprep.subr.mxu0 0.0
    %v4431 = vand.u32 %v83, 4294901760
    %v4432 = vsub.f32 %v83, %v4431
    %4433 = vmatpush1.msra.mxu0 %v4432
    %4434 = vmatprep.subr.mxu0 0.0
    %v4435 = vand.u32 %v84, 4294901760
    %v4436 = vsub.f32 %v84, %v4435
    %4437 = vmatpush1.msra.mxu0 %v4436
    %4438 = vmatprep.subr.mxu0 0.0
    %4439 = vmatpush1.msra.mxu0 0.0
    %4440 = vmatprep.subr.mxu0 0.0
    %4441 = vmatpush1.msra.mxu0 0.0
    %4442 = vmatprep.subr.mxu0 0.0
    %4443 = vmatpush1.msra.mxu0 0.0
    %4444 = vmatprep.subr.mxu0 0.0
    %4445 = vmatpush1.msra.mxu0 0.0
    %4446 = vmatprep.subr.mxu0 0.0
    %4447 = vmatpush1.msra.mxu0 0.0
    %4448 = vmatprep.subr.mxu0 0.0
    %4449 = vmatpush1.msra.mxu0 0.0
    %4450 = vmatprep.subr.mxu0 0.0
    %4451 = vmatpush1.msra.mxu0 0.0
    %4452 = vmatprep.subr.mxu0 0.0
    %4453 = vmatpush1.msra.mxu0 0.0
    %4454 = vmatprep.subr.mxu0 0.0
    %4455 = vmatpush1.msra.mxu0 0.0
    %4456 = vmatprep.subr.mxu0 0.0
    %4457 = vmatpush1.msra.mxu0 0.0
    %4458 = vmatprep.subr.mxu0 0.0
    %4459 = vmatpush1.msra.mxu0 0.0
    %4460 = vmatprep.subr.mxu0 0.0
    %4461 = vmatpush1.msra.mxu0 0.0
    %4462 = vmatprep.subr.mxu0 0.0
    %4463 = vmatpush1.msra.mxu0 0.0
    %4464 = vmatprep.subr.mxu0 0.0
    %4465 = vmatpush1.msra.mxu0 0.0
    %4466 = vmatprep.subr.mxu0 0.0
    %4467 = vmatpush1.msra.mxu0 0.0
    %4468 = vmatprep.subr.mxu0 0.0
    %4469 = vmatpush1.msra.mxu0 0.0
    %4470 = vmatprep.mubr.f32.mxu0 0.0
    %v4471 = vand.u32 %v4130, 4294901760
    %v4472 = vsub.f32 %v4130, %v4471
    %4473 = vmatmul.mubr.f32.gmra.mrb[0].mxu0 %v4472
    %v4474 = vpop.f32.mrb[0].mxu0
    %v4475 = vadd.f32 %v4371, %v4474
    %v4476 = vpop.f32.mrb[0].mxu0
    %4477 = vdwg.mxu0
    %4478 = vmatprep.subr.mxu0 0.0
    %v4479 = vand.u32 %v69, 4294901760
    %4480 = vmatpush1.msra.mxu0 %v4479
    %4481 = vmatprep.subr.mxu0 0.0
    %v4482 = vand.u32 %v70, 4294901760
    %4483 = vmatpush1.msra.mxu0 %v4482
    %4484 = vmatprep.subr.mxu0 0.0
    %v4485 = vand.u32 %v71, 4294901760
    %4486 = vmatpush1.msra.mxu0 %v4485
    %4487 = vmatprep.subr.mxu0 0.0
    %v4488 = vand.u32 %v72, 4294901760
    %4489 = vmatpush1.msra.mxu0 %v4488
    %4490 = vmatprep.subr.mxu0 0.0
    %v4491 = vand.u32 %v73, 4294901760
    %4492 = vmatpush1.msra.mxu0 %v4491
    %4493 = vmatprep.subr.mxu0 0.0
    %v4494 = vand.u32 %v74, 4294901760
    %4495 = vmatpush1.msra.mxu0 %v4494
    %4496 = vmatprep.subr.mxu0 0.0
    %v4497 = vand.u32 %v75, 4294901760
    %4498 = vmatpush1.msra.mxu0 %v4497
    %4499 = vmatprep.subr.mxu0 0.0
    %v4500 = vand.u32 %v76, 4294901760
    %4501 = vmatpush1.msra.mxu0 %v4500
    %4502 = vmatprep.subr.mxu0 0.0
    %v4503 = vand.u32 %v77, 4294901760
    %4504 = vmatpush1.msra.mxu0 %v4503
    %4505 = vmatprep.subr.mxu0 0.0
    %v4506 = vand.u32 %v78, 4294901760
    %4507 = vmatpush1.msra.mxu0 %v4506
    %4508 = vmatprep.subr.mxu0 0.0
    %v4509 = vand.u32 %v79, 4294901760
    %4510 = vmatpush1.msra.mxu0 %v4509
    %4511 = vmatprep.subr.mxu0 0.0
    %v4512 = vand.u32 %v80, 4294901760
    %4513 = vmatpush1.msra.mxu0 %v4512
    %4514 = vmatprep.subr.mxu0 0.0
    %v4515 = vand.u32 %v81, 4294901760
    %4516 = vmatpush1.msra.mxu0 %v4515
    %4517 = vmatprep.subr.mxu0 0.0
    %v4518 = vand.u32 %v82, 4294901760
    %4519 = vmatpush1.msra.mxu0 %v4518
    %4520 = vmatprep.subr.mxu0 0.0
    %v4521 = vand.u32 %v83, 4294901760
    %4522 = vmatpush1.msra.mxu0 %v4521
    %4523 = vmatprep.subr.mxu0 0.0
    %v4524 = vand.u32 %v84, 4294901760
    %4525 = vmatpush1.msra.mxu0 %v4524
    %4526 = vmatprep.subr.mxu0 0.0
    %4527 = vmatpush1.msra.mxu0 0.0
    %4528 = vmatprep.subr.mxu0 0.0
    %4529 = vmatpush1.msra.mxu0 0.0
    %4530 = vmatprep.subr.mxu0 0.0
    %4531 = vmatpush1.msra.mxu0 0.0
    %4532 = vmatprep.subr.mxu0 0.0
    %4533 = vmatpush1.msra.mxu0 0.0
    %4534 = vmatprep.subr.mxu0 0.0
    %4535 = vmatpush1.msra.mxu0 0.0
    %4536 = vmatprep.subr.mxu0 0.0
    %4537 = vmatpush1.msra.mxu0 0.0
    %4538 = vmatprep.subr.mxu0 0.0
    %4539 = vmatpush1.msra.mxu0 0.0
    %4540 = vmatprep.subr.mxu0 0.0
    %4541 = vmatpush1.msra.mxu0 0.0
    %4542 = vmatprep.subr.mxu0 0.0
    %4543 = vmatpush1.msra.mxu0 0.0
    %4544 = vmatprep.subr.mxu0 0.0
    %4545 = vmatpush1.msra.mxu0 0.0
    %4546 = vmatprep.subr.mxu0 0.0
    %4547 = vmatpush1.msra.mxu0 0.0
    %4548 = vmatprep.subr.mxu0 0.0
    %4549 = vmatpush1.msra.mxu0 0.0
    %4550 = vmatprep.subr.mxu0 0.0
    %4551 = vmatpush1.msra.mxu0 0.0
    %4552 = vmatprep.subr.mxu0 0.0
    %4553 = vmatpush1.msra.mxu0 0.0
    %4554 = vmatprep.subr.mxu0 0.0
    %4555 = vmatpush1.msra.mxu0 0.0
    %4556 = vmatprep.subr.mxu0 0.0
    %4557 = vmatpush1.msra.mxu0 0.0
    %4558 = vmatprep.mubr.f32.mxu0 0.0
    %v4559 = vand.u32 %v4130, 4294901760
    %v4560 = vsub.f32 %v4130, %v4559
    %v4561 = vand.u32 %v4560, 4294901760
    %4562 = vmatmul.mubr.f32.gmra.mrb[0].mxu0 %v4561
    %v4563 = vpop.f32.mrb[0].mxu0
    %v4564 = vadd.f32 %v4475, %v4563
    %v4565 = vpop.f32.mrb[0].mxu0
    %4566 = vdwg.mxu0
    %4567 = vmatprep.subr.mxu0 0.0
    %v4568 = vand.u32 %v69, 4294901760
    %v4569 = vsub.f32 %v69, %v4568
    %v4570 = vand.u32 %v4569, 4294901760
    %4571 = vmatpush1.msra.mxu0 %v4570
    %4572 = vmatprep.subr.mxu0 0.0
    %v4573 = vand.u32 %v70, 4294901760
    %v4574 = vsub.f32 %v70, %v4573
    %v4575 = vand.u32 %v4574, 4294901760
    %4576 = vmatpush1.msra.mxu0 %v4575
    %4577 = vmatprep.subr.mxu0 0.0
    %v4578 = vand.u32 %v71, 4294901760
    %v4579 = vsub.f32 %v71, %v4578
    %v4580 = vand.u32 %v4579, 4294901760
    %4581 = vmatpush1.msra.mxu0 %v4580
    %4582 = vmatprep.subr.mxu0 0.0
    %v4583 = vand.u32 %v72, 4294901760
    %v4584 = vsub.f32 %v72, %v4583
    %v4585 = vand.u32 %v4584, 4294901760
    %4586 = vmatpush1.msra.mxu0 %v4585
    %4587 = vmatprep.subr.mxu0 0.0
    %v4588 = vand.u32 %v73, 4294901760
    %v4589 = vsub.f32 %v73, %v4588
    %v4590 = vand.u32 %v4589, 4294901760
    %4591 = vmatpush1.msra.mxu0 %v4590
    %4592 = vmatprep.subr.mxu0 0.0
    %v4593 = vand.u32 %v74, 4294901760
    %v4594 = vsub.f32 %v74, %v4593
    %v4595 = vand.u32 %v4594, 4294901760
    %4596 = vmatpush1.msra.mxu0 %v4595
    %4597 = vmatprep.subr.mxu0 0.0
    %v4598 = vand.u32 %v75, 4294901760
    %v4599 = vsub.f32 %v75, %v4598
    %v4600 = vand.u32 %v4599, 4294901760
    %4601 = vmatpush1.msra.mxu0 %v4600
    %4602 = vmatprep.subr.mxu0 0.0
    %v4603 = vand.u32 %v76, 4294901760
    %v4604 = vsub.f32 %v76, %v4603
    %v4605 = vand.u32 %v4604, 4294901760
    %4606 = vmatpush1.msra.mxu0 %v4605
    %4607 = vmatprep.subr.mxu0 0.0
    %v4608 = vand.u32 %v77, 4294901760
    %v4609 = vsub.f32 %v77, %v4608
    %v4610 = vand.u32 %v4609, 4294901760
    %4611 = vmatpush1.msra.mxu0 %v4610
    %4612 = vmatprep.subr.mxu0 0.0
    %v4613 = vand.u32 %v78, 4294901760
    %v4614 = vsub.f32 %v78, %v4613
    %v4615 = vand.u32 %v4614, 4294901760
    %4616 = vmatpush1.msra.mxu0 %v4615
    %4617 = vmatprep.subr.mxu0 0.0
    %v4618 = vand.u32 %v79, 4294901760
    %v4619 = vsub.f32 %v79, %v4618
    %v4620 = vand.u32 %v4619, 4294901760
    %4621 = vmatpush1.msra.mxu0 %v4620
    %4622 = vmatprep.subr.mxu0 0.0
    %v4623 = vand.u32 %v80, 4294901760
    %v4624 = vsub.f32 %v80, %v4623
    %v4625 = vand.u32 %v4624, 4294901760
    %4626 = vmatpush1.msra.mxu0 %v4625
    %4627 = vmatprep.subr.mxu0 0.0
    %v4628 = vand.u32 %v81, 4294901760
    %v4629 = vsub.f32 %v81, %v4628
    %v4630 = vand.u32 %v4629, 4294901760
    %4631 = vmatpush1.msra.mxu0 %v4630
    %4632 = vmatprep.subr.mxu0 0.0
    %v4633 = vand.u32 %v82, 4294901760
    %v4634 = vsub.f32 %v82, %v4633
    %v4635 = vand.u32 %v4634, 4294901760
    %4636 = vmatpush1.msra.mxu0 %v4635
    %4637 = vmatprep.subr.mxu0 0.0
    %v4638 = vand.u32 %v83, 4294901760
    %v4639 = vsub.f32 %v83, %v4638
    %v4640 = vand.u32 %v4639, 4294901760
    %4641 = vmatpush1.msra.mxu0 %v4640
    %4642 = vmatprep.subr.mxu0 0.0
    %v4643 = vand.u32 %v84, 4294901760
    %v4644 = vsub.f32 %v84, %v4643
    %v4645 = vand.u32 %v4644, 4294901760
    %4646 = vmatpush1.msra.mxu0 %v4645
    %4647 = vmatprep.subr.mxu0 0.0
    %4648 = vmatpush1.msra.mxu0 0.0
    %4649 = vmatprep.subr.mxu0 0.0
    %4650 = vmatpush1.msra.mxu0 0.0
    %4651 = vmatprep.subr.mxu0 0.0
    %4652 = vmatpush1.msra.mxu0 0.0
    %4653 = vmatprep.subr.mxu0 0.0
    %4654 = vmatpush1.msra.mxu0 0.0
    %4655 = vmatprep.subr.mxu0 0.0
    %4656 = vmatpush1.msra.mxu0 0.0
    %4657 = vmatprep.subr.mxu0 0.0
    %4658 = vmatpush1.msra.mxu0 0.0
    %4659 = vmatprep.subr.mxu0 0.0
    %4660 = vmatpush1.msra.mxu0 0.0
    %4661 = vmatprep.subr.mxu0 0.0
    %4662 = vmatpush1.msra.mxu0 0.0
    %4663 = vmatprep.subr.mxu0 0.0
    %4664 = vmatpush1.msra.mxu0 0.0
    %4665 = vmatprep.subr.mxu0 0.0
    %4666 = vmatpush1.msra.mxu0 0.0
    %4667 = vmatprep.subr.mxu0 0.0
    %4668 = vmatpush1.msra.mxu0 0.0
    %4669 = vmatprep.subr.mxu0 0.0
    %4670 = vmatpush1.msra.mxu0 0.0
    %4671 = vmatprep.subr.mxu0 0.0
    %4672 = vmatpush1.msra.mxu0 0.0
    %4673 = vmatprep.subr.mxu0 0.0
    %4674 = vmatpush1.msra.mxu0 0.0
    %4675 = vmatprep.subr.mxu0 0.0
    %4676 = vmatpush1.msra.mxu0 0.0
    %4677 = vmatprep.subr.mxu0 0.0
    %4678 = vmatpush1.msra.mxu0 0.0
    %4679 = vmatprep.mubr.f32.mxu0 0.0
    %v4680 = vand.u32 %v4130, 4294901760
    %4681 = vmatmul.mubr.f32.gmra.mrb[0].mxu0 %v4680
    %v4682 = vpop.f32.mrb[0].mxu0
    %v4683 = vadd.f32 %v4564, %v4682
    %v4684 = vpop.f32.mrb[0].mxu0
    %4685 = vdwg.mxu0
    %4686 = vmatprep.subr.mxu0 0.0
    %v4687 = vand.u32 %v69, 4294901760
    %4688 = vmatpush1.msra.mxu0 %v4687
    %4689 = vmatprep.subr.mxu0 0.0
    %v4690 = vand.u32 %v70, 4294901760
    %4691 = vmatpush1.msra.mxu0 %v4690
    %4692 = vmatprep.subr.mxu0 0.0
    %v4693 = vand.u32 %v71, 4294901760
    %4694 = vmatpush1.msra.mxu0 %v4693
    %4695 = vmatprep.subr.mxu0 0.0
    %v4696 = vand.u32 %v72, 4294901760
    %4697 = vmatpush1.msra.mxu0 %v4696
    %4698 = vmatprep.subr.mxu0 0.0
    %v4699 = vand.u32 %v73, 4294901760
    %4700 = vmatpush1.msra.mxu0 %v4699
    %4701 = vmatprep.subr.mxu0 0.0
    %v4702 = vand.u32 %v74, 4294901760
    %4703 = vmatpush1.msra.mxu0 %v4702
    %4704 = vmatprep.subr.mxu0 0.0
    %v4705 = vand.u32 %v75, 4294901760
    %4706 = vmatpush1.msra.mxu0 %v4705
    %4707 = vmatprep.subr.mxu0 0.0
    %v4708 = vand.u32 %v76, 4294901760
    %4709 = vmatpush1.msra.mxu0 %v4708
    %4710 = vmatprep.subr.mxu0 0.0
    %v4711 = vand.u32 %v77, 4294901760
    %4712 = vmatpush1.msra.mxu0 %v4711
    %4713 = vmatprep.subr.mxu0 0.0
    %v4714 = vand.u32 %v78, 4294901760
    %4715 = vmatpush1.msra.mxu0 %v4714
    %4716 = vmatprep.subr.mxu0 0.0
    %v4717 = vand.u32 %v79, 4294901760
    %4718 = vmatpush1.msra.mxu0 %v4717
    %4719 = vmatprep.subr.mxu0 0.0
    %v4720 = vand.u32 %v80, 4294901760
    %4721 = vmatpush1.msra.mxu0 %v4720
    %4722 = vmatprep.subr.mxu0 0.0
    %v4723 = vand.u32 %v81, 4294901760
    %4724 = vmatpush1.msra.mxu0 %v4723
    %4725 = vmatprep.subr.mxu0 0.0
    %v4726 = vand.u32 %v82, 4294901760
    %4727 = vmatpush1.msra.mxu0 %v4726
    %4728 = vmatprep.subr.mxu0 0.0
    %v4729 = vand.u32 %v83, 4294901760
    %4730 = vmatpush1.msra.mxu0 %v4729
    %4731 = vmatprep.subr.mxu0 0.0
    %v4732 = vand.u32 %v84, 4294901760
    %4733 = vmatpush1.msra.mxu0 %v4732
    %4734 = vmatprep.subr.mxu0 0.0
    %4735 = vmatpush1.msra.mxu0 0.0
    %4736 = vmatprep.subr.mxu0 0.0
    %4737 = vmatpush1.msra.mxu0 0.0
    %4738 = vmatprep.subr.mxu0 0.0
    %4739 = vmatpush1.msra.mxu0 0.0
    %4740 = vmatprep.subr.mxu0 0.0
    %4741 = vmatpush1.msra.mxu0 0.0
    %4742 = vmatprep.subr.mxu0 0.0
    %4743 = vmatpush1.msra.mxu0 0.0
    %4744 = vmatprep.subr.mxu0 0.0
    %4745 = vmatpush1.msra.mxu0 0.0
    %4746 = vmatprep.subr.mxu0 0.0
    %4747 = vmatpush1.msra.mxu0 0.0
    %4748 = vmatprep.subr.mxu0 0.0
    %4749 = vmatpush1.msra.mxu0 0.0
    %4750 = vmatprep.subr.mxu0 0.0
    %4751 = vmatpush1.msra.mxu0 0.0
    %4752 = vmatprep.subr.mxu0 0.0
    %4753 = vmatpush1.msra.mxu0 0.0
    %4754 = vmatprep.subr.mxu0 0.0
    %4755 = vmatpush1.msra.mxu0 0.0
    %4756 = vmatprep.subr.mxu0 0.0
    %4757 = vmatpush1.msra.mxu0 0.0
    %4758 = vmatprep.subr.mxu0 0.0
    %4759 = vmatpush1.msra.mxu0 0.0
    %4760 = vmatprep.subr.mxu0 0.0
    %4761 = vmatpush1.msra.mxu0 0.0
    %4762 = vmatprep.subr.mxu0 0.0
    %4763 = vmatpush1.msra.mxu0 0.0
    %4764 = vmatprep.subr.mxu0 0.0
    %4765 = vmatpush1.msra.mxu0 0.0
    %4766 = vmatprep.mubr.f32.mxu0 0.0
    %v4767 = vand.u32 %v4130, 4294901760
    %4768 = vmatmul.mubr.f32.gmra.mrb[0].mxu0 %v4767
    %v4769 = vpop.f32.mrb[0].mxu0
    %v4770 = vadd.f32 %v4683, %v4769
    %v4771 = vpop.f32.mrb[0].mxu0
    %4772 = vdwg.mxu0
    %v4773 = vadd.f32 %v896, %v4770
    %v4774 = vtanh.pop %v4773
    %4775 = vst [vmem:[#allocation8 + $0x28] sm:$0xff] %v4774
    %4776 = vmatprep.subr.mxu0 0.0
    %v4777 = vand.u32 %v69, 4294901760
    %4778 = vmatpush1.msra.mxu0 %v4777
    %4779 = vmatprep.subr.mxu0 0.0
    %v4780 = vand.u32 %v70, 4294901760
    %4781 = vmatpush1.msra.mxu0 %v4780
    %4782 = vmatprep.subr.mxu0 0.0
    %v4783 = vand.u32 %v71, 4294901760
    %4784 = vmatpush1.msra.mxu0 %v4783
    %4785 = vmatprep.subr.mxu0 0.0
    %v4786 = vand.u32 %v72, 4294901760
    %4787 = vmatpush1.msra.mxu0 %v4786
    %4788 = vmatprep.subr.mxu0 0.0
    %v4789 = vand.u32 %v73, 4294901760
    %4790 = vmatpush1.msra.mxu0 %v4789
    %4791 = vmatprep.subr.mxu0 0.0
    %v4792 = vand.u32 %v74, 4294901760
    %4793 = vmatpush1.msra.mxu0 %v4792
    %4794 = vmatprep.subr.mxu0 0.0
    %v4795 = vand.u32 %v75, 4294901760
    %4796 = vmatpush1.msra.mxu0 %v4795
    %4797 = vmatprep.subr.mxu0 0.0
    %v4798 = vand.u32 %v76, 4294901760
    %4799 = vmatpush1.msra.mxu0 %v4798
    %4800 = vmatprep.subr.mxu0 0.0
    %v4801 = vand.u32 %v77, 4294901760
    %4802 = vmatpush1.msra.mxu0 %v4801
    %4803 = vmatprep.subr.mxu0 0.0
    %v4804 = vand.u32 %v78, 4294901760
    %4805 = vmatpush1.msra.mxu0 %v4804
    %4806 = vmatprep.subr.mxu0 0.0
    %v4807 = vand.u32 %v79, 4294901760
    %4808 = vmatpush1.msra.mxu0 %v4807
    %4809 = vmatprep.subr.mxu0 0.0
    %v4810 = vand.u32 %v80, 4294901760
    %4811 = vmatpush1.msra.mxu0 %v4810
    %4812 = vmatprep.subr.mxu0 0.0
    %v4813 = vand.u32 %v81, 4294901760
    %4814 = vmatpush1.msra.mxu0 %v4813
    %4815 = vmatprep.subr.mxu0 0.0
    %v4816 = vand.u32 %v82, 4294901760
    %4817 = vmatpush1.msra.mxu0 %v4816
    %4818 = vmatprep.subr.mxu0 0.0
    %v4819 = vand.u32 %v83, 4294901760
    %4820 = vmatpush1.msra.mxu0 %v4819
    %4821 = vmatprep.subr.mxu0 0.0
    %v4822 = vand.u32 %v84, 4294901760
    %4823 = vmatpush1.msra.mxu0 %v4822
    %4824 = vmatprep.subr.mxu0 0.0
    %4825 = vmatpush1.msra.mxu0 0.0
    %4826 = vmatprep.subr.mxu0 0.0
    %4827 = vmatpush1.msra.mxu0 0.0
    %4828 = vmatprep.subr.mxu0 0.0
    %4829 = vmatpush1.msra.mxu0 0.0
    %4830 = vmatprep.subr.mxu0 0.0
    %4831 = vmatpush1.msra.mxu0 0.0
    %4832 = vmatprep.subr.mxu0 0.0
    %4833 = vmatpush1.msra.mxu0 0.0
    %4834 = vmatprep.subr.mxu0 0.0
    %4835 = vmatpush1.msra.mxu0 0.0
    %4836 = vmatprep.subr.mxu0 0.0
    %4837 = vmatpush1.msra.mxu0 0.0
    %4838 = vmatprep.subr.mxu0 0.0
    %4839 = vmatpush1.msra.mxu0 0.0
    %4840 = vmatprep.subr.mxu0 0.0
    %4841 = vmatpush1.msra.mxu0 0.0
    %4842 = vmatprep.subr.mxu0 0.0
    %4843 = vmatpush1.msra.mxu0 0.0
    %4844 = vmatprep.subr.mxu0 0.0
    %4845 = vmatpush1.msra.mxu0 0.0
    %4846 = vmatprep.subr.mxu0 0.0
    %4847 = vmatpush1.msra.mxu0 0.0
    %4848 = vmatprep.subr.mxu0 0.0
    %4849 = vmatpush1.msra.mxu0 0.0
    %4850 = vmatprep.subr.mxu0 0.0
    %4851 = vmatpush1.msra.mxu0 0.0
    %4852 = vmatprep.subr.mxu0 0.0
    %4853 = vmatpush1.msra.mxu0 0.0
    %4854 = vmatprep.subr.mxu0 0.0
    %4855 = vmatpush1.msra.mxu0 0.0
    %4856 = vmatprep.mubr.f32.mxu0 0.0
    %v4857 = vand.u32 %v4774, 4294901760
    %v4858 = vsub.f32 %v4774, %v4857
    %v4859 = vand.u32 %v4858, 4294901760
    %v4860 = vsub.f32 %v4858, %v4859
    %v4861 = vand.u32 %v4860, 4294901760
    %4862 = vmatmul.mubr.f32.gmra.mrb[0].mxu0 %v4861
    %v4863 = vpop.f32.mrb[0].mxu0
    %v4864 = vadd.f32 0.0, %v4863
    %v4865 = vpop.f32.mrb[0].mxu0
    %4866 = vdwg.mxu0
    %4867 = vmatprep.subr.mxu0 0.0
    %v4868 = vand.u32 %v69, 4294901760
    %v4869 = vsub.f32 %v69, %v4868
    %v4870 = vand.u32 %v4869, 4294901760
    %v4871 = vsub.f32 %v4869, %v4870
    %v4872 = vand.u32 %v4871, 4294901760
    %4873 = vmatpush1.msra.mxu0 %v4872
    %4874 = vmatprep.subr.mxu0 0.0
    %v4875 = vand.u32 %v70, 4294901760
    %v4876 = vsub.f32 %v70, %v4875
    %v4877 = vand.u32 %v4876, 4294901760
    %v4878 = vsub.f32 %v4876, %v4877
    %v4879 = vand.u32 %v4878, 4294901760
    %4880 = vmatpush1.msra.mxu0 %v4879
    %4881 = vmatprep.subr.mxu0 0.0
    %v4882 = vand.u32 %v71, 4294901760
    %v4883 = vsub.f32 %v71, %v4882
    %v4884 = vand.u32 %v4883, 4294901760
    %v4885 = vsub.f32 %v4883, %v4884
    %v4886 = vand.u32 %v4885, 4294901760
    %4887 = vmatpush1.msra.mxu0 %v4886
    %4888 = vmatprep.subr.mxu0 0.0
    %v4889 = vand.u32 %v72, 4294901760
    %v4890 = vsub.f32 %v72, %v4889
    %v4891 = vand.u32 %v4890, 4294901760
    %v4892 = vsub.f32 %v4890, %v4891
    %v4893 = vand.u32 %v4892, 4294901760
    %4894 = vmatpush1.msra.mxu0 %v4893
    %4895 = vmatprep.subr.mxu0 0.0
    %v4896 = vand.u32 %v73, 4294901760
    %v4897 = vsub.f32 %v73, %v4896
    %v4898 = vand.u32 %v4897, 4294901760
    %v4899 = vsub.f32 %v4897, %v4898
    %v4900 = vand.u32 %v4899, 4294901760
    %4901 = vmatpush1.msra.mxu0 %v4900
    %4902 = vmatprep.subr.mxu0 0.0
    %v4903 = vand.u32 %v74, 4294901760
    %v4904 = vsub.f32 %v74, %v4903
    %v4905 = vand.u32 %v4904, 4294901760
    %v4906 = vsub.f32 %v4904, %v4905
    %v4907 = vand.u32 %v4906, 4294901760
    %4908 = vmatpush1.msra.mxu0 %v4907
    %4909 = vmatprep.subr.mxu0 0.0
    %v4910 = vand.u32 %v75, 4294901760
    %v4911 = vsub.f32 %v75, %v4910
    %v4912 = vand.u32 %v4911, 4294901760
    %v4913 = vsub.f32 %v4911, %v4912
    %v4914 = vand.u32 %v4913, 4294901760
    %4915 = vmatpush1.msra.mxu0 %v4914
    %4916 = vmatprep.subr.mxu0 0.0
    %v4917 = vand.u32 %v76, 4294901760
    %v4918 = vsub.f32 %v76, %v4917
    %v4919 = vand.u32 %v4918, 4294901760
    %v4920 = vsub.f32 %v4918, %v4919
    %v4921 = vand.u32 %v4920, 4294901760
    %4922 = vmatpush1.msra.mxu0 %v4921
    %4923 = vmatprep.subr.mxu0 0.0
    %v4924 = vand.u32 %v77, 4294901760
    %v4925 = vsub.f32 %v77, %v4924
    %v4926 = vand.u32 %v4925, 4294901760
    %v4927 = vsub.f32 %v4925, %v4926
    %v4928 = vand.u32 %v4927, 4294901760
    %4929 = vmatpush1.msra.mxu0 %v4928
    %4930 = vmatprep.subr.mxu0 0.0
    %v4931 = vand.u32 %v78, 4294901760
    %v4932 = vsub.f32 %v78, %v4931
    %v4933 = vand.u32 %v4932, 4294901760
    %v4934 = vsub.f32 %v4932, %v4933
    %v4935 = vand.u32 %v4934, 4294901760
    %4936 = vmatpush1.msra.mxu0 %v4935
    %4937 = vmatprep.subr.mxu0 0.0
    %v4938 = vand.u32 %v79, 4294901760
    %v4939 = vsub.f32 %v79, %v4938
    %v4940 = vand.u32 %v4939, 4294901760
    %v4941 = vsub.f32 %v4939, %v4940
    %v4942 = vand.u32 %v4941, 4294901760
    %4943 = vmatpush1.msra.mxu0 %v4942
    %4944 = vmatprep.subr.mxu0 0.0
    %v4945 = vand.u32 %v80, 4294901760
    %v4946 = vsub.f32 %v80, %v4945
    %v4947 = vand.u32 %v4946, 4294901760
    %v4948 = vsub.f32 %v4946, %v4947
    %v4949 = vand.u32 %v4948, 4294901760
    %4950 = vmatpush1.msra.mxu0 %v4949
    %4951 = vmatprep.subr.mxu0 0.0
    %v4952 = vand.u32 %v81, 4294901760
    %v4953 = vsub.f32 %v81, %v4952
    %v4954 = vand.u32 %v4953, 4294901760
    %v4955 = vsub.f32 %v4953, %v4954
    %v4956 = vand.u32 %v4955, 4294901760
    %4957 = vmatpush1.msra.mxu0 %v4956
    %4958 = vmatprep.subr.mxu0 0.0
    %v4959 = vand.u32 %v82, 4294901760
    %v4960 = vsub.f32 %v82, %v4959
    %v4961 = vand.u32 %v4960, 4294901760
    %v4962 = vsub.f32 %v4960, %v4961
    %v4963 = vand.u32 %v4962, 4294901760
    %4964 = vmatpush1.msra.mxu0 %v4963
    %4965 = vmatprep.subr.mxu0 0.0
    %v4966 = vand.u32 %v83, 4294901760
    %v4967 = vsub.f32 %v83, %v4966
    %v4968 = vand.u32 %v4967, 4294901760
    %v4969 = vsub.f32 %v4967, %v4968
    %v4970 = vand.u32 %v4969, 4294901760
    %4971 = vmatpush1.msra.mxu0 %v4970
    %4972 = vmatprep.subr.mxu0 0.0
    %v4973 = vand.u32 %v84, 4294901760
    %v4974 = vsub.f32 %v84, %v4973
    %v4975 = vand.u32 %v4974, 4294901760
    %v4976 = vsub.f32 %v4974, %v4975
    %v4977 = vand.u32 %v4976, 4294901760
    %4978 = vmatpush1.msra.mxu0 %v4977
    %4979 = vmatprep.subr.mxu0 0.0
    %4980 = vmatpush1.msra.mxu0 0.0
    %4981 = vmatprep.subr.mxu0 0.0
    %4982 = vmatpush1.msra.mxu0 0.0
    %4983 = vmatprep.subr.mxu0 0.0
    %4984 = vmatpush1.msra.mxu0 0.0
    %4985 = vmatprep.subr.mxu0 0.0
    %4986 = vmatpush1.msra.mxu0 0.0
    %4987 = vmatprep.subr.mxu0 0.0
    %4988 = vmatpush1.msra.mxu0 0.0
    %4989 = vmatprep.subr.mxu0 0.0
    %4990 = vmatpush1.msra.mxu0 0.0
    %4991 = vmatprep.subr.mxu0 0.0
    %4992 = vmatpush1.msra.mxu0 0.0
    %4993 = vmatprep.subr.mxu0 0.0
    %4994 = vmatpush1.msra.mxu0 0.0
    %4995 = vmatprep.subr.mxu0 0.0
    %4996 = vmatpush1.msra.mxu0 0.0
    %4997 = vmatprep.subr.mxu0 0.0
    %4998 = vmatpush1.msra.mxu0 0.0
    %4999 = vmatprep.subr.mxu0 0.0
    %5000 = vmatpush1.msra.mxu0 0.0
    %5001 = vmatprep.subr.mxu0 0.0
    %5002 = vmatpush1.msra.mxu0 0.0
    %5003 = vmatprep.subr.mxu0 0.0
    %5004 = vmatpush1.msra.mxu0 0.0
    %5005 = vmatprep.subr.mxu0 0.0
    %5006 = vmatpush1.msra.mxu0 0.0
    %5007 = vmatprep.subr.mxu0 0.0
    %5008 = vmatpush1.msra.mxu0 0.0
    %5009 = vmatprep.subr.mxu0 0.0
    %5010 = vmatpush1.msra.mxu0 0.0
    %5011 = vmatprep.mubr.f32.mxu0 0.0
    %v5012 = vand.u32 %v4774, 4294901760
    %5013 = vmatmul.mubr.f32.gmra.mrb[0].mxu0 %v5012
    %v5014 = vpop.f32.mrb[0].mxu0
    %v5015 = vadd.f32 %v4864, %v5014
    %v5016 = vpop.f32.mrb[0].mxu0
    %5017 = vdwg.mxu0
    %5018 = vmatprep.subr.mxu0 0.0
    %v5019 = vand.u32 %v69, 4294901760
    %v5020 = vsub.f32 %v69, %v5019
    %5021 = vmatpush1.msra.mxu0 %v5020
    %5022 = vmatprep.subr.mxu0 0.0
    %v5023 = vand.u32 %v70, 4294901760
    %v5024 = vsub.f32 %v70, %v5023
    %5025 = vmatpush1.msra.mxu0 %v5024
    %5026 = vmatprep.subr.mxu0 0.0
    %v5027 = vand.u32 %v71, 4294901760
    %v5028 = vsub.f32 %v71, %v5027
    %5029 = vmatpush1.msra.mxu0 %v5028
    %5030 = vmatprep.subr.mxu0 0.0
    %v5031 = vand.u32 %v72, 4294901760
    %v5032 = vsub.f32 %v72, %v5031
    %5033 = vmatpush1.msra.mxu0 %v5032
    %5034 = vmatprep.subr.mxu0 0.0
    %v5035 = vand.u32 %v73, 4294901760
    %v5036 = vsub.f32 %v73, %v5035
    %5037 = vmatpush1.msra.mxu0 %v5036
    %5038 = vmatprep.subr.mxu0 0.0
    %v5039 = vand.u32 %v74, 4294901760
    %v5040 = vsub.f32 %v74, %v5039
    %5041 = vmatpush1.msra.mxu0 %v5040
    %5042 = vmatprep.subr.mxu0 0.0
    %v5043 = vand.u32 %v75, 4294901760
    %v5044 = vsub.f32 %v75, %v5043
    %5045 = vmatpush1.msra.mxu0 %v5044
    %5046 = vmatprep.subr.mxu0 0.0
    %v5047 = vand.u32 %v76, 4294901760
    %v5048 = vsub.f32 %v76, %v5047
    %5049 = vmatpush1.msra.mxu0 %v5048
    %5050 = vmatprep.subr.mxu0 0.0
    %v5051 = vand.u32 %v77, 4294901760
    %v5052 = vsub.f32 %v77, %v5051
    %5053 = vmatpush1.msra.mxu0 %v5052
    %5054 = vmatprep.subr.mxu0 0.0
    %v5055 = vand.u32 %v78, 4294901760
    %v5056 = vsub.f32 %v78, %v5055
    %5057 = vmatpush1.msra.mxu0 %v5056
    %5058 = vmatprep.subr.mxu0 0.0
    %v5059 = vand.u32 %v79, 4294901760
    %v5060 = vsub.f32 %v79, %v5059
    %5061 = vmatpush1.msra.mxu0 %v5060
    %5062 = vmatprep.subr.mxu0 0.0
    %v5063 = vand.u32 %v80, 4294901760
    %v5064 = vsub.f32 %v80, %v5063
    %5065 = vmatpush1.msra.mxu0 %v5064
    %5066 = vmatprep.subr.mxu0 0.0
    %v5067 = vand.u32 %v81, 4294901760
    %v5068 = vsub.f32 %v81, %v5067
    %5069 = vmatpush1.msra.mxu0 %v5068
    %5070 = vmatprep.subr.mxu0 0.0
    %v5071 = vand.u32 %v82, 4294901760
    %v5072 = vsub.f32 %v82, %v5071
    %5073 = vmatpush1.msra.mxu0 %v5072
    %5074 = vmatprep.subr.mxu0 0.0
    %v5075 = vand.u32 %v83, 4294901760
    %v5076 = vsub.f32 %v83, %v5075
    %5077 = vmatpush1.msra.mxu0 %v5076
    %5078 = vmatprep.subr.mxu0 0.0
    %v5079 = vand.u32 %v84, 4294901760
    %v5080 = vsub.f32 %v84, %v5079
    %5081 = vmatpush1.msra.mxu0 %v5080
    %5082 = vmatprep.subr.mxu0 0.0
    %5083 = vmatpush1.msra.mxu0 0.0
    %5084 = vmatprep.subr.mxu0 0.0
    %5085 = vmatpush1.msra.mxu0 0.0
    %5086 = vmatprep.subr.mxu0 0.0
    %5087 = vmatpush1.msra.mxu0 0.0
    %5088 = vmatprep.subr.mxu0 0.0
    %5089 = vmatpush1.msra.mxu0 0.0
    %5090 = vmatprep.subr.mxu0 0.0
    %5091 = vmatpush1.msra.mxu0 0.0
    %5092 = vmatprep.subr.mxu0 0.0
    %5093 = vmatpush1.msra.mxu0 0.0
    %5094 = vmatprep.subr.mxu0 0.0
    %5095 = vmatpush1.msra.mxu0 0.0
    %5096 = vmatprep.subr.mxu0 0.0
    %5097 = vmatpush1.msra.mxu0 0.0
    %5098 = vmatprep.subr.mxu0 0.0
    %5099 = vmatpush1.msra.mxu0 0.0
    %5100 = vmatprep.subr.mxu0 0.0
    %5101 = vmatpush1.msra.mxu0 0.0
    %5102 = vmatprep.subr.mxu0 0.0
    %5103 = vmatpush1.msra.mxu0 0.0
    %5104 = vmatprep.subr.mxu0 0.0
    %5105 = vmatpush1.msra.mxu0 0.0
    %5106 = vmatprep.subr.mxu0 0.0
    %5107 = vmatpush1.msra.mxu0 0.0
    %5108 = vmatprep.subr.mxu0 0.0
    %5109 = vmatpush1.msra.mxu0 0.0
    %5110 = vmatprep.subr.mxu0 0.0
    %5111 = vmatpush1.msra.mxu0 0.0
    %5112 = vmatprep.subr.mxu0 0.0
    %5113 = vmatpush1.msra.mxu0 0.0
    %5114 = vmatprep.mubr.f32.mxu0 0.0
    %v5115 = vand.u32 %v4774, 4294901760
    %v5116 = vsub.f32 %v4774, %v5115
    %5117 = vmatmul.mubr.f32.gmra.mrb[0].mxu0 %v5116
    %v5118 = vpop.f32.mrb[0].mxu0
    %v5119 = vadd.f32 %v5015, %v5118
    %v5120 = vpop.f32.mrb[0].mxu0
    %5121 = vdwg.mxu0
    %5122 = vmatprep.subr.mxu0 0.0
    %v5123 = vand.u32 %v69, 4294901760
    %5124 = vmatpush1.msra.mxu0 %v5123
    %5125 = vmatprep.subr.mxu0 0.0
    %v5126 = vand.u32 %v70, 4294901760
    %5127 = vmatpush1.msra.mxu0 %v5126
    %5128 = vmatprep.subr.mxu0 0.0
    %v5129 = vand.u32 %v71, 4294901760
    %5130 = vmatpush1.msra.mxu0 %v5129
    %5131 = vmatprep.subr.mxu0 0.0
    %v5132 = vand.u32 %v72, 4294901760
    %5133 = vmatpush1.msra.mxu0 %v5132
    %5134 = vmatprep.subr.mxu0 0.0
    %v5135 = vand.u32 %v73, 4294901760
    %5136 = vmatpush1.msra.mxu0 %v5135
    %5137 = vmatprep.subr.mxu0 0.0
    %v5138 = vand.u32 %v74, 4294901760
    %5139 = vmatpush1.msra.mxu0 %v5138
    %5140 = vmatprep.subr.mxu0 0.0
    %v5141 = vand.u32 %v75, 4294901760
    %5142 = vmatpush1.msra.mxu0 %v5141
    %5143 = vmatprep.subr.mxu0 0.0
    %v5144 = vand.u32 %v76, 4294901760
    %5145 = vmatpush1.msra.mxu0 %v5144
    %5146 = vmatprep.subr.mxu0 0.0
    %v5147 = vand.u32 %v77, 4294901760
    %5148 = vmatpush1.msra.mxu0 %v5147
    %5149 = vmatprep.subr.mxu0 0.0
    %v5150 = vand.u32 %v78, 4294901760
    %5151 = vmatpush1.msra.mxu0 %v5150
    %5152 = vmatprep.subr.mxu0 0.0
    %v5153 = vand.u32 %v79, 4294901760
    %5154 = vmatpush1.msra.mxu0 %v5153
    %5155 = vmatprep.subr.mxu0 0.0
    %v5156 = vand.u32 %v80, 4294901760
    %5157 = vmatpush1.msra.mxu0 %v5156
    %5158 = vmatprep.subr.mxu0 0.0
    %v5159 = vand.u32 %v81, 4294901760
    %5160 = vmatpush1.msra.mxu0 %v5159
    %5161 = vmatprep.subr.mxu0 0.0
    %v5162 = vand.u32 %v82, 4294901760
    %5163 = vmatpush1.msra.mxu0 %v5162
    %5164 = vmatprep.subr.mxu0 0.0
    %v5165 = vand.u32 %v83, 4294901760
    %5166 = vmatpush1.msra.mxu0 %v5165
    %5167 = vmatprep.subr.mxu0 0.0
    %v5168 = vand.u32 %v84, 4294901760
    %5169 = vmatpush1.msra.mxu0 %v5168
    %5170 = vmatprep.subr.mxu0 0.0
    %5171 = vmatpush1.msra.mxu0 0.0
    %5172 = vmatprep.subr.mxu0 0.0
    %5173 = vmatpush1.msra.mxu0 0.0
    %5174 = vmatprep.subr.mxu0 0.0
    %5175 = vmatpush1.msra.mxu0 0.0
    %5176 = vmatprep.subr.mxu0 0.0
    %5177 = vmatpush1.msra.mxu0 0.0
    %5178 = vmatprep.subr.mxu0 0.0
    %5179 = vmatpush1.msra.mxu0 0.0
    %5180 = vmatprep.subr.mxu0 0.0
    %5181 = vmatpush1.msra.mxu0 0.0
    %5182 = vmatprep.subr.mxu0 0.0
    %5183 = vmatpush1.msra.mxu0 0.0
    %5184 = vmatprep.subr.mxu0 0.0
    %5185 = vmatpush1.msra.mxu0 0.0
    %5186 = vmatprep.subr.mxu0 0.0
    %5187 = vmatpush1.msra.mxu0 0.0
    %5188 = vmatprep.subr.mxu0 0.0
    %5189 = vmatpush1.msra.mxu0 0.0
    %5190 = vmatprep.subr.mxu0 0.0
    %5191 = vmatpush1.msra.mxu0 0.0
    %5192 = vmatprep.subr.mxu0 0.0
    %5193 = vmatpush1.msra.mxu0 0.0
    %5194 = vmatprep.subr.mxu0 0.0
    %5195 = vmatpush1.msra.mxu0 0.0
    %5196 = vmatprep.subr.mxu0 0.0
    %5197 = vmatpush1.msra.mxu0 0.0
    %5198 = vmatprep.subr.mxu0 0.0
    %5199 = vmatpush1.msra.mxu0 0.0
    %5200 = vmatprep.subr.mxu0 0.0
    %5201 = vmatpush1.msra.mxu0 0.0
    %5202 = vmatprep.mubr.f32.mxu0 0.0
    %v5203 = vand.u32 %v4774, 4294901760
    %v5204 = vsub.f32 %v4774, %v5203
    %v5205 = vand.u32 %v5204, 4294901760
    %5206 = vmatmul.mubr.f32.gmra.mrb[0].mxu0 %v5205
    %v5207 = vpop.f32.mrb[0].mxu0
    %v5208 = vadd.f32 %v5119, %v5207
    %v5209 = vpop.f32.mrb[0].mxu0
    %5210 = vdwg.mxu0
    %5211 = vmatprep.subr.mxu0 0.0
    %v5212 = vand.u32 %v69, 4294901760
    %v5213 = vsub.f32 %v69, %v5212
    %v5214 = vand.u32 %v5213, 4294901760
    %5215 = vmatpush1.msra.mxu0 %v5214
    %5216 = vmatprep.subr.mxu0 0.0
    %v5217 = vand.u32 %v70, 4294901760
    %v5218 = vsub.f32 %v70, %v5217
    %v5219 = vand.u32 %v5218, 4294901760
    %5220 = vmatpush1.msra.mxu0 %v5219
    %5221 = vmatprep.subr.mxu0 0.0
    %v5222 = vand.u32 %v71, 4294901760
    %v5223 = vsub.f32 %v71, %v5222
    %v5224 = vand.u32 %v5223, 4294901760
    %5225 = vmatpush1.msra.mxu0 %v5224
    %5226 = vmatprep.subr.mxu0 0.0
    %v5227 = vand.u32 %v72, 4294901760
    %v5228 = vsub.f32 %v72, %v5227
    %v5229 = vand.u32 %v5228, 4294901760
    %5230 = vmatpush1.msra.mxu0 %v5229
    %5231 = vmatprep.subr.mxu0 0.0
    %v5232 = vand.u32 %v73, 4294901760
    %v5233 = vsub.f32 %v73, %v5232
    %v5234 = vand.u32 %v5233, 4294901760
    %5235 = vmatpush1.msra.mxu0 %v5234
    %5236 = vmatprep.subr.mxu0 0.0
    %v5237 = vand.u32 %v74, 4294901760
    %v5238 = vsub.f32 %v74, %v5237
    %v5239 = vand.u32 %v5238, 4294901760
    %5240 = vmatpush1.msra.mxu0 %v5239
    %5241 = vmatprep.subr.mxu0 0.0
    %v5242 = vand.u32 %v75, 4294901760
    %v5243 = vsub.f32 %v75, %v5242
    %v5244 = vand.u32 %v5243, 4294901760
    %5245 = vmatpush1.msra.mxu0 %v5244
    %5246 = vmatprep.subr.mxu0 0.0
    %v5247 = vand.u32 %v76, 4294901760
    %v5248 = vsub.f32 %v76, %v5247
    %v5249 = vand.u32 %v5248, 4294901760
    %5250 = vmatpush1.msra.mxu0 %v5249
    %5251 = vmatprep.subr.mxu0 0.0
    %v5252 = vand.u32 %v77, 4294901760
    %v5253 = vsub.f32 %v77, %v5252
    %v5254 = vand.u32 %v5253, 4294901760
    %5255 = vmatpush1.msra.mxu0 %v5254
    %5256 = vmatprep.subr.mxu0 0.0
    %v5257 = vand.u32 %v78, 4294901760
    %v5258 = vsub.f32 %v78, %v5257
    %v5259 = vand.u32 %v5258, 4294901760
    %5260 = vmatpush1.msra.mxu0 %v5259
    %5261 = vmatprep.subr.mxu0 0.0
    %v5262 = vand.u32 %v79, 4294901760
    %v5263 = vsub.f32 %v79, %v5262
    %v5264 = vand.u32 %v5263, 4294901760
    %5265 = vmatpush1.msra.mxu0 %v5264
    %5266 = vmatprep.subr.mxu0 0.0
    %v5267 = vand.u32 %v80, 4294901760
    %v5268 = vsub.f32 %v80, %v5267
    %v5269 = vand.u32 %v5268, 4294901760
    %5270 = vmatpush1.msra.mxu0 %v5269
    %5271 = vmatprep.subr.mxu0 0.0
    %v5272 = vand.u32 %v81, 4294901760
    %v5273 = vsub.f32 %v81, %v5272
    %v5274 = vand.u32 %v5273, 4294901760
    %5275 = vmatpush1.msra.mxu0 %v5274
    %5276 = vmatprep.subr.mxu0 0.0
    %v5277 = vand.u32 %v82, 4294901760
    %v5278 = vsub.f32 %v82, %v5277
    %v5279 = vand.u32 %v5278, 4294901760
    %5280 = vmatpush1.msra.mxu0 %v5279
    %5281 = vmatprep.subr.mxu0 0.0
    %v5282 = vand.u32 %v83, 4294901760
    %v5283 = vsub.f32 %v83, %v5282
    %v5284 = vand.u32 %v5283, 4294901760
    %5285 = vmatpush1.msra.mxu0 %v5284
    %5286 = vmatprep.subr.mxu0 0.0
    %v5287 = vand.u32 %v84, 4294901760
    %v5288 = vsub.f32 %v84, %v5287
    %v5289 = vand.u32 %v5288, 4294901760
    %5290 = vmatpush1.msra.mxu0 %v5289
    %5291 = vmatprep.subr.mxu0 0.0
    %5292 = vmatpush1.msra.mxu0 0.0
    %5293 = vmatprep.subr.mxu0 0.0
    %5294 = vmatpush1.msra.mxu0 0.0
    %5295 = vmatprep.subr.mxu0 0.0
    %5296 = vmatpush1.msra.mxu0 0.0
    %5297 = vmatprep.subr.mxu0 0.0
    %5298 = vmatpush1.msra.mxu0 0.0
    %5299 = vmatprep.subr.mxu0 0.0
    %5300 = vmatpush1.msra.mxu0 0.0
    %5301 = vmatprep.subr.mxu0 0.0
    %5302 = vmatpush1.msra.mxu0 0.0
    %5303 = vmatprep.subr.mxu0 0.0
    %5304 = vmatpush1.msra.mxu0 0.0
    %5305 = vmatprep.subr.mxu0 0.0
    %5306 = vmatpush1.msra.mxu0 0.0
    %5307 = vmatprep.subr.mxu0 0.0
    %5308 = vmatpush1.msra.mxu0 0.0
    %5309 = vmatprep.subr.mxu0 0.0
    %5310 = vmatpush1.msra.mxu0 0.0
    %5311 = vmatprep.subr.mxu0 0.0
    %5312 = vmatpush1.msra.mxu0 0.0
    %5313 = vmatprep.subr.mxu0 0.0
    %5314 = vmatpush1.msra.mxu0 0.0
    %5315 = vmatprep.subr.mxu0 0.0
    %5316 = vmatpush1.msra.mxu0 0.0
    %5317 = vmatprep.subr.mxu0 0.0
    %5318 = vmatpush1.msra.mxu0 0.0
    %5319 = vmatprep.subr.mxu0 0.0
    %5320 = vmatpush1.msra.mxu0 0.0
    %5321 = vmatprep.subr.mxu0 0.0
    %5322 = vmatpush1.msra.mxu0 0.0
    %5323 = vmatprep.mubr.f32.mxu0 0.0
    %v5324 = vand.u32 %v4774, 4294901760
    %5325 = vmatmul.mubr.f32.gmra.mrb[0].mxu0 %v5324
    %v5326 = vpop.f32.mrb[0].mxu0
    %v5327 = vadd.f32 %v5208, %v5326
    %v5328 = vpop.f32.mrb[0].mxu0
    %5329 = vdwg.mxu0
    %5330 = vmatprep.subr.mxu0 0.0
    %v5331 = vand.u32 %v69, 4294901760
    %5332 = vmatpush1.msra.mxu0 %v5331
    %5333 = vmatprep.subr.mxu0 0.0
    %v5334 = vand.u32 %v70, 4294901760
    %5335 = vmatpush1.msra.mxu0 %v5334
    %5336 = vmatprep.subr.mxu0 0.0
    %v5337 = vand.u32 %v71, 4294901760
    %5338 = vmatpush1.msra.mxu0 %v5337
    %5339 = vmatprep.subr.mxu0 0.0
    %v5340 = vand.u32 %v72, 4294901760
    %5341 = vmatpush1.msra.mxu0 %v5340
    %5342 = vmatprep.subr.mxu0 0.0
    %v5343 = vand.u32 %v73, 4294901760
    %5344 = vmatpush1.msra.mxu0 %v5343
    %5345 = vmatprep.subr.mxu0 0.0
    %v5346 = vand.u32 %v74, 4294901760
    %5347 = vmatpush1.msra.mxu0 %v5346
    %5348 = vmatprep.subr.mxu0 0.0
    %v5349 = vand.u32 %v75, 4294901760
    %5350 = vmatpush1.msra.mxu0 %v5349
    %5351 = vmatprep.subr.mxu0 0.0
    %v5352 = vand.u32 %v76, 4294901760
    %5353 = vmatpush1.msra.mxu0 %v5352
    %5354 = vmatprep.subr.mxu0 0.0
    %v5355 = vand.u32 %v77, 4294901760
    %5356 = vmatpush1.msra.mxu0 %v5355
    %5357 = vmatprep.subr.mxu0 0.0
    %v5358 = vand.u32 %v78, 4294901760
    %5359 = vmatpush1.msra.mxu0 %v5358
    %5360 = vmatprep.subr.mxu0 0.0
    %v5361 = vand.u32 %v79, 4294901760
    %5362 = vmatpush1.msra.mxu0 %v5361
    %5363 = vmatprep.subr.mxu0 0.0
    %v5364 = vand.u32 %v80, 4294901760
    %5365 = vmatpush1.msra.mxu0 %v5364
    %5366 = vmatprep.subr.mxu0 0.0
    %v5367 = vand.u32 %v81, 4294901760
    %5368 = vmatpush1.msra.mxu0 %v5367
    %5369 = vmatprep.subr.mxu0 0.0
    %v5370 = vand.u32 %v82, 4294901760
    %5371 = vmatpush1.msra.mxu0 %v5370
    %5372 = vmatprep.subr.mxu0 0.0
    %v5373 = vand.u32 %v83, 4294901760
    %5374 = vmatpush1.msra.mxu0 %v5373
    %5375 = vmatprep.subr.mxu0 0.0
    %v5376 = vand.u32 %v84, 4294901760
    %5377 = vmatpush1.msra.mxu0 %v5376
    %5378 = vmatprep.subr.mxu0 0.0
    %5379 = vmatpush1.msra.mxu0 0.0
    %5380 = vmatprep.subr.mxu0 0.0
    %5381 = vmatpush1.msra.mxu0 0.0
    %5382 = vmatprep.subr.mxu0 0.0
    %5383 = vmatpush1.msra.mxu0 0.0
    %5384 = vmatprep.subr.mxu0 0.0
    %5385 = vmatpush1.msra.mxu0 0.0
    %5386 = vmatprep.subr.mxu0 0.0
    %5387 = vmatpush1.msra.mxu0 0.0
    %5388 = vmatprep.subr.mxu0 0.0
    %5389 = vmatpush1.msra.mxu0 0.0
    %5390 = vmatprep.subr.mxu0 0.0
    %5391 = vmatpush1.msra.mxu0 0.0
    %5392 = vmatprep.subr.mxu0 0.0
    %5393 = vmatpush1.msra.mxu0 0.0
    %5394 = vmatprep.subr.mxu0 0.0
    %5395 = vmatpush1.msra.mxu0 0.0
    %5396 = vmatprep.subr.mxu0 0.0
    %5397 = vmatpush1.msra.mxu0 0.0
    %5398 = vmatprep.subr.mxu0 0.0
    %5399 = vmatpush1.msra.mxu0 0.0
    %5400 = vmatprep.subr.mxu0 0.0
    %5401 = vmatpush1.msra.mxu0 0.0
    %5402 = vmatprep.subr.mxu0 0.0
    %5403 = vmatpush1.msra.mxu0 0.0
    %5404 = vmatprep.subr.mxu0 0.0
    %5405 = vmatpush1.msra.mxu0 0.0
    %5406 = vmatprep.subr.mxu0 0.0
    %5407 = vmatpush1.msra.mxu0 0.0
    %5408 = vmatprep.subr.mxu0 0.0
    %5409 = vmatpush1.msra.mxu0 0.0
    %5410 = vmatprep.mubr.f32.mxu0 0.0
    %v5411 = vand.u32 %v4774, 4294901760
    %5412 = vmatmul.mubr.f32.gmra.mrb[0].mxu0 %v5411
    %v5413 = vpop.f32.mrb[0].mxu0
    %v5414 = vadd.f32 %v5327, %v5413
    %v5415 = vpop.f32.mrb[0].mxu0
    %5416 = vdwg.mxu0
    %v5417 = vadd.f32 %v902, %v5414
    %v5418 = vtanh.pop %v5417
    %5419 = vst [vmem:[#allocation8 + $0x30] sm:$0xff] %v5418
    %5420 = vmatprep.subr.mxu0 0.0
    %v5421 = vand.u32 %v69, 4294901760
    %5422 = vmatpush1.msra.mxu0 %v5421
    %5423 = vmatprep.subr.mxu0 0.0
    %v5424 = vand.u32 %v70, 4294901760
    %5425 = vmatpush1.msra.mxu0 %v5424
    %5426 = vmatprep.subr.mxu0 0.0
    %v5427 = vand.u32 %v71, 4294901760
    %5428 = vmatpush1.msra.mxu0 %v5427
    %5429 = vmatprep.subr.mxu0 0.0
    %v5430 = vand.u32 %v72, 4294901760
    %5431 = vmatpush1.msra.mxu0 %v5430
    %5432 = vmatprep.subr.mxu0 0.0
    %v5433 = vand.u32 %v73, 4294901760
    %5434 = vmatpush1.msra.mxu0 %v5433
    %5435 = vmatprep.subr.mxu0 0.0
    %v5436 = vand.u32 %v74, 4294901760
    %5437 = vmatpush1.msra.mxu0 %v5436
    %5438 = vmatprep.subr.mxu0 0.0
    %v5439 = vand.u32 %v75, 4294901760
    %5440 = vmatpush1.msra.mxu0 %v5439
    %5441 = vmatprep.subr.mxu0 0.0
    %v5442 = vand.u32 %v76, 4294901760
    %5443 = vmatpush1.msra.mxu0 %v5442
    %5444 = vmatprep.subr.mxu0 0.0
    %v5445 = vand.u32 %v77, 4294901760
    %5446 = vmatpush1.msra.mxu0 %v5445
    %5447 = vmatprep.subr.mxu0 0.0
    %v5448 = vand.u32 %v78, 4294901760
    %5449 = vmatpush1.msra.mxu0 %v5448
    %5450 = vmatprep.subr.mxu0 0.0
    %v5451 = vand.u32 %v79, 4294901760
    %5452 = vmatpush1.msra.mxu0 %v5451
    %5453 = vmatprep.subr.mxu0 0.0
    %v5454 = vand.u32 %v80, 4294901760
    %5455 = vmatpush1.msra.mxu0 %v5454
    %5456 = vmatprep.subr.mxu0 0.0
    %v5457 = vand.u32 %v81, 4294901760
    %5458 = vmatpush1.msra.mxu0 %v5457
    %5459 = vmatprep.subr.mxu0 0.0
    %v5460 = vand.u32 %v82, 4294901760
    %5461 = vmatpush1.msra.mxu0 %v5460
    %5462 = vmatprep.subr.mxu0 0.0
    %v5463 = vand.u32 %v83, 4294901760
    %5464 = vmatpush1.msra.mxu0 %v5463
    %5465 = vmatprep.subr.mxu0 0.0
    %v5466 = vand.u32 %v84, 4294901760
    %5467 = vmatpush1.msra.mxu0 %v5466
    %5468 = vmatprep.subr.mxu0 0.0
    %5469 = vmatpush1.msra.mxu0 0.0
    %5470 = vmatprep.subr.mxu0 0.0
    %5471 = vmatpush1.msra.mxu0 0.0
    %5472 = vmatprep.subr.mxu0 0.0
    %5473 = vmatpush1.msra.mxu0 0.0
    %5474 = vmatprep.subr.mxu0 0.0
    %5475 = vmatpush1.msra.mxu0 0.0
    %5476 = vmatprep.subr.mxu0 0.0
    %5477 = vmatpush1.msra.mxu0 0.0
    %5478 = vmatprep.subr.mxu0 0.0
    %5479 = vmatpush1.msra.mxu0 0.0
    %5480 = vmatprep.subr.mxu0 0.0
    %5481 = vmatpush1.msra.mxu0 0.0
    %5482 = vmatprep.subr.mxu0 0.0
    %5483 = vmatpush1.msra.mxu0 0.0
    %5484 = vmatprep.subr.mxu0 0.0
    %5485 = vmatpush1.msra.mxu0 0.0
    %5486 = vmatprep.subr.mxu0 0.0
    %5487 = vmatpush1.msra.mxu0 0.0
    %5488 = vmatprep.subr.mxu0 0.0
    %5489 = vmatpush1.msra.mxu0 0.0
    %5490 = vmatprep.subr.mxu0 0.0
    %5491 = vmatpush1.msra.mxu0 0.0
    %5492 = vmatprep.subr.mxu0 0.0
    %5493 = vmatpush1.msra.mxu0 0.0
    %5494 = vmatprep.subr.mxu0 0.0
    %5495 = vmatpush1.msra.mxu0 0.0
    %5496 = vmatprep.subr.mxu0 0.0
    %5497 = vmatpush1.msra.mxu0 0.0
    %5498 = vmatprep.subr.mxu0 0.0
    %5499 = vmatpush1.msra.mxu0 0.0
    %5500 = vmatprep.mubr.f32.mxu0 0.0
    %v5501 = vand.u32 %v5418, 4294901760
    %v5502 = vsub.f32 %v5418, %v5501
    %v5503 = vand.u32 %v5502, 4294901760
    %v5504 = vsub.f32 %v5502, %v5503
    %v5505 = vand.u32 %v5504, 4294901760
    %5506 = vmatmul.mubr.f32.gmra.mrb[0].mxu0 %v5505
    %v5507 = vpop.f32.mrb[0].mxu0
    %v5508 = vadd.f32 0.0, %v5507
    %v5509 = vpop.f32.mrb[0].mxu0
    %5510 = vdwg.mxu0
    %5511 = vmatprep.subr.mxu0 0.0
    %v5512 = vand.u32 %v69, 4294901760
    %v5513 = vsub.f32 %v69, %v5512
    %v5514 = vand.u32 %v5513, 4294901760
    %v5515 = vsub.f32 %v5513, %v5514
    %v5516 = vand.u32 %v5515, 4294901760
    %5517 = vmatpush1.msra.mxu0 %v5516
    %5518 = vmatprep.subr.mxu0 0.0
    %v5519 = vand.u32 %v70, 4294901760
    %v5520 = vsub.f32 %v70, %v5519
    %v5521 = vand.u32 %v5520, 4294901760
    %v5522 = vsub.f32 %v5520, %v5521
    %v5523 = vand.u32 %v5522, 4294901760
    %5524 = vmatpush1.msra.mxu0 %v5523
    %5525 = vmatprep.subr.mxu0 0.0
    %v5526 = vand.u32 %v71, 4294901760
    %v5527 = vsub.f32 %v71, %v5526
    %v5528 = vand.u32 %v5527, 4294901760
    %v5529 = vsub.f32 %v5527, %v5528
    %v5530 = vand.u32 %v5529, 4294901760
    %5531 = vmatpush1.msra.mxu0 %v5530
    %5532 = vmatprep.subr.mxu0 0.0
    %v5533 = vand.u32 %v72, 4294901760
    %v5534 = vsub.f32 %v72, %v5533
    %v5535 = vand.u32 %v5534, 4294901760
    %v5536 = vsub.f32 %v5534, %v5535
    %v5537 = vand.u32 %v5536, 4294901760
    %5538 = vmatpush1.msra.mxu0 %v5537
    %5539 = vmatprep.subr.mxu0 0.0
    %v5540 = vand.u32 %v73, 4294901760
    %v5541 = vsub.f32 %v73, %v5540
    %v5542 = vand.u32 %v5541, 4294901760
    %v5543 = vsub.f32 %v5541, %v5542
    %v5544 = vand.u32 %v5543, 4294901760
    %5545 = vmatpush1.msra.mxu0 %v5544
    %5546 = vmatprep.subr.mxu0 0.0
    %v5547 = vand.u32 %v74, 4294901760
    %v5548 = vsub.f32 %v74, %v5547
    %v5549 = vand.u32 %v5548, 4294901760
    %v5550 = vsub.f32 %v5548, %v5549
    %v5551 = vand.u32 %v5550, 4294901760
    %5552 = vmatpush1.msra.mxu0 %v5551
    %5553 = vmatprep.subr.mxu0 0.0
    %v5554 = vand.u32 %v75, 4294901760
    %v5555 = vsub.f32 %v75, %v5554
    %v5556 = vand.u32 %v5555, 4294901760
    %v5557 = vsub.f32 %v5555, %v5556
    %v5558 = vand.u32 %v5557, 4294901760
    %5559 = vmatpush1.msra.mxu0 %v5558
    %5560 = vmatprep.subr.mxu0 0.0
    %v5561 = vand.u32 %v76, 4294901760
    %v5562 = vsub.f32 %v76, %v5561
    %v5563 = vand.u32 %v5562, 4294901760
    %v5564 = vsub.f32 %v5562, %v5563
    %v5565 = vand.u32 %v5564, 4294901760
    %5566 = vmatpush1.msra.mxu0 %v5565
    %5567 = vmatprep.subr.mxu0 0.0
    %v5568 = vand.u32 %v77, 4294901760
    %v5569 = vsub.f32 %v77, %v5568
    %v5570 = vand.u32 %v5569, 4294901760
    %v5571 = vsub.f32 %v5569, %v5570
    %v5572 = vand.u32 %v5571, 4294901760
    %5573 = vmatpush1.msra.mxu0 %v5572
    %5574 = vmatprep.subr.mxu0 0.0
    %v5575 = vand.u32 %v78, 4294901760
    %v5576 = vsub.f32 %v78, %v5575
    %v5577 = vand.u32 %v5576, 4294901760
    %v5578 = vsub.f32 %v5576, %v5577
    %v5579 = vand.u32 %v5578, 4294901760
    %5580 = vmatpush1.msra.mxu0 %v5579
    %5581 = vmatprep.subr.mxu0 0.0
    %v5582 = vand.u32 %v79, 4294901760
    %v5583 = vsub.f32 %v79, %v5582
    %v5584 = vand.u32 %v5583, 4294901760
    %v5585 = vsub.f32 %v5583, %v5584
    %v5586 = vand.u32 %v5585, 4294901760
    %5587 = vmatpush1.msra.mxu0 %v5586
    %5588 = vmatprep.subr.mxu0 0.0
    %v5589 = vand.u32 %v80, 4294901760
    %v5590 = vsub.f32 %v80, %v5589
    %v5591 = vand.u32 %v5590, 4294901760
    %v5592 = vsub.f32 %v5590, %v5591
    %v5593 = vand.u32 %v5592, 4294901760
    %5594 = vmatpush1.msra.mxu0 %v5593
    %5595 = vmatprep.subr.mxu0 0.0
    %v5596 = vand.u32 %v81, 4294901760
    %v5597 = vsub.f32 %v81, %v5596
    %v5598 = vand.u32 %v5597, 4294901760
    %v5599 = vsub.f32 %v5597, %v5598
    %v5600 = vand.u32 %v5599, 4294901760
    %5601 = vmatpush1.msra.mxu0 %v5600
    %5602 = vmatprep.subr.mxu0 0.0
    %v5603 = vand.u32 %v82, 4294901760
    %v5604 = vsub.f32 %v82, %v5603
    %v5605 = vand.u32 %v5604, 4294901760
    %v5606 = vsub.f32 %v5604, %v5605
    %v5607 = vand.u32 %v5606, 4294901760
    %5608 = vmatpush1.msra.mxu0 %v5607
    %5609 = vmatprep.subr.mxu0 0.0
    %v5610 = vand.u32 %v83, 4294901760
    %v5611 = vsub.f32 %v83, %v5610
    %v5612 = vand.u32 %v5611, 4294901760
    %v5613 = vsub.f32 %v5611, %v5612
    %v5614 = vand.u32 %v5613, 4294901760
    %5615 = vmatpush1.msra.mxu0 %v5614
    %5616 = vmatprep.subr.mxu0 0.0
    %v5617 = vand.u32 %v84, 4294901760
    %v5618 = vsub.f32 %v84, %v5617
    %v5619 = vand.u32 %v5618, 4294901760
    %v5620 = vsub.f32 %v5618, %v5619
    %v5621 = vand.u32 %v5620, 4294901760
    %5622 = vmatpush1.msra.mxu0 %v5621
    %5623 = vmatprep.subr.mxu0 0.0
    %5624 = vmatpush1.msra.mxu0 0.0
    %5625 = vmatprep.subr.mxu0 0.0
    %5626 = vmatpush1.msra.mxu0 0.0
    %5627 = vmatprep.subr.mxu0 0.0
    %5628 = vmatpush1.msra.mxu0 0.0
    %5629 = vmatprep.subr.mxu0 0.0
    %5630 = vmatpush1.msra.mxu0 0.0
    %5631 = vmatprep.subr.mxu0 0.0
    %5632 = vmatpush1.msra.mxu0 0.0
    %5633 = vmatprep.subr.mxu0 0.0
    %5634 = vmatpush1.msra.mxu0 0.0
    %5635 = vmatprep.subr.mxu0 0.0
    %5636 = vmatpush1.msra.mxu0 0.0
    %5637 = vmatprep.subr.mxu0 0.0
    %5638 = vmatpush1.msra.mxu0 0.0
    %5639 = vmatprep.subr.mxu0 0.0
    %5640 = vmatpush1.msra.mxu0 0.0
    %5641 = vmatprep.subr.mxu0 0.0
    %5642 = vmatpush1.msra.mxu0 0.0
    %5643 = vmatprep.subr.mxu0 0.0
    %5644 = vmatpush1.msra.mxu0 0.0
    %5645 = vmatprep.subr.mxu0 0.0
    %5646 = vmatpush1.msra.mxu0 0.0
    %5647 = vmatprep.subr.mxu0 0.0
    %5648 = vmatpush1.msra.mxu0 0.0
    %5649 = vmatprep.subr.mxu0 0.0
    %5650 = vmatpush1.msra.mxu0 0.0
    %5651 = vmatprep.subr.mxu0 0.0
    %5652 = vmatpush1.msra.mxu0 0.0
    %5653 = vmatprep.subr.mxu0 0.0
    %5654 = vmatpush1.msra.mxu0 0.0
    %5655 = vmatprep.mubr.f32.mxu0 0.0
    %v5656 = vand.u32 %v5418, 4294901760
    %5657 = vmatmul.mubr.f32.gmra.mrb[0].mxu0 %v5656
    %v5658 = vpop.f32.mrb[0].mxu0
    %v5659 = vadd.f32 %v5508, %v5658
    %v5660 = vpop.f32.mrb[0].mxu0
    %5661 = vdwg.mxu0
    %5662 = vmatprep.subr.mxu0 0.0
    %v5663 = vand.u32 %v69, 4294901760
    %v5664 = vsub.f32 %v69, %v5663
    %5665 = vmatpush1.msra.mxu0 %v5664
    %5666 = vmatprep.subr.mxu0 0.0
    %v5667 = vand.u32 %v70, 4294901760
    %v5668 = vsub.f32 %v70, %v5667
    %5669 = vmatpush1.msra.mxu0 %v5668
    %5670 = vmatprep.subr.mxu0 0.0
    %v5671 = vand.u32 %v71, 4294901760
    %v5672 = vsub.f32 %v71, %v5671
    %5673 = vmatpush1.msra.mxu0 %v5672
    %5674 = vmatprep.subr.mxu0 0.0
    %v5675 = vand.u32 %v72, 4294901760
    %v5676 = vsub.f32 %v72, %v5675
    %5677 = vmatpush1.msra.mxu0 %v5676
    %5678 = vmatprep.subr.mxu0 0.0
    %v5679 = vand.u32 %v73, 4294901760
    %v5680 = vsub.f32 %v73, %v5679
    %5681 = vmatpush1.msra.mxu0 %v5680
    %5682 = vmatprep.subr.mxu0 0.0
    %v5683 = vand.u32 %v74, 4294901760
    %v5684 = vsub.f32 %v74, %v5683
    %5685 = vmatpush1.msra.mxu0 %v5684
    %5686 = vmatprep.subr.mxu0 0.0
    %v5687 = vand.u32 %v75, 4294901760
    %v5688 = vsub.f32 %v75, %v5687
    %5689 = vmatpush1.msra.mxu0 %v5688
    %5690 = vmatprep.subr.mxu0 0.0
    %v5691 = vand.u32 %v76, 4294901760
    %v5692 = vsub.f32 %v76, %v5691
    %5693 = vmatpush1.msra.mxu0 %v5692
    %5694 = vmatprep.subr.mxu0 0.0
    %v5695 = vand.u32 %v77, 4294901760
    %v5696 = vsub.f32 %v77, %v5695
    %5697 = vmatpush1.msra.mxu0 %v5696
    %5698 = vmatprep.subr.mxu0 0.0
    %v5699 = vand.u32 %v78, 4294901760
    %v5700 = vsub.f32 %v78, %v5699
    %5701 = vmatpush1.msra.mxu0 %v5700
    %5702 = vmatprep.subr.mxu0 0.0
    %v5703 = vand.u32 %v79, 4294901760
    %v5704 = vsub.f32 %v79, %v5703
    %5705 = vmatpush1.msra.mxu0 %v5704
    %5706 = vmatprep.subr.mxu0 0.0
    %v5707 = vand.u32 %v80, 4294901760
    %v5708 = vsub.f32 %v80, %v5707
    %5709 = vmatpush1.msra.mxu0 %v5708
    %5710 = vmatprep.subr.mxu0 0.0
    %v5711 = vand.u32 %v81, 4294901760
    %v5712 = vsub.f32 %v81, %v5711
    %5713 = vmatpush1.msra.mxu0 %v5712
    %5714 = vmatprep.subr.mxu0 0.0
    %v5715 = vand.u32 %v82, 4294901760
    %v5716 = vsub.f32 %v82, %v5715
    %5717 = vmatpush1.msra.mxu0 %v5716
    %5718 = vmatprep.subr.mxu0 0.0
    %v5719 = vand.u32 %v83, 4294901760
    %v5720 = vsub.f32 %v83, %v5719
    %5721 = vmatpush1.msra.mxu0 %v5720
    %5722 = vmatprep.subr.mxu0 0.0
    %v5723 = vand.u32 %v84, 4294901760
    %v5724 = vsub.f32 %v84, %v5723
    %5725 = vmatpush1.msra.mxu0 %v5724
    %5726 = vmatprep.subr.mxu0 0.0
    %5727 = vmatpush1.msra.mxu0 0.0
    %5728 = vmatprep.subr.mxu0 0.0
    %5729 = vmatpush1.msra.mxu0 0.0
    %5730 = vmatprep.subr.mxu0 0.0
    %5731 = vmatpush1.msra.mxu0 0.0
    %5732 = vmatprep.subr.mxu0 0.0
    %5733 = vmatpush1.msra.mxu0 0.0
    %5734 = vmatprep.subr.mxu0 0.0
    %5735 = vmatpush1.msra.mxu0 0.0
    %5736 = vmatprep.subr.mxu0 0.0
    %5737 = vmatpush1.msra.mxu0 0.0
    %5738 = vmatprep.subr.mxu0 0.0
    %5739 = vmatpush1.msra.mxu0 0.0
    %5740 = vmatprep.subr.mxu0 0.0
    %5741 = vmatpush1.msra.mxu0 0.0
    %5742 = vmatprep.subr.mxu0 0.0
    %5743 = vmatpush1.msra.mxu0 0.0
    %5744 = vmatprep.subr.mxu0 0.0
    %5745 = vmatpush1.msra.mxu0 0.0
    %5746 = vmatprep.subr.mxu0 0.0
    %5747 = vmatpush1.msra.mxu0 0.0
    %5748 = vmatprep.subr.mxu0 0.0
    %5749 = vmatpush1.msra.mxu0 0.0
    %5750 = vmatprep.subr.mxu0 0.0
    %5751 = vmatpush1.msra.mxu0 0.0
    %5752 = vmatprep.subr.mxu0 0.0
    %5753 = vmatpush1.msra.mxu0 0.0
    %5754 = vmatprep.subr.mxu0 0.0
    %5755 = vmatpush1.msra.mxu0 0.0
    %5756 = vmatprep.subr.mxu0 0.0
    %5757 = vmatpush1.msra.mxu0 0.0
    %5758 = vmatprep.mubr.f32.mxu0 0.0
    %v5759 = vand.u32 %v5418, 4294901760
    %v5760 = vsub.f32 %v5418, %v5759
    %5761 = vmatmul.mubr.f32.gmra.mrb[0].mxu0 %v5760
    %v5762 = vpop.f32.mrb[0].mxu0
    %v5763 = vadd.f32 %v5659, %v5762
    %v5764 = vpop.f32.mrb[0].mxu0
    %5765 = vdwg.mxu0
    %5766 = vmatprep.subr.mxu0 0.0
    %v5767 = vand.u32 %v69, 4294901760
    %5768 = vmatpush1.msra.mxu0 %v5767
    %5769 = vmatprep.subr.mxu0 0.0
    %v5770 = vand.u32 %v70, 4294901760
    %5771 = vmatpush1.msra.mxu0 %v5770
    %5772 = vmatprep.subr.mxu0 0.0
    %v5773 = vand.u32 %v71, 4294901760
    %5774 = vmatpush1.msra.mxu0 %v5773
    %5775 = vmatprep.subr.mxu0 0.0
    %v5776 = vand.u32 %v72, 4294901760
    %5777 = vmatpush1.msra.mxu0 %v5776
    %5778 = vmatprep.subr.mxu0 0.0
    %v5779 = vand.u32 %v73, 4294901760
    %5780 = vmatpush1.msra.mxu0 %v5779
    %5781 = vmatprep.subr.mxu0 0.0
    %v5782 = vand.u32 %v74, 4294901760
    %5783 = vmatpush1.msra.mxu0 %v5782
    %5784 = vmatprep.subr.mxu0 0.0
    %v5785 = vand.u32 %v75, 4294901760
    %5786 = vmatpush1.msra.mxu0 %v5785
    %5787 = vmatprep.subr.mxu0 0.0
    %v5788 = vand.u32 %v76, 4294901760
    %5789 = vmatpush1.msra.mxu0 %v5788
    %5790 = vmatprep.subr.mxu0 0.0
    %v5791 = vand.u32 %v77, 4294901760
    %5792 = vmatpush1.msra.mxu0 %v5791
    %5793 = vmatprep.subr.mxu0 0.0
    %v5794 = vand.u32 %v78, 4294901760
    %5795 = vmatpush1.msra.mxu0 %v5794
    %5796 = vmatprep.subr.mxu0 0.0
    %v5797 = vand.u32 %v79, 4294901760
    %5798 = vmatpush1.msra.mxu0 %v5797
    %5799 = vmatprep.subr.mxu0 0.0
    %v5800 = vand.u32 %v80, 4294901760
    %5801 = vmatpush1.msra.mxu0 %v5800
    %5802 = vmatprep.subr.mxu0 0.0
    %v5803 = vand.u32 %v81, 4294901760
    %5804 = vmatpush1.msra.mxu0 %v5803
    %5805 = vmatprep.subr.mxu0 0.0
    %v5806 = vand.u32 %v82, 4294901760
    %5807 = vmatpush1.msra.mxu0 %v5806
    %5808 = vmatprep.subr.mxu0 0.0
    %v5809 = vand.u32 %v83, 4294901760
    %5810 = vmatpush1.msra.mxu0 %v5809
    %5811 = vmatprep.subr.mxu0 0.0
    %v5812 = vand.u32 %v84, 4294901760
    %5813 = vmatpush1.msra.mxu0 %v5812
    %5814 = vmatprep.subr.mxu0 0.0
    %5815 = vmatpush1.msra.mxu0 0.0
    %5816 = vmatprep.subr.mxu0 0.0
    %5817 = vmatpush1.msra.mxu0 0.0
    %5818 = vmatprep.subr.mxu0 0.0
    %5819 = vmatpush1.msra.mxu0 0.0
    %5820 = vmatprep.subr.mxu0 0.0
    %5821 = vmatpush1.msra.mxu0 0.0
    %5822 = vmatprep.subr.mxu0 0.0
    %5823 = vmatpush1.msra.mxu0 0.0
    %5824 = vmatprep.subr.mxu0 0.0
    %5825 = vmatpush1.msra.mxu0 0.0
    %5826 = vmatprep.subr.mxu0 0.0
    %5827 = vmatpush1.msra.mxu0 0.0
    %5828 = vmatprep.subr.mxu0 0.0
    %5829 = vmatpush1.msra.mxu0 0.0
    %5830 = vmatprep.subr.mxu0 0.0
    %5831 = vmatpush1.msra.mxu0 0.0
    %5832 = vmatprep.subr.mxu0 0.0
    %5833 = vmatpush1.msra.mxu0 0.0
    %5834 = vmatprep.subr.mxu0 0.0
    %5835 = vmatpush1.msra.mxu0 0.0
    %5836 = vmatprep.subr.mxu0 0.0
    %5837 = vmatpush1.msra.mxu0 0.0
    %5838 = vmatprep.subr.mxu0 0.0
    %5839 = vmatpush1.msra.mxu0 0.0
    %5840 = vmatprep.subr.mxu0 0.0
    %5841 = vmatpush1.msra.mxu0 0.0
    %5842 = vmatprep.subr.mxu0 0.0
    %5843 = vmatpush1.msra.mxu0 0.0
    %5844 = vmatprep.subr.mxu0 0.0
    %5845 = vmatpush1.msra.mxu0 0.0
    %5846 = vmatprep.mubr.f32.mxu0 0.0
    %v5847 = vand.u32 %v5418, 4294901760
    %v5848 = vsub.f32 %v5418, %v5847
    %v5849 = vand.u32 %v5848, 4294901760
    %5850 = vmatmul.mubr.f32.gmra.mrb[0].mxu0 %v5849
    %v5851 = vpop.f32.mrb[0].mxu0
    %v5852 = vadd.f32 %v5763, %v5851
    %v5853 = vpop.f32.mrb[0].mxu0
    %5854 = vdwg.mxu0
    %5855 = vmatprep.subr.mxu0 0.0
    %v5856 = vand.u32 %v69, 4294901760
    %v5857 = vsub.f32 %v69, %v5856
    %v5858 = vand.u32 %v5857, 4294901760
    %5859 = vmatpush1.msra.mxu0 %v5858
    %5860 = vmatprep.subr.mxu0 0.0
    %v5861 = vand.u32 %v70, 4294901760
    %v5862 = vsub.f32 %v70, %v5861
    %v5863 = vand.u32 %v5862, 4294901760
    %5864 = vmatpush1.msra.mxu0 %v5863
    %5865 = vmatprep.subr.mxu0 0.0
    %v5866 = vand.u32 %v71, 4294901760
    %v5867 = vsub.f32 %v71, %v5866
    %v5868 = vand.u32 %v5867, 4294901760
    %5869 = vmatpush1.msra.mxu0 %v5868
    %5870 = vmatprep.subr.mxu0 0.0
    %v5871 = vand.u32 %v72, 4294901760
    %v5872 = vsub.f32 %v72, %v5871
    %v5873 = vand.u32 %v5872, 4294901760
    %5874 = vmatpush1.msra.mxu0 %v5873
    %5875 = vmatprep.subr.mxu0 0.0
    %v5876 = vand.u32 %v73, 4294901760
    %v5877 = vsub.f32 %v73, %v5876
    %v5878 = vand.u32 %v5877, 4294901760
    %5879 = vmatpush1.msra.mxu0 %v5878
    %5880 = vmatprep.subr.mxu0 0.0
    %v5881 = vand.u32 %v74, 4294901760
    %v5882 = vsub.f32 %v74, %v5881
    %v5883 = vand.u32 %v5882, 4294901760
    %5884 = vmatpush1.msra.mxu0 %v5883
    %5885 = vmatprep.subr.mxu0 0.0
    %v5886 = vand.u32 %v75, 4294901760
    %v5887 = vsub.f32 %v75, %v5886
    %v5888 = vand.u32 %v5887, 4294901760
    %5889 = vmatpush1.msra.mxu0 %v5888
    %5890 = vmatprep.subr.mxu0 0.0
    %v5891 = vand.u32 %v76, 4294901760
    %v5892 = vsub.f32 %v76, %v5891
    %v5893 = vand.u32 %v5892, 4294901760
    %5894 = vmatpush1.msra.mxu0 %v5893
    %5895 = vmatprep.subr.mxu0 0.0
    %v5896 = vand.u32 %v77, 4294901760
    %v5897 = vsub.f32 %v77, %v5896
    %v5898 = vand.u32 %v5897, 4294901760
    %5899 = vmatpush1.msra.mxu0 %v5898
    %5900 = vmatprep.subr.mxu0 0.0
    %v5901 = vand.u32 %v78, 4294901760
    %v5902 = vsub.f32 %v78, %v5901
    %v5903 = vand.u32 %v5902, 4294901760
    %5904 = vmatpush1.msra.mxu0 %v5903
    %5905 = vmatprep.subr.mxu0 0.0
    %v5906 = vand.u32 %v79, 4294901760
    %v5907 = vsub.f32 %v79, %v5906
    %v5908 = vand.u32 %v5907, 4294901760
    %5909 = vmatpush1.msra.mxu0 %v5908
    %5910 = vmatprep.subr.mxu0 0.0
    %v5911 = vand.u32 %v80, 4294901760
    %v5912 = vsub.f32 %v80, %v5911
    %v5913 = vand.u32 %v5912, 4294901760
    %5914 = vmatpush1.msra.mxu0 %v5913
    %5915 = vmatprep.subr.mxu0 0.0
    %v5916 = vand.u32 %v81, 4294901760
    %v5917 = vsub.f32 %v81, %v5916
    %v5918 = vand.u32 %v5917, 4294901760
    %5919 = vmatpush1.msra.mxu0 %v5918
    %5920 = vmatprep.subr.mxu0 0.0
    %v5921 = vand.u32 %v82, 4294901760
    %v5922 = vsub.f32 %v82, %v5921
    %v5923 = vand.u32 %v5922, 4294901760
    %5924 = vmatpush1.msra.mxu0 %v5923
    %5925 = vmatprep.subr.mxu0 0.0
    %v5926 = vand.u32 %v83, 4294901760
    %v5927 = vsub.f32 %v83, %v5926
    %v5928 = vand.u32 %v5927, 4294901760
    %5929 = vmatpush1.msra.mxu0 %v5928
    %5930 = vmatprep.subr.mxu0 0.0
    %v5931 = vand.u32 %v84, 4294901760
    %v5932 = vsub.f32 %v84, %v5931
    %v5933 = vand.u32 %v5932, 4294901760
    %5934 = vmatpush1.msra.mxu0 %v5933
    %5935 = vmatprep.subr.mxu0 0.0
    %5936 = vmatpush1.msra.mxu0 0.0
    %5937 = vmatprep.subr.mxu0 0.0
    %5938 = vmatpush1.msra.mxu0 0.0
    %5939 = vmatprep.subr.mxu0 0.0
    %5940 = vmatpush1.msra.mxu0 0.0
    %5941 = vmatprep.subr.mxu0 0.0
    %5942 = vmatpush1.msra.mxu0 0.0
    %5943 = vmatprep.subr.mxu0 0.0
    %5944 = vmatpush1.msra.mxu0 0.0
    %5945 = vmatprep.subr.mxu0 0.0
    %5946 = vmatpush1.msra.mxu0 0.0
    %5947 = vmatprep.subr.mxu0 0.0
    %5948 = vmatpush1.msra.mxu0 0.0
    %5949 = vmatprep.subr.mxu0 0.0
    %5950 = vmatpush1.msra.mxu0 0.0
    %5951 = vmatprep.subr.mxu0 0.0
    %5952 = vmatpush1.msra.mxu0 0.0
    %5953 = vmatprep.subr.mxu0 0.0
    %5954 = vmatpush1.msra.mxu0 0.0
    %5955 = vmatprep.subr.mxu0 0.0
    %5956 = vmatpush1.msra.mxu0 0.0
    %5957 = vmatprep.subr.mxu0 0.0
    %5958 = vmatpush1.msra.mxu0 0.0
    %5959 = vmatprep.subr.mxu0 0.0
    %5960 = vmatpush1.msra.mxu0 0.0
    %5961 = vmatprep.subr.mxu0 0.0
    %5962 = vmatpush1.msra.mxu0 0.0
    %5963 = vmatprep.subr.mxu0 0.0
    %5964 = vmatpush1.msra.mxu0 0.0
    %5965 = vmatprep.subr.mxu0 0.0
    %5966 = vmatpush1.msra.mxu0 0.0
    %5967 = vmatprep.mubr.f32.mxu0 0.0
    %v5968 = vand.u32 %v5418, 4294901760
    %5969 = vmatmul.mubr.f32.gmra.mrb[0].mxu0 %v5968
    %v5970 = vpop.f32.mrb[0].mxu0
    %v5971 = vadd.f32 %v5852, %v5970
    %v5972 = vpop.f32.mrb[0].mxu0
    %5973 = vdwg.mxu0
    %5974 = vmatprep.subr.mxu0 0.0
    %v5975 = vand.u32 %v69, 4294901760
    %5976 = vmatpush1.msra.mxu0 %v5975
    %5977 = vmatprep.subr.mxu0 0.0
    %v5978 = vand.u32 %v70, 4294901760
    %5979 = vmatpush1.msra.mxu0 %v5978
    %5980 = vmatprep.subr.mxu0 0.0
    %v5981 = vand.u32 %v71, 4294901760
    %5982 = vmatpush1.msra.mxu0 %v5981
    %5983 = vmatprep.subr.mxu0 0.0
    %v5984 = vand.u32 %v72, 4294901760
    %5985 = vmatpush1.msra.mxu0 %v5984
    %5986 = vmatprep.subr.mxu0 0.0
    %v5987 = vand.u32 %v73, 4294901760
    %5988 = vmatpush1.msra.mxu0 %v5987
    %5989 = vmatprep.subr.mxu0 0.0
    %v5990 = vand.u32 %v74, 4294901760
    %5991 = vmatpush1.msra.mxu0 %v5990
    %5992 = vmatprep.subr.mxu0 0.0
    %v5993 = vand.u32 %v75, 4294901760
    %5994 = vmatpush1.msra.mxu0 %v5993
    %5995 = vmatprep.subr.mxu0 0.0
    %v5996 = vand.u32 %v76, 4294901760
    %5997 = vmatpush1.msra.mxu0 %v5996
    %5998 = vmatprep.subr.mxu0 0.0
    %v5999 = vand.u32 %v77, 4294901760
    %6000 = vmatpush1.msra.mxu0 %v5999
    %6001 = vmatprep.subr.mxu0 0.0
    %v6002 = vand.u32 %v78, 4294901760
    %6003 = vmatpush1.msra.mxu0 %v6002
    %6004 = vmatprep.subr.mxu0 0.0
    %v6005 = vand.u32 %v79, 4294901760
    %6006 = vmatpush1.msra.mxu0 %v6005
    %6007 = vmatprep.subr.mxu0 0.0
    %v6008 = vand.u32 %v80, 4294901760
    %6009 = vmatpush1.msra.mxu0 %v6008
    %6010 = vmatprep.subr.mxu0 0.0
    %v6011 = vand.u32 %v81, 4294901760
    %6012 = vmatpush1.msra.mxu0 %v6011
    %6013 = vmatprep.subr.mxu0 0.0
    %v6014 = vand.u32 %v82, 4294901760
    %6015 = vmatpush1.msra.mxu0 %v6014
    %6016 = vmatprep.subr.mxu0 0.0
    %v6017 = vand.u32 %v83, 4294901760
    %6018 = vmatpush1.msra.mxu0 %v6017
    %6019 = vmatprep.subr.mxu0 0.0
    %v6020 = vand.u32 %v84, 4294901760
    %6021 = vmatpush1.msra.mxu0 %v6020
    %6022 = vmatprep.subr.mxu0 0.0
    %6023 = vmatpush1.msra.mxu0 0.0
    %6024 = vmatprep.subr.mxu0 0.0
    %6025 = vmatpush1.msra.mxu0 0.0
    %6026 = vmatprep.subr.mxu0 0.0
    %6027 = vmatpush1.msra.mxu0 0.0
    %6028 = vmatprep.subr.mxu0 0.0
    %6029 = vmatpush1.msra.mxu0 0.0
    %6030 = vmatprep.subr.mxu0 0.0
    %6031 = vmatpush1.msra.mxu0 0.0
    %6032 = vmatprep.subr.mxu0 0.0
    %6033 = vmatpush1.msra.mxu0 0.0
    %6034 = vmatprep.subr.mxu0 0.0
    %6035 = vmatpush1.msra.mxu0 0.0
    %6036 = vmatprep.subr.mxu0 0.0
    %6037 = vmatpush1.msra.mxu0 0.0
    %6038 = vmatprep.subr.mxu0 0.0
    %6039 = vmatpush1.msra.mxu0 0.0
    %6040 = vmatprep.subr.mxu0 0.0
    %6041 = vmatpush1.msra.mxu0 0.0
    %6042 = vmatprep.subr.mxu0 0.0
    %6043 = vmatpush1.msra.mxu0 0.0
    %6044 = vmatprep.subr.mxu0 0.0
    %6045 = vmatpush1.msra.mxu0 0.0
    %6046 = vmatprep.subr.mxu0 0.0
    %6047 = vmatpush1.msra.mxu0 0.0
    %6048 = vmatprep.subr.mxu0 0.0
    %6049 = vmatpush1.msra.mxu0 0.0
    %6050 = vmatprep.subr.mxu0 0.0
    %6051 = vmatpush1.msra.mxu0 0.0
    %6052 = vmatprep.subr.mxu0 0.0
    %6053 = vmatpush1.msra.mxu0 0.0
    %6054 = vmatprep.mubr.f32.mxu0 0.0
    %v6055 = vand.u32 %v5418, 4294901760
    %6056 = vmatmul.mubr.f32.gmra.mrb[0].mxu0 %v6055
    %v6057 = vpop.f32.mrb[0].mxu0
    %v6058 = vadd.f32 %v5971, %v6057
    %v6059 = vpop.f32.mrb[0].mxu0
    %6060 = vdwg.mxu0
    %v6061 = vadd.f32 %v908, %v6058
    %v6062 = vtanh.pop %v6061
    %6063 = vst [vmem:[#allocation8 + $0x38] sm:$0xff] %v6062
    %6064 = vst [vmem:[#allocation9] sm:$0xff] %v6062
    // Predicated region
    $region34: #{rnn_layer_forward.1} parent=1 // pred_check
      _
    $region35: #{rnn_layer_forward.1} parent=1 // pred_check_branch
      %6066 = sbr.rel (0) target = $region37
    $region36: #{rnn_layer_forward.1} parent=1 // pred_region
      %s6068 = ssub.s32 1024, 1024
      %6069 = vsyncadd [#allocation4], %s6068
      %s6070 = sshll.u32 [#allocation8], 4
      %s6071 = int_to_ptr.vmem [resolvable:$true] %s6070
      %6076 = dma.vmem_to_hbm [thread:$0]  %s6071, 1024, %s5, [#allocation4], 128, 128, 8
    $region37: #{rnn_layer_forward.1} parent=1 // pred_fallthru
      _
    // Predicated region
    $region38: #{rnn_layer_forward.1} parent=1 // pred_check
      _
    $region39: #{rnn_layer_forward.1} parent=1 // pred_check_branch
      %6078 = sbr.rel (0) target = $region41
    $region40: #{rnn_layer_forward.1} parent=1 // pred_region
      %s6080 = ssub.s32 128, 128
      %6081 = vsyncadd [#allocation10], %s6080
      %s6083 = sshll.u32 [#allocation9], 4
      %s6084 = int_to_ptr.vmem [resolvable:$true] %s6083
      %6086 = dma.vmem_to_hbm [thread:$0]  %s6084, 128, %s6, [#allocation10]
    $region41: #{rnn_layer_forward.1} parent=1 // pred_fallthru
      _
    // Predicated region
    $region42: #{rnn_layer_forward.1} parent=1 // pred_check
      _
    $region43: #{rnn_layer_forward.1} parent=1 // pred_check_branch
      %6088 = sbr.rel (0) target = $region45
    $region44: #{rnn_layer_forward.1} parent=1 // pred_region
      %6089 = dma.done [#allocation4], 1024
    $region45: #{rnn_layer_forward.1} parent=1 // pred_fallthru
      _
    // Predicated region
    $region46: #{rnn_layer_forward.1} parent=1 // pred_check
      _
    $region47: #{rnn_layer_forward.1} parent=1 // pred_check_branch
      %6091 = sbr.rel (0) target = $region49
    $region48: #{rnn_layer_forward.1} parent=1 // pred_region
      %6092 = dma.done [#allocation10], 128
    $region49: #{rnn_layer_forward.1} parent=1 // pred_fallthru
      _
    %6093 = vsyncpa [#allocation3], 1
    %6094 = vsyncpa [#allocation6], 1
    %6095 = vsyncpa [#allocation4], 1
    %6096 = vsyncpa [#allocation10], 1

</llo_original>
